<compile_context>
chip_gen: v5e
topology: v5e:2x2
jax: 0.10.0
libtpu: 0.0.40
codegen_flags: <defaults>
</compile_context>

<pallas_src>
import functools

import jax
import jax.numpy as jnp
from jax import lax
from jax.experimental import pallas as pl
from jax.experimental.pallas import tpu as pltpu


def _tiny_vocab_lookup(ids_col, tab_ref):
    """Vectorized tiny-vocab lookup: (tile_s, 1) int ids -> (tile_s, H).

    Pure VPU selects (one jnp.where per extra table row); no MXU, no per-row
    scalar loop.
    """
    nrows, h = tab_ref.shape
    tile_s = ids_col.shape[0]
    emb = jnp.broadcast_to(tab_ref[0:1, :], (tile_s, h))
    for r in range(1, nrows):
        emb = jnp.where(ids_col == r, tab_ref[r:r + 1, :], emb)
    return emb


def _bert_emb_kernel(ids_smem,                                  # scalar prefetch (SMEM)
                     word_hbm, tt_tab_ref, dt_tab_ref,          # inputs
                     tt_ids_ref, dt_ids_ref,
                     pos_ref, gamma_ref, beta_ref,
                     out_ref,                                   # output
                     gbuf, sem,                                 # scratch
                     *, eps: float, tile_s: int, vocab: int):
    b = pl.program_id(0)
    st = pl.program_id(1)
    s0 = st * tile_s

    def word_copy(i):
        row_id = jnp.clip(ids_smem[b, s0 + i], 0, vocab - 1)    # guard OOB ids
        return pltpu.make_async_copy(word_hbm.at[row_id], gbuf.at[i], sem.at[i])

    # Phase 1: issue every word-row gather DMA up front (scalar-slot work only).
    # All SMEM scalar reads happen before any .wait().
    def _issue(i, carry):
        word_copy(i).start()
        return carry
    lax.fori_loop(0, tile_s, _issue, 0, unroll=True)

    # Phase 2 (DMAs in flight): vectorized token_type / doc_type lookups plus
    # position embeddings -> partial sum over the whole (tile_s, H) tile.
    tt_emb = _tiny_vocab_lookup(tt_ids_ref[...], tt_tab_ref)
    dt_emb = _tiny_vocab_lookup(dt_ids_ref[...], dt_tab_ref)
    partial = pos_ref[...] + tt_emb + dt_emb                    # (tile_s, H) f32

    # Phase 3: wait for the gathered rows, add, LayerNorm (one-pass stats), store.
    def _wait(i, carry):
        word_copy(i).wait()
        return carry
    lax.fori_loop(0, tile_s, _wait, 0, unroll=True)

    emb = gbuf[...].astype(jnp.float32) + partial               # (tile_s, H)

    mean = jnp.mean(emb, axis=-1, keepdims=True)
    meansq = jnp.mean(emb * emb, axis=-1, keepdims=True)
    var = jnp.maximum(meansq - mean * mean, 0.0)
    normed = (emb - mean) * lax.rsqrt(var + eps)
    out = normed * gamma_ref[...] + beta_ref[...]               # (1,H) broadcast

    # Dropout(p=0.1) -> identity (eval semantics).
    out_ref[...] = out.astype(out_ref.dtype)


def bert_embeddings(input_ids, token_type_ids, doc_type_ids,
                    word_table, pos_table, tt_table, dt_table,
                    gamma, beta, *, eps=1e-6, past_key_values_length=0,
                    tile_s=None, out_dtype=jnp.float32):
    B, S = input_ids.shape
    V, H = word_table.shape
    Tv = tt_table.shape[0]
    Dv = dt_table.shape[0]

    if tile_s is None:
        tile_s = 8
        for cand in (256, 128, 64, 32, 16, 8):
            if S % cand == 0:
                tile_s = cand
                break
    assert S % tile_s == 0, "sequence length must be divisible by tile_s"
    assert tile_s % 8 == 0, "tile_s must be a multiple of 8 (sublane tiling)"
    nst = S // tile_s

    # position_ids = arange(past, past + S) -> slice the table (glue in JAX).
    pos_slice = lax.dynamic_slice(pos_table, (past_key_values_length, 0), (S, H))
    gamma2 = gamma.reshape(1, H)
    beta2 = beta.reshape(1, H)

    # Per-token id columns, laid out so the token axis sits on sublanes:
    # (B, nst, tile_s, 1) -> kernel block (tile_s, 1), lane-broadcast vs the
    # (1, H) table rows.
    ids_i32 = input_ids.astype(jnp.int32)
    tt_ids_r = token_type_ids.astype(jnp.int32).reshape(B, nst, tile_s, 1)
    dt_ids_r = doc_type_ids.astype(jnp.int32).reshape(B, nst, tile_s, 1)

    kernel = functools.partial(_bert_emb_kernel, eps=eps, tile_s=tile_s, vocab=V)

    grid = (B, nst)

    return pl.pallas_call(
        kernel,
        out_shape=jax.ShapeDtypeStruct((B, S, H), out_dtype),
        grid_spec=pltpu.PrefetchScalarGridSpec(
            num_scalar_prefetch=1,                 # input_ids -> SMEM (DMA addressing)
            grid=grid,
            in_specs=[
                pl.BlockSpec(memory_space=pl.ANY),                            # word table stays in HBM
                pl.BlockSpec((Tv, H), lambda b, st, ids: (0, 0)),             # token_type table (VMEM resident)
                pl.BlockSpec((Dv, H), lambda b, st, ids: (0, 0)),             # doc_type table   (VMEM resident)
                pl.BlockSpec((None, None, tile_s, 1),
                             lambda b, st, ids: (b, st, 0, 0)),               # token_type id column
                pl.BlockSpec((None, None, tile_s, 1),
                             lambda b, st, ids: (b, st, 0, 0)),               # doc_type id column
                pl.BlockSpec((tile_s, H), lambda b, st, ids: (st, 0)),        # position slice tile
                pl.BlockSpec((1, H), lambda b, st, ids: (0, 0)),              # LayerNorm gamma
                pl.BlockSpec((1, H), lambda b, st, ids: (0, 0)),              # LayerNorm beta
            ],
            out_specs=pl.BlockSpec((None, tile_s, H),
                                   lambda b, st, ids: (b, st, 0)),
            scratch_shapes=[
                pltpu.VMEM((tile_s, H), word_table.dtype),   # gathered word rows
                pltpu.SemaphoreType.DMA((tile_s,)),          # one DMA sem per gathered row
            ]),
        compiler_params=pltpu.CompilerParams(
            dimension_semantics=("parallel", "parallel"),
            vmem_limit_bytes=32 * 1024 * 1024),
    )(ids_i32, word_table, tt_table, dt_table,
      tt_ids_r, dt_ids_r, pos_slice, gamma2, beta2)


def _reference(input_ids, token_type_ids, doc_type_ids,
               word_table, pos_table, tt_table, dt_table,
               gamma, beta, eps=1e-6):
    S = input_ids.shape[1]
    emb = (word_table[input_ids]
           + tt_table[token_type_ids]
           + dt_table[doc_type_ids]
           + pos_table[:S][None, :, :])
    mean = jnp.mean(emb, axis=-1, keepdims=True)
    var = jnp.mean((emb - mean) ** 2, axis=-1, keepdims=True)
    return (emb - mean) * lax.rsqrt(var + eps) * gamma + beta


if __name__ == "__main__":
    # Small synthetic config consistent with the module (H lane-dense = 128).
    B, S, H = 2, 16, 128
    vocab_size = 64
    max_position_embeddings = 64
    type_vocab_size = 2
    type_doc_size = 2
    pad_token_id = 0
    eps = 1e-6

    key = jax.random.PRNGKey(0)
    k_word, k_pos, k_tt, k_dt, k_ids, k_tti, k_dti = jax.random.split(key, 7)

    word_table = jax.random.normal(k_word, (vocab_size, H), jnp.float32)
    # nn.Embedding padding_idx row is zero-initialized.
    word_table = word_table.at[pad_token_id].set(0.0)
    pos_table = jax.random.normal(k_pos, (max_position_embeddings, H), jnp.float32)
    tt_table = jax.random.normal(k_tt, (type_vocab_size, H), jnp.float32)
    dt_table = jax.random.normal(k_dt, (type_doc_size, H), jnp.float32)
    gamma = jnp.ones((H,), jnp.float32)
    beta = jnp.zeros((H,), jnp.float32)

    input_ids = jax.random.randint(k_ids, (B, S), 0, vocab_size, jnp.int32)
    token_type_ids = jax.random.randint(k_tti, (B, S), 0, type_vocab_size, jnp.int32)
    doc_type_ids = jax.random.randint(k_dti, (B, S), 0, type_doc_size, jnp.int32)

    out = bert_embeddings(input_ids, token_type_ids, doc_type_ids,
                          word_table, pos_table, tt_table, dt_table,
                          gamma, beta, eps=eps)
    out = jax.block_until_ready(out)

    ref = _reference(input_ids, token_type_ids, doc_type_ids,
                     word_table, pos_table, tt_table, dt_table,
                     gamma, beta, eps=eps)
    assert out.shape == (B, S, H)
    assert jnp.allclose(out, ref, atol=1e-4, rtol=1e-4), float(jnp.max(jnp.abs(out - ref)))

    print("KERNEL_OK")
</pallas_src>

<mosaic_0001>
module attributes {stable_mosaic.version = 11 : i64} {
  func.func @_bert_emb_kernel(%arg0: i32, %arg1: i32, %arg2: memref<2x16xi32, #tpu.memory_space<smem>>, %arg3: memref<64x128xf32, #tpu.memory_space<any>>, %arg4: memref<2x128xf32, #tpu.memory_space<vmem>>, %arg5: memref<2x128xf32, #tpu.memory_space<vmem>>, %arg6: memref<1x1x16x1xi32, #tpu.memory_space<vmem>>, %arg7: memref<1x1x16x1xi32, #tpu.memory_space<vmem>>, %arg8: memref<16x128xf32, #tpu.memory_space<vmem>>, %arg9: memref<1x128xf32, #tpu.memory_space<vmem>>, %arg10: memref<1x128xf32, #tpu.memory_space<vmem>>, %arg11: memref<1x16x128xf32, #tpu.memory_space<vmem>>, %arg12: memref<16x128xf32, #tpu.memory_space<vmem>>, %arg13: memref<16x!tpu.dma_semaphore, #tpu.memory_space<semaphore_mem>>) attributes {dimension_semantics = [#tpu.dimension_semantics<parallel>, #tpu.dimension_semantics<parallel>], iteration_bounds = array<i64: 2, 1>, scalar_prefetch = 1 : i64, scratch_operands = 2 : i64, tpu.core_type = #tpu.core_type<tc>, window_params = [{}, {pipeline_mode = #tpu.pipeline_mode<synchronous>, transform_indices = @transform_1, window_bounds = array<i64: 2, 128>}, {pipeline_mode = #tpu.pipeline_mode<synchronous>, transform_indices = @transform_2, window_bounds = array<i64: 2, 128>}, {transform_indices = @transform_3, window_bounds = array<i64: 1, 1, 16, 1>}, {transform_indices = @transform_4, window_bounds = array<i64: 1, 1, 16, 1>}, {transform_indices = @transform_5, window_bounds = array<i64: 16, 128>}, {pipeline_mode = #tpu.pipeline_mode<synchronous>, transform_indices = @transform_6, window_bounds = array<i64: 1, 128>}, {pipeline_mode = #tpu.pipeline_mode<synchronous>, transform_indices = @transform_7, window_bounds = array<i64: 1, 128>}, {transform_indices = @transform_8, window_bounds = array<i64: 1, 16, 128>}]} {
    %c16_i32 = arith.constant 16 : i32
    %0 = arith.muli %arg1, %c16_i32 : i32
    %c0_i32 = arith.constant 0 : i32
    %1 = arith.addi %0, %c0_i32 : i32
    %2 = arith.index_cast %arg0 : i32 to index
    %3 = arith.index_cast %1 : i32 to index
    %4 = memref.load %arg2[%2, %3] : memref<2x16xi32, #tpu.memory_space<smem>>
    %c0_i32_0 = arith.constant 0 : i32
    %c63_i32 = arith.constant 63 : i32
    %5 = arith.maxsi %c0_i32_0, %4 : i32
    %6 = arith.minsi %c63_i32, %5 : i32
    %c0_i32_1 = arith.constant 0 : i32
    %7 = tpu.memref_slice %arg3[%6, %c0_i32_1] : memref<64x128xf32, #tpu.memory_space<any>> -> memref<1x128xf32, #tpu.memory_space<any>>
    %8 = tpu.memref_squeeze %7 : memref<1x128xf32, #tpu.memory_space<any>> -> memref<128xf32, #tpu.memory_space<any>>
    %c0_i32_2 = arith.constant 0 : i32
    %9 = tpu.memref_slice %arg12[%c0_i32, %c0_i32_2] : memref<16x128xf32, #tpu.memory_space<vmem>> -> memref<1x128xf32, #tpu.memory_space<vmem>>
    %10 = tpu.memref_squeeze %9 : memref<1x128xf32, #tpu.memory_space<vmem>> -> memref<128xf32, #tpu.memory_space<vmem>>
    %11 = tpu.memref_slice %arg13[%c0_i32] : memref<16x!tpu.dma_semaphore, #tpu.memory_space<semaphore_mem>> -> memref<1x!tpu.dma_semaphore, #tpu.memory_space<semaphore_mem>>
    %12 = tpu.memref_squeeze %11 : memref<1x!tpu.dma_semaphore, #tpu.memory_space<semaphore_mem>> -> memref<!tpu.dma_semaphore, #tpu.memory_space<semaphore_mem>>
    tpu.enqueue_dma source(%8 : memref<128xf32, #tpu.memory_space<any>>) target(%10 : memref<128xf32, #tpu.memory_space<vmem>>) target_semaphore(%12 : memref<!tpu.dma_semaphore, #tpu.memory_space<semaphore_mem>>)
    %c1_i32 = arith.constant 1 : i32
    %13 = arith.addi %0, %c1_i32 : i32
    %14 = arith.index_cast %arg0 : i32 to index
    %15 = arith.index_cast %13 : i32 to index
    %16 = memref.load %arg2[%14, %15] : memref<2x16xi32, #tpu.memory_space<smem>>
    %c0_i32_3 = arith.constant 0 : i32
    %c63_i32_4 = arith.constant 63 : i32
    %17 = arith.maxsi %c0_i32_3, %16 : i32
    %18 = arith.minsi %c63_i32_4, %17 : i32
    %c0_i32_5 = arith.constant 0 : i32
    %19 = tpu.memref_slice %arg3[%18, %c0_i32_5] : memref<64x128xf32, #tpu.memory_space<any>> -> memref<1x128xf32, #tpu.memory_space<any>>
    %20 = tpu.memref_squeeze %19 : memref<1x128xf32, #tpu.memory_space<any>> -> memref<128xf32, #tpu.memory_space<any>>
    %c0_i32_6 = arith.constant 0 : i32
    %21 = tpu.memref_slice %arg12[%c1_i32, %c0_i32_6] : memref<16x128xf32, #tpu.memory_space<vmem>> -> memref<1x128xf32, #tpu.memory_space<vmem>>
    %22 = tpu.memref_squeeze %21 : memref<1x128xf32, #tpu.memory_space<vmem>> -> memref<128xf32, #tpu.memory_space<vmem>>
    %23 = tpu.memref_slice %arg13[%c1_i32] : memref<16x!tpu.dma_semaphore, #tpu.memory_space<semaphore_mem>> -> memref<1x!tpu.dma_semaphore, #tpu.memory_space<semaphore_mem>>
    %24 = tpu.memref_squeeze %23 : memref<1x!tpu.dma_semaphore, #tpu.memory_space<semaphore_mem>> -> memref<!tpu.dma_semaphore, #tpu.memory_space<semaphore_mem>>
    tpu.enqueue_dma source(%20 : memref<128xf32, #tpu.memory_space<any>>) target(%22 : memref<128xf32, #tpu.memory_space<vmem>>) target_semaphore(%24 : memref<!tpu.dma_semaphore, #tpu.memory_space<semaphore_mem>>)
    %c2_i32 = arith.constant 2 : i32
    %25 = arith.addi %0, %c2_i32 : i32
    %26 = arith.index_cast %arg0 : i32 to index
    %27 = arith.index_cast %25 : i32 to index
    %28 = memref.load %arg2[%26, %27] : memref<2x16xi32, #tpu.memory_space<smem>>
    %c0_i32_7 = arith.constant 0 : i32
    %c63_i32_8 = arith.constant 63 : i32
    %29 = arith.maxsi %c0_i32_7, %28 : i32
    %30 = arith.minsi %c63_i32_8, %29 : i32
    %c0_i32_9 = arith.constant 0 : i32
    %31 = tpu.memref_slice %arg3[%30, %c0_i32_9] : memref<64x128xf32, #tpu.memory_space<any>> -> memref<1x128xf32, #tpu.memory_space<any>>
    %32 = tpu.memref_squeeze %31 : memref<1x128xf32, #tpu.memory_space<any>> -> memref<128xf32, #tpu.memory_space<any>>
    %c0_i32_10 = arith.constant 0 : i32
    %33 = tpu.memref_slice %arg12[%c2_i32, %c0_i32_10] : memref<16x128xf32, #tpu.memory_space<vmem>> -> memref<1x128xf32, #tpu.memory_space<vmem>>
    %34 = tpu.memref_squeeze %33 : memref<1x128xf32, #tpu.memory_space<vmem>> -> memref<128xf32, #tpu.memory_space<vmem>>
    %35 = tpu.memref_slice %arg13[%c2_i32] : memref<16x!tpu.dma_semaphore, #tpu.memory_space<semaphore_mem>> -> memref<1x!tpu.dma_semaphore, #tpu.memory_space<semaphore_mem>>
    %36 = tpu.memref_squeeze %35 : memref<1x!tpu.dma_semaphore, #tpu.memory_space<semaphore_mem>> -> memref<!tpu.dma_semaphore, #tpu.memory_space<semaphore_mem>>
    tpu.enqueue_dma source(%32 : memref<128xf32, #tpu.memory_space<any>>) target(%34 : memref<128xf32, #tpu.memory_space<vmem>>) target_semaphore(%36 : memref<!tpu.dma_semaphore, #tpu.memory_space<semaphore_mem>>)
    %c3_i32 = arith.constant 3 : i32
    %37 = arith.addi %0, %c3_i32 : i32
    %38 = arith.index_cast %arg0 : i32 to index
    %39 = arith.index_cast %37 : i32 to index
    %40 = memref.load %arg2[%38, %39] : memref<2x16xi32, #tpu.memory_space<smem>>
    %c0_i32_11 = arith.constant 0 : i32
    %c63_i32_12 = arith.constant 63 : i32
    %41 = arith.maxsi %c0_i32_11, %40 : i32
    %42 = arith.minsi %c63_i32_12, %41 : i32
    %c0_i32_13 = arith.constant 0 : i32
    %43 = tpu.memref_slice %arg3[%42, %c0_i32_13] : memref<64x128xf32, #tpu.memory_space<any>> -> memref<1x128xf32, #tpu.memory_space<any>>
    %44 = tpu.memref_squeeze %43 : memref<1x128xf32, #tpu.memory_space<any>> -> memref<128xf32, #tpu.memory_space<any>>
    %c0_i32_14 = arith.constant 0 : i32
    %45 = tpu.memref_slice %arg12[%c3_i32, %c0_i32_14] : memref<16x128xf32, #tpu.memory_space<vmem>> -> memref<1x128xf32, #tpu.memory_space<vmem>>
    %46 = tpu.memref_squeeze %45 : memref<1x128xf32, #tpu.memory_space<vmem>> -> memref<128xf32, #tpu.memory_space<vmem>>
    %47 = tpu.memref_slice %arg13[%c3_i32] : memref<16x!tpu.dma_semaphore, #tpu.memory_space<semaphore_mem>> -> memref<1x!tpu.dma_semaphore, #tpu.memory_space<semaphore_mem>>
    %48 = tpu.memref_squeeze %47 : memref<1x!tpu.dma_semaphore, #tpu.memory_space<semaphore_mem>> -> memref<!tpu.dma_semaphore, #tpu.memory_space<semaphore_mem>>
    tpu.enqueue_dma source(%44 : memref<128xf32, #tpu.memory_space<any>>) target(%46 : memref<128xf32, #tpu.memory_space<vmem>>) target_semaphore(%48 : memref<!tpu.dma_semaphore, #tpu.memory_space<semaphore_mem>>)
    %c4_i32 = arith.constant 4 : i32
    %49 = arith.addi %0, %c4_i32 : i32
    %50 = arith.index_cast %arg0 : i32 to index
    %51 = arith.index_cast %49 : i32 to index
    %52 = memref.load %arg2[%50, %51] : memref<2x16xi32, #tpu.memory_space<smem>>
    %c0_i32_15 = arith.constant 0 : i32
    %c63_i32_16 = arith.constant 63 : i32
    %53 = arith.maxsi %c0_i32_15, %52 : i32
    %54 = arith.minsi %c63_i32_16, %53 : i32
    %c0_i32_17 = arith.constant 0 : i32
    %55 = tpu.memref_slice %arg3[%54, %c0_i32_17] : memref<64x128xf32, #tpu.memory_space<any>> -> memref<1x128xf32, #tpu.memory_space<any>>
    %56 = tpu.memref_squeeze %55 : memref<1x128xf32, #tpu.memory_space<any>> -> memref<128xf32, #tpu.memory_space<any>>
    %c0_i32_18 = arith.constant 0 : i32
    %57 = tpu.memref_slice %arg12[%c4_i32, %c0_i32_18] : memref<16x128xf32, #tpu.memory_space<vmem>> -> memref<1x128xf32, #tpu.memory_space<vmem>>
    %58 = tpu.memref_squeeze %57 : memref<1x128xf32, #tpu.memory_space<vmem>> -> memref<128xf32, #tpu.memory_space<vmem>>
    %59 = tpu.memref_slice %arg13[%c4_i32] : memref<16x!tpu.dma_semaphore, #tpu.memory_space<semaphore_mem>> -> memref<1x!tpu.dma_semaphore, #tpu.memory_space<semaphore_mem>>
    %60 = tpu.memref_squeeze %59 : memref<1x!tpu.dma_semaphore, #tpu.memory_space<semaphore_mem>> -> memref<!tpu.dma_semaphore, #tpu.memory_space<semaphore_mem>>
    tpu.enqueue_dma source(%56 : memref<128xf32, #tpu.memory_space<any>>) target(%58 : memref<128xf32, #tpu.memory_space<vmem>>) target_semaphore(%60 : memref<!tpu.dma_semaphore, #tpu.memory_space<semaphore_mem>>)
    %c5_i32 = arith.constant 5 : i32
    %61 = arith.addi %0, %c5_i32 : i32
    %62 = arith.index_cast %arg0 : i32 to index
    %63 = arith.index_cast %61 : i32 to index
    %64 = memref.load %arg2[%62, %63] : memref<2x16xi32, #tpu.memory_space<smem>>
    %c0_i32_19 = arith.constant 0 : i32
    %c63_i32_20 = arith.constant 63 : i32
    %65 = arith.maxsi %c0_i32_19, %64 : i32
    %66 = arith.minsi %c63_i32_20, %65 : i32
    %c0_i32_21 = arith.constant 0 : i32
    %67 = tpu.memref_slice %arg3[%66, %c0_i32_21] : memref<64x128xf32, #tpu.memory_space<any>> -> memref<1x128xf32, #tpu.memory_space<any>>
    %68 = tpu.memref_squeeze %67 : memref<1x128xf32, #tpu.memory_space<any>> -> memref<128xf32, #tpu.memory_space<any>>
    %c0_i32_22 = arith.constant 0 : i32
    %69 = tpu.memref_slice %arg12[%c5_i32, %c0_i32_22] : memref<16x128xf32, #tpu.memory_space<vmem>> -> memref<1x128xf32, #tpu.memory_space<vmem>>
    %70 = tpu.memref_squeeze %69 : memref<1x128xf32, #tpu.memory_space<vmem>> -> memref<128xf32, #tpu.memory_space<vmem>>
    %71 = tpu.memref_slice %arg13[%c5_i32] : memref<16x!tpu.dma_semaphore, #tpu.memory_space<semaphore_mem>> -> memref<1x!tpu.dma_semaphore, #tpu.memory_space<semaphore_mem>>
    %72 = tpu.memref_squeeze %71 : memref<1x!tpu.dma_semaphore, #tpu.memory_space<semaphore_mem>> -> memref<!tpu.dma_semaphore, #tpu.memory_space<semaphore_mem>>
    tpu.enqueue_dma source(%68 : memref<128xf32, #tpu.memory_space<any>>) target(%70 : memref<128xf32, #tpu.memory_space<vmem>>) target_semaphore(%72 : memref<!tpu.dma_semaphore, #tpu.memory_space<semaphore_mem>>)
    %c6_i32 = arith.constant 6 : i32
    %73 = arith.addi %0, %c6_i32 : i32
    %74 = arith.index_cast %arg0 : i32 to index
    %75 = arith.index_cast %73 : i32 to index
    %76 = memref.load %arg2[%74, %75] : memref<2x16xi32, #tpu.memory_space<smem>>
    %c0_i32_23 = arith.constant 0 : i32
    %c63_i32_24 = arith.constant 63 : i32
    %77 = arith.maxsi %c0_i32_23, %76 : i32
    %78 = arith.minsi %c63_i32_24, %77 : i32
    %c0_i32_25 = arith.constant 0 : i32
    %79 = tpu.memref_slice %arg3[%78, %c0_i32_25] : memref<64x128xf32, #tpu.memory_space<any>> -> memref<1x128xf32, #tpu.memory_space<any>>
    %80 = tpu.memref_squeeze %79 : memref<1x128xf32, #tpu.memory_space<any>> -> memref<128xf32, #tpu.memory_space<any>>
    %c0_i32_26 = arith.constant 0 : i32
    %81 = tpu.memref_slice %arg12[%c6_i32, %c0_i32_26] : memref<16x128xf32, #tpu.memory_space<vmem>> -> memref<1x128xf32, #tpu.memory_space<vmem>>
    %82 = tpu.memref_squeeze %81 : memref<1x128xf32, #tpu.memory_space<vmem>> -> memref<128xf32, #tpu.memory_space<vmem>>
    %83 = tpu.memref_slice %arg13[%c6_i32] : memref<16x!tpu.dma_semaphore, #tpu.memory_space<semaphore_mem>> -> memref<1x!tpu.dma_semaphore, #tpu.memory_space<semaphore_mem>>
    %84 = tpu.memref_squeeze %83 : memref<1x!tpu.dma_semaphore, #tpu.memory_space<semaphore_mem>> -> memref<!tpu.dma_semaphore, #tpu.memory_space<semaphore_mem>>
    tpu.enqueue_dma source(%80 : memref<128xf32, #tpu.memory_space<any>>) target(%82 : memref<128xf32, #tpu.memory_space<vmem>>) target_semaphore(%84 : memref<!tpu.dma_semaphore, #tpu.memory_space<semaphore_mem>>)
    %c7_i32 = arith.constant 7 : i32
    %85 = arith.addi %0, %c7_i32 : i32
    %86 = arith.index_cast %arg0 : i32 to index
    %87 = arith.index_cast %85 : i32 to index
    %88 = memref.load %arg2[%86, %87] : memref<2x16xi32, #tpu.memory_space<smem>>
    %c0_i32_27 = arith.constant 0 : i32
    %c63_i32_28 = arith.constant 63 : i32
    %89 = arith.maxsi %c0_i32_27, %88 : i32
    %90 = arith.minsi %c63_i32_28, %89 : i32
    %c0_i32_29 = arith.constant 0 : i32
    %91 = tpu.memref_slice %arg3[%90, %c0_i32_29] : memref<64x128xf32, #tpu.memory_space<any>> -> memref<1x128xf32, #tpu.memory_space<any>>
    %92 = tpu.memref_squeeze %91 : memref<1x128xf32, #tpu.memory_space<any>> -> memref<128xf32, #tpu.memory_space<any>>
    %c0_i32_30 = arith.constant 0 : i32
    %93 = tpu.memref_slice %arg12[%c7_i32, %c0_i32_30] : memref<16x128xf32, #tpu.memory_space<vmem>> -> memref<1x128xf32, #tpu.memory_space<vmem>>
    %94 = tpu.memref_squeeze %93 : memref<1x128xf32, #tpu.memory_space<vmem>> -> memref<128xf32, #tpu.memory_space<vmem>>
    %95 = tpu.memref_slice %arg13[%c7_i32] : memref<16x!tpu.dma_semaphore, #tpu.memory_space<semaphore_mem>> -> memref<1x!tpu.dma_semaphore, #tpu.memory_space<semaphore_mem>>
    %96 = tpu.memref_squeeze %95 : memref<1x!tpu.dma_semaphore, #tpu.memory_space<semaphore_mem>> -> memref<!tpu.dma_semaphore, #tpu.memory_space<semaphore_mem>>
    tpu.enqueue_dma source(%92 : memref<128xf32, #tpu.memory_space<any>>) target(%94 : memref<128xf32, #tpu.memory_space<vmem>>) target_semaphore(%96 : memref<!tpu.dma_semaphore, #tpu.memory_space<semaphore_mem>>)
    %c8_i32 = arith.constant 8 : i32
    %97 = arith.addi %0, %c8_i32 : i32
    %98 = arith.index_cast %arg0 : i32 to index
    %99 = arith.index_cast %97 : i32 to index
    %100 = memref.load %arg2[%98, %99] : memref<2x16xi32, #tpu.memory_space<smem>>
    %c0_i32_31 = arith.constant 0 : i32
    %c63_i32_32 = arith.constant 63 : i32
    %101 = arith.maxsi %c0_i32_31, %100 : i32
    %102 = arith.minsi %c63_i32_32, %101 : i32
    %c0_i32_33 = arith.constant 0 : i32
    %103 = tpu.memref_slice %arg3[%102, %c0_i32_33] : memref<64x128xf32, #tpu.memory_space<any>> -> memref<1x128xf32, #tpu.memory_space<any>>
    %104 = tpu.memref_squeeze %103 : memref<1x128xf32, #tpu.memory_space<any>> -> memref<128xf32, #tpu.memory_space<any>>
    %c0_i32_34 = arith.constant 0 : i32
    %105 = tpu.memref_slice %arg12[%c8_i32, %c0_i32_34] : memref<16x128xf32, #tpu.memory_space<vmem>> -> memref<1x128xf32, #tpu.memory_space<vmem>>
    %106 = tpu.memref_squeeze %105 : memref<1x128xf32, #tpu.memory_space<vmem>> -> memref<128xf32, #tpu.memory_space<vmem>>
    %107 = tpu.memref_slice %arg13[%c8_i32] : memref<16x!tpu.dma_semaphore, #tpu.memory_space<semaphore_mem>> -> memref<1x!tpu.dma_semaphore, #tpu.memory_space<semaphore_mem>>
    %108 = tpu.memref_squeeze %107 : memref<1x!tpu.dma_semaphore, #tpu.memory_space<semaphore_mem>> -> memref<!tpu.dma_semaphore, #tpu.memory_space<semaphore_mem>>
    tpu.enqueue_dma source(%104 : memref<128xf32, #tpu.memory_space<any>>) target(%106 : memref<128xf32, #tpu.memory_space<vmem>>) target_semaphore(%108 : memref<!tpu.dma_semaphore, #tpu.memory_space<semaphore_mem>>)
    %c9_i32 = arith.constant 9 : i32
    %109 = arith.addi %0, %c9_i32 : i32
    %110 = arith.index_cast %arg0 : i32 to index
    %111 = arith.index_cast %109 : i32 to index
    %112 = memref.load %arg2[%110, %111] : memref<2x16xi32, #tpu.memory_space<smem>>
    %c0_i32_35 = arith.constant 0 : i32
    %c63_i32_36 = arith.constant 63 : i32
    %113 = arith.maxsi %c0_i32_35, %112 : i32
    %114 = arith.minsi %c63_i32_36, %113 : i32
    %c0_i32_37 = arith.constant 0 : i32
    %115 = tpu.memref_slice %arg3[%114, %c0_i32_37] : memref<64x128xf32, #tpu.memory_space<any>> -> memref<1x128xf32, #tpu.memory_space<any>>
    %116 = tpu.memref_squeeze %115 : memref<1x128xf32, #tpu.memory_space<any>> -> memref<128xf32, #tpu.memory_space<any>>
    %c0_i32_38 = arith.constant 0 : i32
    %117 = tpu.memref_slice %arg12[%c9_i32, %c0_i32_38] : memref<16x128xf32, #tpu.memory_space<vmem>> -> memref<1x128xf32, #tpu.memory_space<vmem>>
    %118 = tpu.memref_squeeze %117 : memref<1x128xf32, #tpu.memory_space<vmem>> -> memref<128xf32, #tpu.memory_space<vmem>>
    %119 = tpu.memref_slice %arg13[%c9_i32] : memref<16x!tpu.dma_semaphore, #tpu.memory_space<semaphore_mem>> -> memref<1x!tpu.dma_semaphore, #tpu.memory_space<semaphore_mem>>
    %120 = tpu.memref_squeeze %119 : memref<1x!tpu.dma_semaphore, #tpu.memory_space<semaphore_mem>> -> memref<!tpu.dma_semaphore, #tpu.memory_space<semaphore_mem>>
    tpu.enqueue_dma source(%116 : memref<128xf32, #tpu.memory_space<any>>) target(%118 : memref<128xf32, #tpu.memory_space<vmem>>) target_semaphore(%120 : memref<!tpu.dma_semaphore, #tpu.memory_space<semaphore_mem>>)
    %c10_i32 = arith.constant 10 : i32
    %121 = arith.addi %0, %c10_i32 : i32
    %122 = arith.index_cast %arg0 : i32 to index
    %123 = arith.index_cast %121 : i32 to index
    %124 = memref.load %arg2[%122, %123] : memref<2x16xi32, #tpu.memory_space<smem>>
    %c0_i32_39 = arith.constant 0 : i32
    %c63_i32_40 = arith.constant 63 : i32
    %125 = arith.maxsi %c0_i32_39, %124 : i32
    %126 = arith.minsi %c63_i32_40, %125 : i32
    %c0_i32_41 = arith.constant 0 : i32
    %127 = tpu.memref_slice %arg3[%126, %c0_i32_41] : memref<64x128xf32, #tpu.memory_space<any>> -> memref<1x128xf32, #tpu.memory_space<any>>
    %128 = tpu.memref_squeeze %127 : memref<1x128xf32, #tpu.memory_space<any>> -> memref<128xf32, #tpu.memory_space<any>>
    %c0_i32_42 = arith.constant 0 : i32
    %129 = tpu.memref_slice %arg12[%c10_i32, %c0_i32_42] : memref<16x128xf32, #tpu.memory_space<vmem>> -> memref<1x128xf32, #tpu.memory_space<vmem>>
    %130 = tpu.memref_squeeze %129 : memref<1x128xf32, #tpu.memory_space<vmem>> -> memref<128xf32, #tpu.memory_space<vmem>>
    %131 = tpu.memref_slice %arg13[%c10_i32] : memref<16x!tpu.dma_semaphore, #tpu.memory_space<semaphore_mem>> -> memref<1x!tpu.dma_semaphore, #tpu.memory_space<semaphore_mem>>
    %132 = tpu.memref_squeeze %131 : memref<1x!tpu.dma_semaphore, #tpu.memory_space<semaphore_mem>> -> memref<!tpu.dma_semaphore, #tpu.memory_space<semaphore_mem>>
    tpu.enqueue_dma source(%128 : memref<128xf32, #tpu.memory_space<any>>) target(%130 : memref<128xf32, #tpu.memory_space<vmem>>) target_semaphore(%132 : memref<!tpu.dma_semaphore, #tpu.memory_space<semaphore_mem>>)
    %c11_i32 = arith.constant 11 : i32
    %133 = arith.addi %0, %c11_i32 : i32
    %134 = arith.index_cast %arg0 : i32 to index
    %135 = arith.index_cast %133 : i32 to index
    %136 = memref.load %arg2[%134, %135] : memref<2x16xi32, #tpu.memory_space<smem>>
    %c0_i32_43 = arith.constant 0 : i32
    %c63_i32_44 = arith.constant 63 : i32
    %137 = arith.maxsi %c0_i32_43, %136 : i32
    %138 = arith.minsi %c63_i32_44, %137 : i32
    %c0_i32_45 = arith.constant 0 : i32
    %139 = tpu.memref_slice %arg3[%138, %c0_i32_45] : memref<64x128xf32, #tpu.memory_space<any>> -> memref<1x128xf32, #tpu.memory_space<any>>
    %140 = tpu.memref_squeeze %139 : memref<1x128xf32, #tpu.memory_space<any>> -> memref<128xf32, #tpu.memory_space<any>>
    %c0_i32_46 = arith.constant 0 : i32
    %141 = tpu.memref_slice %arg12[%c11_i32, %c0_i32_46] : memref<16x128xf32, #tpu.memory_space<vmem>> -> memref<1x128xf32, #tpu.memory_space<vmem>>
    %142 = tpu.memref_squeeze %141 : memref<1x128xf32, #tpu.memory_space<vmem>> -> memref<128xf32, #tpu.memory_space<vmem>>
    %143 = tpu.memref_slice %arg13[%c11_i32] : memref<16x!tpu.dma_semaphore, #tpu.memory_space<semaphore_mem>> -> memref<1x!tpu.dma_semaphore, #tpu.memory_space<semaphore_mem>>
    %144 = tpu.memref_squeeze %143 : memref<1x!tpu.dma_semaphore, #tpu.memory_space<semaphore_mem>> -> memref<!tpu.dma_semaphore, #tpu.memory_space<semaphore_mem>>
    tpu.enqueue_dma source(%140 : memref<128xf32, #tpu.memory_space<any>>) target(%142 : memref<128xf32, #tpu.memory_space<vmem>>) target_semaphore(%144 : memref<!tpu.dma_semaphore, #tpu.memory_space<semaphore_mem>>)
    %c12_i32 = arith.constant 12 : i32
    %145 = arith.addi %0, %c12_i32 : i32
    %146 = arith.index_cast %arg0 : i32 to index
    %147 = arith.index_cast %145 : i32 to index
    %148 = memref.load %arg2[%146, %147] : memref<2x16xi32, #tpu.memory_space<smem>>
    %c0_i32_47 = arith.constant 0 : i32
    %c63_i32_48 = arith.constant 63 : i32
    %149 = arith.maxsi %c0_i32_47, %148 : i32
    %150 = arith.minsi %c63_i32_48, %149 : i32
    %c0_i32_49 = arith.constant 0 : i32
    %151 = tpu.memref_slice %arg3[%150, %c0_i32_49] : memref<64x128xf32, #tpu.memory_space<any>> -> memref<1x128xf32, #tpu.memory_space<any>>
    %152 = tpu.memref_squeeze %151 : memref<1x128xf32, #tpu.memory_space<any>> -> memref<128xf32, #tpu.memory_space<any>>
    %c0_i32_50 = arith.constant 0 : i32
    %153 = tpu.memref_slice %arg12[%c12_i32, %c0_i32_50] : memref<16x128xf32, #tpu.memory_space<vmem>> -> memref<1x128xf32, #tpu.memory_space<vmem>>
    %154 = tpu.memref_squeeze %153 : memref<1x128xf32, #tpu.memory_space<vmem>> -> memref<128xf32, #tpu.memory_space<vmem>>
    %155 = tpu.memref_slice %arg13[%c12_i32] : memref<16x!tpu.dma_semaphore, #tpu.memory_space<semaphore_mem>> -> memref<1x!tpu.dma_semaphore, #tpu.memory_space<semaphore_mem>>
    %156 = tpu.memref_squeeze %155 : memref<1x!tpu.dma_semaphore, #tpu.memory_space<semaphore_mem>> -> memref<!tpu.dma_semaphore, #tpu.memory_space<semaphore_mem>>
    tpu.enqueue_dma source(%152 : memref<128xf32, #tpu.memory_space<any>>) target(%154 : memref<128xf32, #tpu.memory_space<vmem>>) target_semaphore(%156 : memref<!tpu.dma_semaphore, #tpu.memory_space<semaphore_mem>>)
    %c13_i32 = arith.constant 13 : i32
    %157 = arith.addi %0, %c13_i32 : i32
    %158 = arith.index_cast %arg0 : i32 to index
    %159 = arith.index_cast %157 : i32 to index
    %160 = memref.load %arg2[%158, %159] : memref<2x16xi32, #tpu.memory_space<smem>>
    %c0_i32_51 = arith.constant 0 : i32
    %c63_i32_52 = arith.constant 63 : i32
    %161 = arith.maxsi %c0_i32_51, %160 : i32
    %162 = arith.minsi %c63_i32_52, %161 : i32
    %c0_i32_53 = arith.constant 0 : i32
    %163 = tpu.memref_slice %arg3[%162, %c0_i32_53] : memref<64x128xf32, #tpu.memory_space<any>> -> memref<1x128xf32, #tpu.memory_space<any>>
    %164 = tpu.memref_squeeze %163 : memref<1x128xf32, #tpu.memory_space<any>> -> memref<128xf32, #tpu.memory_space<any>>
    %c0_i32_54 = arith.constant 0 : i32
    %165 = tpu.memref_slice %arg12[%c13_i32, %c0_i32_54] : memref<16x128xf32, #tpu.memory_space<vmem>> -> memref<1x128xf32, #tpu.memory_space<vmem>>
    %166 = tpu.memref_squeeze %165 : memref<1x128xf32, #tpu.memory_space<vmem>> -> memref<128xf32, #tpu.memory_space<vmem>>
    %167 = tpu.memref_slice %arg13[%c13_i32] : memref<16x!tpu.dma_semaphore, #tpu.memory_space<semaphore_mem>> -> memref<1x!tpu.dma_semaphore, #tpu.memory_space<semaphore_mem>>
    %168 = tpu.memref_squeeze %167 : memref<1x!tpu.dma_semaphore, #tpu.memory_space<semaphore_mem>> -> memref<!tpu.dma_semaphore, #tpu.memory_space<semaphore_mem>>
    tpu.enqueue_dma source(%164 : memref<128xf32, #tpu.memory_space<any>>) target(%166 : memref<128xf32, #tpu.memory_space<vmem>>) target_semaphore(%168 : memref<!tpu.dma_semaphore, #tpu.memory_space<semaphore_mem>>)
    %c14_i32 = arith.constant 14 : i32
    %169 = arith.addi %0, %c14_i32 : i32
    %170 = arith.index_cast %arg0 : i32 to index
    %171 = arith.index_cast %169 : i32 to index
    %172 = memref.load %arg2[%170, %171] : memref<2x16xi32, #tpu.memory_space<smem>>
    %c0_i32_55 = arith.constant 0 : i32
    %c63_i32_56 = arith.constant 63 : i32
    %173 = arith.maxsi %c0_i32_55, %172 : i32
    %174 = arith.minsi %c63_i32_56, %173 : i32
    %c0_i32_57 = arith.constant 0 : i32
    %175 = tpu.memref_slice %arg3[%174, %c0_i32_57] : memref<64x128xf32, #tpu.memory_space<any>> -> memref<1x128xf32, #tpu.memory_space<any>>
    %176 = tpu.memref_squeeze %175 : memref<1x128xf32, #tpu.memory_space<any>> -> memref<128xf32, #tpu.memory_space<any>>
    %c0_i32_58 = arith.constant 0 : i32
    %177 = tpu.memref_slice %arg12[%c14_i32, %c0_i32_58] : memref<16x128xf32, #tpu.memory_space<vmem>> -> memref<1x128xf32, #tpu.memory_space<vmem>>
    %178 = tpu.memref_squeeze %177 : memref<1x128xf32, #tpu.memory_space<vmem>> -> memref<128xf32, #tpu.memory_space<vmem>>
    %179 = tpu.memref_slice %arg13[%c14_i32] : memref<16x!tpu.dma_semaphore, #tpu.memory_space<semaphore_mem>> -> memref<1x!tpu.dma_semaphore, #tpu.memory_space<semaphore_mem>>
    %180 = tpu.memref_squeeze %179 : memref<1x!tpu.dma_semaphore, #tpu.memory_space<semaphore_mem>> -> memref<!tpu.dma_semaphore, #tpu.memory_space<semaphore_mem>>
    tpu.enqueue_dma source(%176 : memref<128xf32, #tpu.memory_space<any>>) target(%178 : memref<128xf32, #tpu.memory_space<vmem>>) target_semaphore(%180 : memref<!tpu.dma_semaphore, #tpu.memory_space<semaphore_mem>>)
    %c15_i32 = arith.constant 15 : i32
    %181 = arith.addi %0, %c15_i32 : i32
    %182 = arith.index_cast %arg0 : i32 to index
    %183 = arith.index_cast %181 : i32 to index
    %184 = memref.load %arg2[%182, %183] : memref<2x16xi32, #tpu.memory_space<smem>>
    %c0_i32_59 = arith.constant 0 : i32
    %c63_i32_60 = arith.constant 63 : i32
    %185 = arith.maxsi %c0_i32_59, %184 : i32
    %186 = arith.minsi %c63_i32_60, %185 : i32
    %c0_i32_61 = arith.constant 0 : i32
    %187 = tpu.memref_slice %arg3[%186, %c0_i32_61] : memref<64x128xf32, #tpu.memory_space<any>> -> memref<1x128xf32, #tpu.memory_space<any>>
    %188 = tpu.memref_squeeze %187 : memref<1x128xf32, #tpu.memory_space<any>> -> memref<128xf32, #tpu.memory_space<any>>
    %c0_i32_62 = arith.constant 0 : i32
    %189 = tpu.memref_slice %arg12[%c15_i32, %c0_i32_62] : memref<16x128xf32, #tpu.memory_space<vmem>> -> memref<1x128xf32, #tpu.memory_space<vmem>>
    %190 = tpu.memref_squeeze %189 : memref<1x128xf32, #tpu.memory_space<vmem>> -> memref<128xf32, #tpu.memory_space<vmem>>
    %191 = tpu.memref_slice %arg13[%c15_i32] : memref<16x!tpu.dma_semaphore, #tpu.memory_space<semaphore_mem>> -> memref<1x!tpu.dma_semaphore, #tpu.memory_space<semaphore_mem>>
    %192 = tpu.memref_squeeze %191 : memref<1x!tpu.dma_semaphore, #tpu.memory_space<semaphore_mem>> -> memref<!tpu.dma_semaphore, #tpu.memory_space<semaphore_mem>>
    tpu.enqueue_dma source(%188 : memref<128xf32, #tpu.memory_space<any>>) target(%190 : memref<128xf32, #tpu.memory_space<vmem>>) target_semaphore(%192 : memref<!tpu.dma_semaphore, #tpu.memory_space<semaphore_mem>>)
    %c16_i32_63 = arith.constant 16 : i32
    %c0 = arith.constant 0 : index
    %c0_64 = arith.constant 0 : index
    %c0_65 = arith.constant 0 : index
    %c0_66 = arith.constant 0 : index
    %193 = vector.load %arg6[%c0, %c0_64, %c0_65, %c0_66] : memref<1x1x16x1xi32, #tpu.memory_space<vmem>>, vector<1x1x16x1xi32>
    %194 = vector.shape_cast %193 : vector<1x1x16x1xi32> to vector<16x1xi32>
    %c0_67 = arith.constant 0 : index
    %c0_68 = arith.constant 0 : index
    %195 = vector.load %arg4[%c0_67, %c0_68] : memref<2x128xf32, #tpu.memory_space<vmem>>, vector<1x128xf32>
    %196 = vector.shape_cast %195 : vector<1x128xf32> to vector<1x128xf32>
    %197 = vector.broadcast %196 : vector<1x128xf32> to vector<16x128xf32>
    %c1_i32_69 = arith.constant 1 : i32
    %198 = vector.broadcast %c1_i32_69 : i32 to vector<16x1xi32>
    %199 = arith.cmpi eq, %194, %198 : vector<16x1xi32>
    %c1 = arith.constant 1 : index
    %c0_70 = arith.constant 0 : index
    %200 = vector.load %arg4[%c1, %c0_70] : memref<2x128xf32, #tpu.memory_space<vmem>>, vector<1x128xf32>
    %201 = vector.shape_cast %199 : vector<16x1xi1> to vector<16x1xi1>
    %202 = vector.broadcast %201 : vector<16x1xi1> to vector<16x128xi1>
    %203 = vector.shape_cast %200 : vector<1x128xf32> to vector<1x128xf32>
    %204 = vector.broadcast %203 : vector<1x128xf32> to vector<16x128xf32>
    %205 = arith.select %202, %204, %197 : vector<16x128xi1>, vector<16x128xf32>
    %c0_71 = arith.constant 0 : index
    %c0_72 = arith.constant 0 : index
    %c0_73 = arith.constant 0 : index
    %c0_74 = arith.constant 0 : index
    %206 = vector.load %arg7[%c0_71, %c0_72, %c0_73, %c0_74] : memref<1x1x16x1xi32, #tpu.memory_space<vmem>>, vector<1x1x16x1xi32>
    %207 = vector.shape_cast %206 : vector<1x1x16x1xi32> to vector<16x1xi32>
    %c0_75 = arith.constant 0 : index
    %c0_76 = arith.constant 0 : index
    %208 = vector.load %arg5[%c0_75, %c0_76] : memref<2x128xf32, #tpu.memory_space<vmem>>, vector<1x128xf32>
    %209 = vector.shape_cast %208 : vector<1x128xf32> to vector<1x128xf32>
    %210 = vector.broadcast %209 : vector<1x128xf32> to vector<16x128xf32>
    %c1_i32_77 = arith.constant 1 : i32
    %211 = vector.broadcast %c1_i32_77 : i32 to vector<16x1xi32>
    %212 = arith.cmpi eq, %207, %211 : vector<16x1xi32>
    %c1_78 = arith.constant 1 : index
    %c0_79 = arith.constant 0 : index
    %213 = vector.load %arg5[%c1_78, %c0_79] : memref<2x128xf32, #tpu.memory_space<vmem>>, vector<1x128xf32>
    %214 = vector.shape_cast %212 : vector<16x1xi1> to vector<16x1xi1>
    %215 = vector.broadcast %214 : vector<16x1xi1> to vector<16x128xi1>
    %216 = vector.shape_cast %213 : vector<1x128xf32> to vector<1x128xf32>
    %217 = vector.broadcast %216 : vector<1x128xf32> to vector<16x128xf32>
    %218 = arith.select %215, %217, %210 : vector<16x128xi1>, vector<16x128xf32>
    %c0_80 = arith.constant 0 : index
    %c0_81 = arith.constant 0 : index
    %219 = vector.load %arg8[%c0_80, %c0_81] : memref<16x128xf32, #tpu.memory_space<vmem>>, vector<16x128xf32>
    %220 = arith.addf %219, %205 : vector<16x128xf32>
    %221 = arith.addf %220, %218 : vector<16x128xf32>
    %c0_i32_82 = arith.constant 0 : i32
    %222 = arith.addi %0, %c0_i32_82 : i32
    %223 = arith.index_cast %arg0 : i32 to index
    %224 = arith.index_cast %222 : i32 to index
    %225 = memref.load %arg2[%223, %224] : memref<2x16xi32, #tpu.memory_space<smem>>
    %c0_i32_83 = arith.constant 0 : i32
    %c63_i32_84 = arith.constant 63 : i32
    %226 = arith.maxsi %c0_i32_83, %225 : i32
    %227 = arith.minsi %c63_i32_84, %226 : i32
    %c0_i32_85 = arith.constant 0 : i32
    %228 = tpu.memref_slice %arg3[%227, %c0_i32_85] : memref<64x128xf32, #tpu.memory_space<any>> -> memref<1x128xf32, #tpu.memory_space<any>>
    %229 = tpu.memref_squeeze %228 : memref<1x128xf32, #tpu.memory_space<any>> -> memref<128xf32, #tpu.memory_space<any>>
    %c0_i32_86 = arith.constant 0 : i32
    %230 = tpu.memref_slice %arg12[%c0_i32_82, %c0_i32_86] : memref<16x128xf32, #tpu.memory_space<vmem>> -> memref<1x128xf32, #tpu.memory_space<vmem>>
    %231 = tpu.memref_squeeze %230 : memref<1x128xf32, #tpu.memory_space<vmem>> -> memref<128xf32, #tpu.memory_space<vmem>>
    %232 = tpu.memref_slice %arg13[%c0_i32_82] : memref<16x!tpu.dma_semaphore, #tpu.memory_space<semaphore_mem>> -> memref<1x!tpu.dma_semaphore, #tpu.memory_space<semaphore_mem>>
    %233 = tpu.memref_squeeze %232 : memref<1x!tpu.dma_semaphore, #tpu.memory_space<semaphore_mem>> -> memref<!tpu.dma_semaphore, #tpu.memory_space<semaphore_mem>>
    tpu.wait_dma2 semaphore(%233 : memref<!tpu.dma_semaphore, #tpu.memory_space<semaphore_mem>>) src(%229 : memref<128xf32, #tpu.memory_space<any>>) dst(%231 : memref<128xf32, #tpu.memory_space<vmem>>)
    %c1_i32_87 = arith.constant 1 : i32
    %234 = arith.addi %0, %c1_i32_87 : i32
    %235 = arith.index_cast %arg0 : i32 to index
    %236 = arith.index_cast %234 : i32 to index
    %237 = memref.load %arg2[%235, %236] : memref<2x16xi32, #tpu.memory_space<smem>>
    %c0_i32_88 = arith.constant 0 : i32
    %c63_i32_89 = arith.constant 63 : i32
    %238 = arith.maxsi %c0_i32_88, %237 : i32
    %239 = arith.minsi %c63_i32_89, %238 : i32
    %c0_i32_90 = arith.constant 0 : i32
    %240 = tpu.memref_slice %arg3[%239, %c0_i32_90] : memref<64x128xf32, #tpu.memory_space<any>> -> memref<1x128xf32, #tpu.memory_space<any>>
    %241 = tpu.memref_squeeze %240 : memref<1x128xf32, #tpu.memory_space<any>> -> memref<128xf32, #tpu.memory_space<any>>
    %c0_i32_91 = arith.constant 0 : i32
    %242 = tpu.memref_slice %arg12[%c1_i32_87, %c0_i32_91] : memref<16x128xf32, #tpu.memory_space<vmem>> -> memref<1x128xf32, #tpu.memory_space<vmem>>
    %243 = tpu.memref_squeeze %242 : memref<1x128xf32, #tpu.memory_space<vmem>> -> memref<128xf32, #tpu.memory_space<vmem>>
    %244 = tpu.memref_slice %arg13[%c1_i32_87] : memref<16x!tpu.dma_semaphore, #tpu.memory_space<semaphore_mem>> -> memref<1x!tpu.dma_semaphore, #tpu.memory_space<semaphore_mem>>
    %245 = tpu.memref_squeeze %244 : memref<1x!tpu.dma_semaphore, #tpu.memory_space<semaphore_mem>> -> memref<!tpu.dma_semaphore, #tpu.memory_space<semaphore_mem>>
    tpu.wait_dma2 semaphore(%245 : memref<!tpu.dma_semaphore, #tpu.memory_space<semaphore_mem>>) src(%241 : memref<128xf32, #tpu.memory_space<any>>) dst(%243 : memref<128xf32, #tpu.memory_space<vmem>>)
    %c2_i32_92 = arith.constant 2 : i32
    %246 = arith.addi %0, %c2_i32_92 : i32
    %247 = arith.index_cast %arg0 : i32 to index
    %248 = arith.index_cast %246 : i32 to index
    %249 = memref.load %arg2[%247, %248] : memref<2x16xi32, #tpu.memory_space<smem>>
    %c0_i32_93 = arith.constant 0 : i32
    %c63_i32_94 = arith.constant 63 : i32
    %250 = arith.maxsi %c0_i32_93, %249 : i32
    %251 = arith.minsi %c63_i32_94, %250 : i32
    %c0_i32_95 = arith.constant 0 : i32
    %252 = tpu.memref_slice %arg3[%251, %c0_i32_95] : memref<64x128xf32, #tpu.memory_space<any>> -> memref<1x128xf32, #tpu.memory_space<any>>
    %253 = tpu.memref_squeeze %252 : memref<1x128xf32, #tpu.memory_space<any>> -> memref<128xf32, #tpu.memory_space<any>>
    %c0_i32_96 = arith.constant 0 : i32
    %254 = tpu.memref_slice %arg12[%c2_i32_92, %c0_i32_96] : memref<16x128xf32, #tpu.memory_space<vmem>> -> memref<1x128xf32, #tpu.memory_space<vmem>>
    %255 = tpu.memref_squeeze %254 : memref<1x128xf32, #tpu.memory_space<vmem>> -> memref<128xf32, #tpu.memory_space<vmem>>
    %256 = tpu.memref_slice %arg13[%c2_i32_92] : memref<16x!tpu.dma_semaphore, #tpu.memory_space<semaphore_mem>> -> memref<1x!tpu.dma_semaphore, #tpu.memory_space<semaphore_mem>>
    %257 = tpu.memref_squeeze %256 : memref<1x!tpu.dma_semaphore, #tpu.memory_space<semaphore_mem>> -> memref<!tpu.dma_semaphore, #tpu.memory_space<semaphore_mem>>
    tpu.wait_dma2 semaphore(%257 : memref<!tpu.dma_semaphore, #tpu.memory_space<semaphore_mem>>) src(%253 : memref<128xf32, #tpu.memory_space<any>>) dst(%255 : memref<128xf32, #tpu.memory_space<vmem>>)
    %c3_i32_97 = arith.constant 3 : i32
    %258 = arith.addi %0, %c3_i32_97 : i32
    %259 = arith.index_cast %arg0 : i32 to index
    %260 = arith.index_cast %258 : i32 to index
    %261 = memref.load %arg2[%259, %260] : memref<2x16xi32, #tpu.memory_space<smem>>
    %c0_i32_98 = arith.constant 0 : i32
    %c63_i32_99 = arith.constant 63 : i32
    %262 = arith.maxsi %c0_i32_98, %261 : i32
    %263 = arith.minsi %c63_i32_99, %262 : i32
    %c0_i32_100 = arith.constant 0 : i32
    %264 = tpu.memref_slice %arg3[%263, %c0_i32_100] : memref<64x128xf32, #tpu.memory_space<any>> -> memref<1x128xf32, #tpu.memory_space<any>>
    %265 = tpu.memref_squeeze %264 : memref<1x128xf32, #tpu.memory_space<any>> -> memref<128xf32, #tpu.memory_space<any>>
    %c0_i32_101 = arith.constant 0 : i32
    %266 = tpu.memref_slice %arg12[%c3_i32_97, %c0_i32_101] : memref<16x128xf32, #tpu.memory_space<vmem>> -> memref<1x128xf32, #tpu.memory_space<vmem>>
    %267 = tpu.memref_squeeze %266 : memref<1x128xf32, #tpu.memory_space<vmem>> -> memref<128xf32, #tpu.memory_space<vmem>>
    %268 = tpu.memref_slice %arg13[%c3_i32_97] : memref<16x!tpu.dma_semaphore, #tpu.memory_space<semaphore_mem>> -> memref<1x!tpu.dma_semaphore, #tpu.memory_space<semaphore_mem>>
    %269 = tpu.memref_squeeze %268 : memref<1x!tpu.dma_semaphore, #tpu.memory_space<semaphore_mem>> -> memref<!tpu.dma_semaphore, #tpu.memory_space<semaphore_mem>>
    tpu.wait_dma2 semaphore(%269 : memref<!tpu.dma_semaphore, #tpu.memory_space<semaphore_mem>>) src(%265 : memref<128xf32, #tpu.memory_space<any>>) dst(%267 : memref<128xf32, #tpu.memory_space<vmem>>)
    %c4_i32_102 = arith.constant 4 : i32
    %270 = arith.addi %0, %c4_i32_102 : i32
    %271 = arith.index_cast %arg0 : i32 to index
    %272 = arith.index_cast %270 : i32 to index
    %273 = memref.load %arg2[%271, %272] : memref<2x16xi32, #tpu.memory_space<smem>>
    %c0_i32_103 = arith.constant 0 : i32
    %c63_i32_104 = arith.constant 63 : i32
    %274 = arith.maxsi %c0_i32_103, %273 : i32
    %275 = arith.minsi %c63_i32_104, %274 : i32
    %c0_i32_105 = arith.constant 0 : i32
    %276 = tpu.memref_slice %arg3[%275, %c0_i32_105] : memref<64x128xf32, #tpu.memory_space<any>> -> memref<1x128xf32, #tpu.memory_space<any>>
    %277 = tpu.memref_squeeze %276 : memref<1x128xf32, #tpu.memory_space<any>> -> memref<128xf32, #tpu.memory_space<any>>
    %c0_i32_106 = arith.constant 0 : i32
    %278 = tpu.memref_slice %arg12[%c4_i32_102, %c0_i32_106] : memref<16x128xf32, #tpu.memory_space<vmem>> -> memref<1x128xf32, #tpu.memory_space<vmem>>
    %279 = tpu.memref_squeeze %278 : memref<1x128xf32, #tpu.memory_space<vmem>> -> memref<128xf32, #tpu.memory_space<vmem>>
    %280 = tpu.memref_slice %arg13[%c4_i32_102] : memref<16x!tpu.dma_semaphore, #tpu.memory_space<semaphore_mem>> -> memref<1x!tpu.dma_semaphore, #tpu.memory_space<semaphore_mem>>
    %281 = tpu.memref_squeeze %280 : memref<1x!tpu.dma_semaphore, #tpu.memory_space<semaphore_mem>> -> memref<!tpu.dma_semaphore, #tpu.memory_space<semaphore_mem>>
    tpu.wait_dma2 semaphore(%281 : memref<!tpu.dma_semaphore, #tpu.memory_space<semaphore_mem>>) src(%277 : memref<128xf32, #tpu.memory_space<any>>) dst(%279 : memref<128xf32, #tpu.memory_space<vmem>>)
    %c5_i32_107 = arith.constant 5 : i32
    %282 = arith.addi %0, %c5_i32_107 : i32
    %283 = arith.index_cast %arg0 : i32 to index
    %284 = arith.index_cast %282 : i32 to index
    %285 = memref.load %arg2[%283, %284] : memref<2x16xi32, #tpu.memory_space<smem>>
    %c0_i32_108 = arith.constant 0 : i32
    %c63_i32_109 = arith.constant 63 : i32
    %286 = arith.maxsi %c0_i32_108, %285 : i32
    %287 = arith.minsi %c63_i32_109, %286 : i32
    %c0_i32_110 = arith.constant 0 : i32
    %288 = tpu.memref_slice %arg3[%287, %c0_i32_110] : memref<64x128xf32, #tpu.memory_space<any>> -> memref<1x128xf32, #tpu.memory_space<any>>
    %289 = tpu.memref_squeeze %288 : memref<1x128xf32, #tpu.memory_space<any>> -> memref<128xf32, #tpu.memory_space<any>>
    %c0_i32_111 = arith.constant 0 : i32
    %290 = tpu.memref_slice %arg12[%c5_i32_107, %c0_i32_111] : memref<16x128xf32, #tpu.memory_space<vmem>> -> memref<1x128xf32, #tpu.memory_space<vmem>>
    %291 = tpu.memref_squeeze %290 : memref<1x128xf32, #tpu.memory_space<vmem>> -> memref<128xf32, #tpu.memory_space<vmem>>
    %292 = tpu.memref_slice %arg13[%c5_i32_107] : memref<16x!tpu.dma_semaphore, #tpu.memory_space<semaphore_mem>> -> memref<1x!tpu.dma_semaphore, #tpu.memory_space<semaphore_mem>>
    %293 = tpu.memref_squeeze %292 : memref<1x!tpu.dma_semaphore, #tpu.memory_space<semaphore_mem>> -> memref<!tpu.dma_semaphore, #tpu.memory_space<semaphore_mem>>
    tpu.wait_dma2 semaphore(%293 : memref<!tpu.dma_semaphore, #tpu.memory_space<semaphore_mem>>) src(%289 : memref<128xf32, #tpu.memory_space<any>>) dst(%291 : memref<128xf32, #tpu.memory_space<vmem>>)
    %c6_i32_112 = arith.constant 6 : i32
    %294 = arith.addi %0, %c6_i32_112 : i32
    %295 = arith.index_cast %arg0 : i32 to index
    %296 = arith.index_cast %294 : i32 to index
    %297 = memref.load %arg2[%295, %296] : memref<2x16xi32, #tpu.memory_space<smem>>
    %c0_i32_113 = arith.constant 0 : i32
    %c63_i32_114 = arith.constant 63 : i32
    %298 = arith.maxsi %c0_i32_113, %297 : i32
    %299 = arith.minsi %c63_i32_114, %298 : i32
    %c0_i32_115 = arith.constant 0 : i32
    %300 = tpu.memref_slice %arg3[%299, %c0_i32_115] : memref<64x128xf32, #tpu.memory_space<any>> -> memref<1x128xf32, #tpu.memory_space<any>>
    %301 = tpu.memref_squeeze %300 : memref<1x128xf32, #tpu.memory_space<any>> -> memref<128xf32, #tpu.memory_space<any>>
    %c0_i32_116 = arith.constant 0 : i32
    %302 = tpu.memref_slice %arg12[%c6_i32_112, %c0_i32_116] : memref<16x128xf32, #tpu.memory_space<vmem>> -> memref<1x128xf32, #tpu.memory_space<vmem>>
    %303 = tpu.memref_squeeze %302 : memref<1x128xf32, #tpu.memory_space<vmem>> -> memref<128xf32, #tpu.memory_space<vmem>>
    %304 = tpu.memref_slice %arg13[%c6_i32_112] : memref<16x!tpu.dma_semaphore, #tpu.memory_space<semaphore_mem>> -> memref<1x!tpu.dma_semaphore, #tpu.memory_space<semaphore_mem>>
    %305 = tpu.memref_squeeze %304 : memref<1x!tpu.dma_semaphore, #tpu.memory_space<semaphore_mem>> -> memref<!tpu.dma_semaphore, #tpu.memory_space<semaphore_mem>>
    tpu.wait_dma2 semaphore(%305 : memref<!tpu.dma_semaphore, #tpu.memory_space<semaphore_mem>>) src(%301 : memref<128xf32, #tpu.memory_space<any>>) dst(%303 : memref<128xf32, #tpu.memory_space<vmem>>)
    %c7_i32_117 = arith.constant 7 : i32
    %306 = arith.addi %0, %c7_i32_117 : i32
    %307 = arith.index_cast %arg0 : i32 to index
    %308 = arith.index_cast %306 : i32 to index
    %309 = memref.load %arg2[%307, %308] : memref<2x16xi32, #tpu.memory_space<smem>>
    %c0_i32_118 = arith.constant 0 : i32
    %c63_i32_119 = arith.constant 63 : i32
    %310 = arith.maxsi %c0_i32_118, %309 : i32
    %311 = arith.minsi %c63_i32_119, %310 : i32
    %c0_i32_120 = arith.constant 0 : i32
    %312 = tpu.memref_slice %arg3[%311, %c0_i32_120] : memref<64x128xf32, #tpu.memory_space<any>> -> memref<1x128xf32, #tpu.memory_space<any>>
    %313 = tpu.memref_squeeze %312 : memref<1x128xf32, #tpu.memory_space<any>> -> memref<128xf32, #tpu.memory_space<any>>
    %c0_i32_121 = arith.constant 0 : i32
    %314 = tpu.memref_slice %arg12[%c7_i32_117, %c0_i32_121] : memref<16x128xf32, #tpu.memory_space<vmem>> -> memref<1x128xf32, #tpu.memory_space<vmem>>
    %315 = tpu.memref_squeeze %314 : memref<1x128xf32, #tpu.memory_space<vmem>> -> memref<128xf32, #tpu.memory_space<vmem>>
    %316 = tpu.memref_slice %arg13[%c7_i32_117] : memref<16x!tpu.dma_semaphore, #tpu.memory_space<semaphore_mem>> -> memref<1x!tpu.dma_semaphore, #tpu.memory_space<semaphore_mem>>
    %317 = tpu.memref_squeeze %316 : memref<1x!tpu.dma_semaphore, #tpu.memory_space<semaphore_mem>> -> memref<!tpu.dma_semaphore, #tpu.memory_space<semaphore_mem>>
    tpu.wait_dma2 semaphore(%317 : memref<!tpu.dma_semaphore, #tpu.memory_space<semaphore_mem>>) src(%313 : memref<128xf32, #tpu.memory_space<any>>) dst(%315 : memref<128xf32, #tpu.memory_space<vmem>>)
    %c8_i32_122 = arith.constant 8 : i32
    %318 = arith.addi %0, %c8_i32_122 : i32
    %319 = arith.index_cast %arg0 : i32 to index
    %320 = arith.index_cast %318 : i32 to index
    %321 = memref.load %arg2[%319, %320] : memref<2x16xi32, #tpu.memory_space<smem>>
    %c0_i32_123 = arith.constant 0 : i32
    %c63_i32_124 = arith.constant 63 : i32
    %322 = arith.maxsi %c0_i32_123, %321 : i32
    %323 = arith.minsi %c63_i32_124, %322 : i32
    %c0_i32_125 = arith.constant 0 : i32
    %324 = tpu.memref_slice %arg3[%323, %c0_i32_125] : memref<64x128xf32, #tpu.memory_space<any>> -> memref<1x128xf32, #tpu.memory_space<any>>
    %325 = tpu.memref_squeeze %324 : memref<1x128xf32, #tpu.memory_space<any>> -> memref<128xf32, #tpu.memory_space<any>>
    %c0_i32_126 = arith.constant 0 : i32
    %326 = tpu.memref_slice %arg12[%c8_i32_122, %c0_i32_126] : memref<16x128xf32, #tpu.memory_space<vmem>> -> memref<1x128xf32, #tpu.memory_space<vmem>>
    %327 = tpu.memref_squeeze %326 : memref<1x128xf32, #tpu.memory_space<vmem>> -> memref<128xf32, #tpu.memory_space<vmem>>
    %328 = tpu.memref_slice %arg13[%c8_i32_122] : memref<16x!tpu.dma_semaphore, #tpu.memory_space<semaphore_mem>> -> memref<1x!tpu.dma_semaphore, #tpu.memory_space<semaphore_mem>>
    %329 = tpu.memref_squeeze %328 : memref<1x!tpu.dma_semaphore, #tpu.memory_space<semaphore_mem>> -> memref<!tpu.dma_semaphore, #tpu.memory_space<semaphore_mem>>
    tpu.wait_dma2 semaphore(%329 : memref<!tpu.dma_semaphore, #tpu.memory_space<semaphore_mem>>) src(%325 : memref<128xf32, #tpu.memory_space<any>>) dst(%327 : memref<128xf32, #tpu.memory_space<vmem>>)
    %c9_i32_127 = arith.constant 9 : i32
    %330 = arith.addi %0, %c9_i32_127 : i32
    %331 = arith.index_cast %arg0 : i32 to index
    %332 = arith.index_cast %330 : i32 to index
    %333 = memref.load %arg2[%331, %332] : memref<2x16xi32, #tpu.memory_space<smem>>
    %c0_i32_128 = arith.constant 0 : i32
    %c63_i32_129 = arith.constant 63 : i32
    %334 = arith.maxsi %c0_i32_128, %333 : i32
    %335 = arith.minsi %c63_i32_129, %334 : i32
    %c0_i32_130 = arith.constant 0 : i32
    %336 = tpu.memref_slice %arg3[%335, %c0_i32_130] : memref<64x128xf32, #tpu.memory_space<any>> -> memref<1x128xf32, #tpu.memory_space<any>>
    %337 = tpu.memref_squeeze %336 : memref<1x128xf32, #tpu.memory_space<any>> -> memref<128xf32, #tpu.memory_space<any>>
    %c0_i32_131 = arith.constant 0 : i32
    %338 = tpu.memref_slice %arg12[%c9_i32_127, %c0_i32_131] : memref<16x128xf32, #tpu.memory_space<vmem>> -> memref<1x128xf32, #tpu.memory_space<vmem>>
    %339 = tpu.memref_squeeze %338 : memref<1x128xf32, #tpu.memory_space<vmem>> -> memref<128xf32, #tpu.memory_space<vmem>>
    %340 = tpu.memref_slice %arg13[%c9_i32_127] : memref<16x!tpu.dma_semaphore, #tpu.memory_space<semaphore_mem>> -> memref<1x!tpu.dma_semaphore, #tpu.memory_space<semaphore_mem>>
    %341 = tpu.memref_squeeze %340 : memref<1x!tpu.dma_semaphore, #tpu.memory_space<semaphore_mem>> -> memref<!tpu.dma_semaphore, #tpu.memory_space<semaphore_mem>>
    tpu.wait_dma2 semaphore(%341 : memref<!tpu.dma_semaphore, #tpu.memory_space<semaphore_mem>>) src(%337 : memref<128xf32, #tpu.memory_space<any>>) dst(%339 : memref<128xf32, #tpu.memory_space<vmem>>)
    %c10_i32_132 = arith.constant 10 : i32
    %342 = arith.addi %0, %c10_i32_132 : i32
    %343 = arith.index_cast %arg0 : i32 to index
    %344 = arith.index_cast %342 : i32 to index
    %345 = memref.load %arg2[%343, %344] : memref<2x16xi32, #tpu.memory_space<smem>>
    %c0_i32_133 = arith.constant 0 : i32
    %c63_i32_134 = arith.constant 63 : i32
    %346 = arith.maxsi %c0_i32_133, %345 : i32
    %347 = arith.minsi %c63_i32_134, %346 : i32
    %c0_i32_135 = arith.constant 0 : i32
    %348 = tpu.memref_slice %arg3[%347, %c0_i32_135] : memref<64x128xf32, #tpu.memory_space<any>> -> memref<1x128xf32, #tpu.memory_space<any>>
    %349 = tpu.memref_squeeze %348 : memref<1x128xf32, #tpu.memory_space<any>> -> memref<128xf32, #tpu.memory_space<any>>
    %c0_i32_136 = arith.constant 0 : i32
    %350 = tpu.memref_slice %arg12[%c10_i32_132, %c0_i32_136] : memref<16x128xf32, #tpu.memory_space<vmem>> -> memref<1x128xf32, #tpu.memory_space<vmem>>
    %351 = tpu.memref_squeeze %350 : memref<1x128xf32, #tpu.memory_space<vmem>> -> memref<128xf32, #tpu.memory_space<vmem>>
    %352 = tpu.memref_slice %arg13[%c10_i32_132] : memref<16x!tpu.dma_semaphore, #tpu.memory_space<semaphore_mem>> -> memref<1x!tpu.dma_semaphore, #tpu.memory_space<semaphore_mem>>
    %353 = tpu.memref_squeeze %352 : memref<1x!tpu.dma_semaphore, #tpu.memory_space<semaphore_mem>> -> memref<!tpu.dma_semaphore, #tpu.memory_space<semaphore_mem>>
    tpu.wait_dma2 semaphore(%353 : memref<!tpu.dma_semaphore, #tpu.memory_space<semaphore_mem>>) src(%349 : memref<128xf32, #tpu.memory_space<any>>) dst(%351 : memref<128xf32, #tpu.memory_space<vmem>>)
    %c11_i32_137 = arith.constant 11 : i32
    %354 = arith.addi %0, %c11_i32_137 : i32
    %355 = arith.index_cast %arg0 : i32 to index
    %356 = arith.index_cast %354 : i32 to index
    %357 = memref.load %arg2[%355, %356] : memref<2x16xi32, #tpu.memory_space<smem>>
    %c0_i32_138 = arith.constant 0 : i32
    %c63_i32_139 = arith.constant 63 : i32
    %358 = arith.maxsi %c0_i32_138, %357 : i32
    %359 = arith.minsi %c63_i32_139, %358 : i32
    %c0_i32_140 = arith.constant 0 : i32
    %360 = tpu.memref_slice %arg3[%359, %c0_i32_140] : memref<64x128xf32, #tpu.memory_space<any>> -> memref<1x128xf32, #tpu.memory_space<any>>
    %361 = tpu.memref_squeeze %360 : memref<1x128xf32, #tpu.memory_space<any>> -> memref<128xf32, #tpu.memory_space<any>>
    %c0_i32_141 = arith.constant 0 : i32
    %362 = tpu.memref_slice %arg12[%c11_i32_137, %c0_i32_141] : memref<16x128xf32, #tpu.memory_space<vmem>> -> memref<1x128xf32, #tpu.memory_space<vmem>>
    %363 = tpu.memref_squeeze %362 : memref<1x128xf32, #tpu.memory_space<vmem>> -> memref<128xf32, #tpu.memory_space<vmem>>
    %364 = tpu.memref_slice %arg13[%c11_i32_137] : memref<16x!tpu.dma_semaphore, #tpu.memory_space<semaphore_mem>> -> memref<1x!tpu.dma_semaphore, #tpu.memory_space<semaphore_mem>>
    %365 = tpu.memref_squeeze %364 : memref<1x!tpu.dma_semaphore, #tpu.memory_space<semaphore_mem>> -> memref<!tpu.dma_semaphore, #tpu.memory_space<semaphore_mem>>
    tpu.wait_dma2 semaphore(%365 : memref<!tpu.dma_semaphore, #tpu.memory_space<semaphore_mem>>) src(%361 : memref<128xf32, #tpu.memory_space<any>>) dst(%363 : memref<128xf32, #tpu.memory_space<vmem>>)
    %c12_i32_142 = arith.constant 12 : i32
    %366 = arith.addi %0, %c12_i32_142 : i32
    %367 = arith.index_cast %arg0 : i32 to index
    %368 = arith.index_cast %366 : i32 to index
    %369 = memref.load %arg2[%367, %368] : memref<2x16xi32, #tpu.memory_space<smem>>
    %c0_i32_143 = arith.constant 0 : i32
    %c63_i32_144 = arith.constant 63 : i32
    %370 = arith.maxsi %c0_i32_143, %369 : i32
    %371 = arith.minsi %c63_i32_144, %370 : i32
    %c0_i32_145 = arith.constant 0 : i32
    %372 = tpu.memref_slice %arg3[%371, %c0_i32_145] : memref<64x128xf32, #tpu.memory_space<any>> -> memref<1x128xf32, #tpu.memory_space<any>>
    %373 = tpu.memref_squeeze %372 : memref<1x128xf32, #tpu.memory_space<any>> -> memref<128xf32, #tpu.memory_space<any>>
    %c0_i32_146 = arith.constant 0 : i32
    %374 = tpu.memref_slice %arg12[%c12_i32_142, %c0_i32_146] : memref<16x128xf32, #tpu.memory_space<vmem>> -> memref<1x128xf32, #tpu.memory_space<vmem>>
    %375 = tpu.memref_squeeze %374 : memref<1x128xf32, #tpu.memory_space<vmem>> -> memref<128xf32, #tpu.memory_space<vmem>>
    %376 = tpu.memref_slice %arg13[%c12_i32_142] : memref<16x!tpu.dma_semaphore, #tpu.memory_space<semaphore_mem>> -> memref<1x!tpu.dma_semaphore, #tpu.memory_space<semaphore_mem>>
    %377 = tpu.memref_squeeze %376 : memref<1x!tpu.dma_semaphore, #tpu.memory_space<semaphore_mem>> -> memref<!tpu.dma_semaphore, #tpu.memory_space<semaphore_mem>>
    tpu.wait_dma2 semaphore(%377 : memref<!tpu.dma_semaphore, #tpu.memory_space<semaphore_mem>>) src(%373 : memref<128xf32, #tpu.memory_space<any>>) dst(%375 : memref<128xf32, #tpu.memory_space<vmem>>)
    %c13_i32_147 = arith.constant 13 : i32
    %378 = arith.addi %0, %c13_i32_147 : i32
    %379 = arith.index_cast %arg0 : i32 to index
    %380 = arith.index_cast %378 : i32 to index
    %381 = memref.load %arg2[%379, %380] : memref<2x16xi32, #tpu.memory_space<smem>>
    %c0_i32_148 = arith.constant 0 : i32
    %c63_i32_149 = arith.constant 63 : i32
    %382 = arith.maxsi %c0_i32_148, %381 : i32
    %383 = arith.minsi %c63_i32_149, %382 : i32
    %c0_i32_150 = arith.constant 0 : i32
    %384 = tpu.memref_slice %arg3[%383, %c0_i32_150] : memref<64x128xf32, #tpu.memory_space<any>> -> memref<1x128xf32, #tpu.memory_space<any>>
    %385 = tpu.memref_squeeze %384 : memref<1x128xf32, #tpu.memory_space<any>> -> memref<128xf32, #tpu.memory_space<any>>
    %c0_i32_151 = arith.constant 0 : i32
    %386 = tpu.memref_slice %arg12[%c13_i32_147, %c0_i32_151] : memref<16x128xf32, #tpu.memory_space<vmem>> -> memref<1x128xf32, #tpu.memory_space<vmem>>
    %387 = tpu.memref_squeeze %386 : memref<1x128xf32, #tpu.memory_space<vmem>> -> memref<128xf32, #tpu.memory_space<vmem>>
    %388 = tpu.memref_slice %arg13[%c13_i32_147] : memref<16x!tpu.dma_semaphore, #tpu.memory_space<semaphore_mem>> -> memref<1x!tpu.dma_semaphore, #tpu.memory_space<semaphore_mem>>
    %389 = tpu.memref_squeeze %388 : memref<1x!tpu.dma_semaphore, #tpu.memory_space<semaphore_mem>> -> memref<!tpu.dma_semaphore, #tpu.memory_space<semaphore_mem>>
    tpu.wait_dma2 semaphore(%389 : memref<!tpu.dma_semaphore, #tpu.memory_space<semaphore_mem>>) src(%385 : memref<128xf32, #tpu.memory_space<any>>) dst(%387 : memref<128xf32, #tpu.memory_space<vmem>>)
    %c14_i32_152 = arith.constant 14 : i32
    %390 = arith.addi %0, %c14_i32_152 : i32
    %391 = arith.index_cast %arg0 : i32 to index
    %392 = arith.index_cast %390 : i32 to index
    %393 = memref.load %arg2[%391, %392] : memref<2x16xi32, #tpu.memory_space<smem>>
    %c0_i32_153 = arith.constant 0 : i32
    %c63_i32_154 = arith.constant 63 : i32
    %394 = arith.maxsi %c0_i32_153, %393 : i32
    %395 = arith.minsi %c63_i32_154, %394 : i32
    %c0_i32_155 = arith.constant 0 : i32
    %396 = tpu.memref_slice %arg3[%395, %c0_i32_155] : memref<64x128xf32, #tpu.memory_space<any>> -> memref<1x128xf32, #tpu.memory_space<any>>
    %397 = tpu.memref_squeeze %396 : memref<1x128xf32, #tpu.memory_space<any>> -> memref<128xf32, #tpu.memory_space<any>>
    %c0_i32_156 = arith.constant 0 : i32
    %398 = tpu.memref_slice %arg12[%c14_i32_152, %c0_i32_156] : memref<16x128xf32, #tpu.memory_space<vmem>> -> memref<1x128xf32, #tpu.memory_space<vmem>>
    %399 = tpu.memref_squeeze %398 : memref<1x128xf32, #tpu.memory_space<vmem>> -> memref<128xf32, #tpu.memory_space<vmem>>
    %400 = tpu.memref_slice %arg13[%c14_i32_152] : memref<16x!tpu.dma_semaphore, #tpu.memory_space<semaphore_mem>> -> memref<1x!tpu.dma_semaphore, #tpu.memory_space<semaphore_mem>>
    %401 = tpu.memref_squeeze %400 : memref<1x!tpu.dma_semaphore, #tpu.memory_space<semaphore_mem>> -> memref<!tpu.dma_semaphore, #tpu.memory_space<semaphore_mem>>
    tpu.wait_dma2 semaphore(%401 : memref<!tpu.dma_semaphore, #tpu.memory_space<semaphore_mem>>) src(%397 : memref<128xf32, #tpu.memory_space<any>>) dst(%399 : memref<128xf32, #tpu.memory_space<vmem>>)
    %c15_i32_157 = arith.constant 15 : i32
    %402 = arith.addi %0, %c15_i32_157 : i32
    %403 = arith.index_cast %arg0 : i32 to index
    %404 = arith.index_cast %402 : i32 to index
    %405 = memref.load %arg2[%403, %404] : memref<2x16xi32, #tpu.memory_space<smem>>
    %c0_i32_158 = arith.constant 0 : i32
    %c63_i32_159 = arith.constant 63 : i32
    %406 = arith.maxsi %c0_i32_158, %405 : i32
    %407 = arith.minsi %c63_i32_159, %406 : i32
    %c0_i32_160 = arith.constant 0 : i32
    %408 = tpu.memref_slice %arg3[%407, %c0_i32_160] : memref<64x128xf32, #tpu.memory_space<any>> -> memref<1x128xf32, #tpu.memory_space<any>>
    %409 = tpu.memref_squeeze %408 : memref<1x128xf32, #tpu.memory_space<any>> -> memref<128xf32, #tpu.memory_space<any>>
    %c0_i32_161 = arith.constant 0 : i32
    %410 = tpu.memref_slice %arg12[%c15_i32_157, %c0_i32_161] : memref<16x128xf32, #tpu.memory_space<vmem>> -> memref<1x128xf32, #tpu.memory_space<vmem>>
    %411 = tpu.memref_squeeze %410 : memref<1x128xf32, #tpu.memory_space<vmem>> -> memref<128xf32, #tpu.memory_space<vmem>>
    %412 = tpu.memref_slice %arg13[%c15_i32_157] : memref<16x!tpu.dma_semaphore, #tpu.memory_space<semaphore_mem>> -> memref<1x!tpu.dma_semaphore, #tpu.memory_space<semaphore_mem>>
    %413 = tpu.memref_squeeze %412 : memref<1x!tpu.dma_semaphore, #tpu.memory_space<semaphore_mem>> -> memref<!tpu.dma_semaphore, #tpu.memory_space<semaphore_mem>>
    tpu.wait_dma2 semaphore(%413 : memref<!tpu.dma_semaphore, #tpu.memory_space<semaphore_mem>>) src(%409 : memref<128xf32, #tpu.memory_space<any>>) dst(%411 : memref<128xf32, #tpu.memory_space<vmem>>)
    %c16_i32_162 = arith.constant 16 : i32
    %c0_163 = arith.constant 0 : index
    %c0_164 = arith.constant 0 : index
    %414 = vector.load %arg12[%c0_163, %c0_164] : memref<16x128xf32, #tpu.memory_space<vmem>>, vector<16x128xf32>
    %415 = arith.addf %414, %221 : vector<16x128xf32>
    %cst = arith.constant dense<0.000000e+00> : vector<16xf32>
    %416 = vector.multi_reduction <add>, %415, %cst [1] : vector<16x128xf32> to vector<16xf32>
    %417 = vector.shape_cast %416 : vector<16xf32> to vector<16x1xf32>
    %cst_165 = arith.constant 1.280000e+02 : f32
    %418 = vector.broadcast %cst_165 : f32 to vector<16x1xf32>
    %419 = arith.divf %417, %418 : vector<16x1xf32>
    %420 = arith.mulf %415, %415 : vector<16x128xf32>
    %cst_166 = arith.constant dense<0.000000e+00> : vector<16xf32>
    %421 = vector.multi_reduction <add>, %420, %cst_166 [1] : vector<16x128xf32> to vector<16xf32>
    %422 = vector.shape_cast %421 : vector<16xf32> to vector<16x1xf32>
    %cst_167 = arith.constant 1.280000e+02 : f32
    %423 = vector.broadcast %cst_167 : f32 to vector<16x1xf32>
    %424 = arith.divf %422, %423 : vector<16x1xf32>
    %425 = arith.mulf %419, %419 : vector<16x1xf32>
    %426 = arith.subf %424, %425 : vector<16x1xf32>
    %cst_168 = arith.constant 0.000000e+00 : f32
    %427 = vector.broadcast %cst_168 : f32 to vector<16x1xf32>
    %428 = arith.maximumf %426, %427 : vector<16x1xf32>
    %429 = vector.broadcast %419 : vector<16x1xf32> to vector<16x128xf32>
    %430 = arith.subf %415, %429 : vector<16x128xf32>
    %cst_169 = arith.constant 9.99999997E-7 : f32
    %431 = vector.broadcast %cst_169 : f32 to vector<16x1xf32>
    %432 = arith.addf %428, %431 : vector<16x1xf32>
    %433 = math.rsqrt %432 : vector<16x1xf32>
    %434 = vector.broadcast %433 : vector<16x1xf32> to vector<16x128xf32>
    %435 = arith.mulf %430, %434 : vector<16x128xf32>
    %c0_170 = arith.constant 0 : index
    %c0_171 = arith.constant 0 : index
    %436 = vector.load %arg9[%c0_170, %c0_171] : memref<1x128xf32, #tpu.memory_space<vmem>>, vector<1x128xf32>
    %437 = vector.broadcast %436 : vector<1x128xf32> to vector<16x128xf32>
    %438 = arith.mulf %435, %437 : vector<16x128xf32>
    %c0_172 = arith.constant 0 : index
    %c0_173 = arith.constant 0 : index
    %439 = vector.load %arg10[%c0_172, %c0_173] : memref<1x128xf32, #tpu.memory_space<vmem>>, vector<1x128xf32>
    %440 = vector.broadcast %439 : vector<1x128xf32> to vector<16x128xf32>
    %441 = arith.addf %438, %440 : vector<16x128xf32>
    %c0_174 = arith.constant 0 : index
    %c0_175 = arith.constant 0 : index
    %c0_176 = arith.constant 0 : index
    %442 = vector.load %arg11[%c0_174, %c0_175, %c0_176] : memref<1x16x128xf32, #tpu.memory_space<vmem>>, vector<1x16x128xf32>
    %443 = vector.shape_cast %442 : vector<1x16x128xf32> to vector<16x128xf32>
    %444 = vector.shape_cast %441 : vector<16x128xf32> to vector<1x16x128xf32>
    tpu.vector_store %arg11[%c0_174, %c0_175, %c0_176], %444 {strides = array<i32>} : memref<1x16x128xf32, #tpu.memory_space<vmem>>, vector<1x16x128xf32>,
    return
  }
  func.func @transform_1(%arg0: i32, %arg1: i32, %arg2: memref<2x16xi32, #tpu.memory_space<smem>>) -> (i32, i32) {
    %c0_i32 = arith.constant 0 : i32
    %c0_i32_0 = arith.constant 0 : i32
    %c0_i32_1 = arith.constant 0 : i32
    return %c0_i32, %c0_i32_0 : i32, i32
  }
  func.func @transform_2(%arg0: i32, %arg1: i32, %arg2: memref<2x16xi32, #tpu.memory_space<smem>>) -> (i32, i32) {
    %c0_i32 = arith.constant 0 : i32
    %c0_i32_0 = arith.constant 0 : i32
    %c0_i32_1 = arith.constant 0 : i32
    return %c0_i32, %c0_i32_0 : i32, i32
  }
  func.func @transform_3(%arg0: i32, %arg1: i32, %arg2: memref<2x16xi32, #tpu.memory_space<smem>>) -> (i32, i32, i32, i32) {
    %c0_i32 = arith.constant 0 : i32
    %c0_i32_0 = arith.constant 0 : i32
    %c0_i32_1 = arith.constant 0 : i32
    return %arg0, %arg1, %c0_i32, %c0_i32_0 : i32, i32, i32, i32
  }
  func.func @transform_4(%arg0: i32, %arg1: i32, %arg2: memref<2x16xi32, #tpu.memory_space<smem>>) -> (i32, i32, i32, i32) {
    %c0_i32 = arith.constant 0 : i32
    %c0_i32_0 = arith.constant 0 : i32
    %c0_i32_1 = arith.constant 0 : i32
    return %arg0, %arg1, %c0_i32, %c0_i32_0 : i32, i32, i32, i32
  }
  func.func @transform_5(%arg0: i32, %arg1: i32, %arg2: memref<2x16xi32, #tpu.memory_space<smem>>) -> (i32, i32) {
    %c0_i32 = arith.constant 0 : i32
    %c0_i32_0 = arith.constant 0 : i32
    return %arg1, %c0_i32 : i32, i32
  }
  func.func @transform_6(%arg0: i32, %arg1: i32, %arg2: memref<2x16xi32, #tpu.memory_space<smem>>) -> (i32, i32) {
    %c0_i32 = arith.constant 0 : i32
    %c0_i32_0 = arith.constant 0 : i32
    %c0_i32_1 = arith.constant 0 : i32
    return %c0_i32, %c0_i32_0 : i32, i32
  }
  func.func @transform_7(%arg0: i32, %arg1: i32, %arg2: memref<2x16xi32, #tpu.memory_space<smem>>) -> (i32, i32) {
    %c0_i32 = arith.constant 0 : i32
    %c0_i32_0 = arith.constant 0 : i32
    %c0_i32_1 = arith.constant 0 : i32
    return %c0_i32, %c0_i32_0 : i32, i32
  }
  func.func @transform_8(%arg0: i32, %arg1: i32, %arg2: memref<2x16xi32, #tpu.memory_space<smem>>) -> (i32, i32, i32) {
    %c0_i32 = arith.constant 0 : i32
    %c0_i32_0 = arith.constant 0 : i32
    return %arg0, %arg1, %c0_i32 : i32, i32, i32
  }
}

</mosaic_0001>

<llo_original>
// kernel: tpu_custom_call.1
$region0: #{tpu_custom_call.1}
  #allocation0 [shape = 'u32[]', space=smem, size = 0x4, offset = 0x4, fixed_abs, tag = 'smem constant byte address 0x4 - core index']
  #allocation1 [shape = 'u32[72,128]{1,0:T(1,128)}', space=vmem, size = 0x9000, scoped, tag = 'internal scratch']
  #allocation2 [shape = 'f32[16,128]{1,0:T(8,128)}', space=vmem, size = 0x2000, scoped, tag = 'scratch operand']
  #allocation3 [shape = 's32[16]{0}', space=sflag, size = 0x40, scoped, tag = 'scratch operand']
  #allocation4 [shape = 's32[1]{0}', space=sflag, size = 0x4, scoped, tag = 'scoped memory for tpu_custom_call.1']
  #allocation5 [shape = 'u8[1024]{0}', space=smem, size = 0x400, scoped, tag = 'prefetched SMEM operand 0']
  #allocation13 [shape = 's32[]', space=sflag, size = 0x4, offset = 0, fixed_abs, tag = 'sflag constant byte address 0x0 - dummy sync flag']
  #allocation14 [shape = 's32[]', space=sflag, size = 0x4, offset = 0, fixed_abs, tag = 'sflag constant byte address 0x0 - dummy sync flag']
  #allocation15 [shape = 's32[]', space=sflag, size = 0x4, offset = 0, fixed_abs, tag = 'sflag constant byte address 0x0 - dummy sync flag']
  #allocation16 [shape = 's32[]', space=sflag, size = 0x4, offset = 0, fixed_abs, tag = 'sflag constant byte address 0x0 - dummy sync flag']
  #allocation17 [shape = 's32[]', space=sflag, size = 0x4, offset = 0, fixed_abs, tag = 'sflag constant byte address 0x0 - dummy sync flag']
  #allocation18 [shape = 's32[]', space=sflag, size = 0x4, offset = 0, fixed_abs, tag = 'sflag constant byte address 0x0 - dummy sync flag']
  #allocation19 [shape = 's32[]', space=sflag, size = 0x4, offset = 0, fixed_abs, tag = 'sflag constant byte address 0x0 - dummy sync flag']
  #allocation20 [shape = 's32[]', space=sflag, size = 0x4, offset = 0, fixed_abs, tag = 'sflag constant byte address 0x0 - dummy sync flag']
  #allocation21 [shape = 's32[]', space=sflag, size = 0x4, offset = 0, fixed_abs, tag = 'sflag constant byte address 0x0 - dummy sync flag']
  #allocation22 [shape = 's32[]', space=sflag, size = 0x4, offset = 0, fixed_abs, tag = 'sflag constant byte address 0x0 - dummy sync flag']
  #allocation23 [shape = 's32[]', space=sflag, size = 0x4, offset = 0, fixed_abs, tag = 'sflag constant byte address 0x0 - dummy sync flag']
  #allocation24 [shape = 's32[]', space=sflag, size = 0x4, offset = 0, fixed_abs, tag = 'sflag constant byte address 0x0 - dummy sync flag']
  #allocation25 [shape = 's32[]', space=sflag, size = 0x4, offset = 0, fixed_abs, tag = 'sflag constant byte address 0x0 - dummy sync flag']
  #allocation26 [shape = 's32[]', space=sflag, size = 0x4, offset = 0, fixed_abs, tag = 'sflag constant byte address 0x0 - dummy sync flag']
  #allocation27 [shape = 's32[]', space=sflag, size = 0x4, offset = 0, fixed_abs, tag = 'sflag constant byte address 0x0 - dummy sync flag']
  #allocation28 [shape = 's32[]', space=sflag, size = 0x4, offset = 0, fixed_abs, tag = 'sflag constant byte address 0x0 - dummy sync flag']
  %s0 = inlined_call_operand.vmem [shape: s32[2,16], index: 0, kind: input, shape index: {}]
  %s1 = inlined_call_operand.vmem [shape: f32[64,128], index: 1, kind: input, shape index: {}]
  %s2 = inlined_call_operand.hbm [shape: f32[2,128], index: 2, kind: input, shape index: {}]
  %s3 = inlined_call_operand.hbm [shape: f32[2,128], index: 3, kind: input, shape index: {}]
  %s4 = inlined_call_operand.vmem [shape: s32[2,1,16,1], index: 4, kind: input, shape index: {}]
  %s5 = inlined_call_operand.vmem [shape: s32[2,1,16,1], index: 5, kind: input, shape index: {}]
  %s6 = inlined_call_operand.hbm [shape: f32[16,128], index: 6, kind: input, shape index: {}]
  %s7 = inlined_call_operand.vmem [shape: f32[1,128], index: 7, kind: input, shape index: {}]
  %s8 = inlined_call_operand.vmem [shape: f32[1,128], index: 8, kind: input, shape index: {}]
  %s9 = inlined_call_operand.hbm [shape: f32[2,16,128], index: 9, kind: output, shape index: {}]
  %s10 = sld [smem:[#allocation0]]
  $region553: #{tpu_custom_call.1} parent=0
    _
  %s12 = ssub.s32 1, %s10
  %s13 = scalar_select 0, %s12, %s10
  %s15 = sshll.u32 %s0, 4
  %s16 = int_to_ptr.vmem [resolvable:$true] %s15
  %18 = dma.vmem_to_smem %s16, 32, [#allocation5], [#allocation4]
  %20 = dma.done [#allocation4], 32
  %21 = sfence
  $region1: #{tpu_custom_call.1} parent=0
    #allocation6 [shape = 'u8[1024]{0}', space=vmem, size = 0x400, scoped, tag = 'input window, operand 2, single buffered']
    #allocation7 [shape = 's32[2]{0}', space=sflag, size = 0x8, scoped, tag = 'scoped memory for tpu_custom_call.1']
    #allocation8 [shape = 's32[2]{0}', space=sflag, size = 0x8, scoped, tag = 'scoped memory for tpu_custom_call.1']
    #allocation9 [shape = 'u8[1024]{0}', space=vmem, size = 0x400, scoped, tag = 'input window, operand 3, single buffered']
    #allocation10 [shape = 's32[1]{0}', space=sflag, size = 0x4, scoped, tag = 'scoped memory for tpu_custom_call.1']
    #allocation11 [shape = 'u8[8192]{0}', space=vmem, size = 0x2000, scoped, tag = 'input window, operand 6, single buffered']
    #allocation12 [shape = 'u8[16384]{0}', space=vmem, size = 0x4000, scoped, tag = 'output window, operand 0']
    %22 = vsyncpa [#allocation7], 0
    %23 = vsyncpa [#allocation10], 0
    %24 = vsyncpa [#allocation8], 0
    %s25 = scalar_lea.sflag [#allocation8], 1
    %26 = vsyncpa %s25, 0
    loop: start=0, step=1, limit=4
    $region2: #{tpu_custom_call.1} parent=1 // loop_pre_header
      _
    $region3: #{tpu_custom_call.1} parent=1 // loop_header
      %s28 = sphi 0, %s32
      %p29 = scmp.ge.s32.totalorder %s28, 4
      %s35 = sphi 0, %s47
      %s36 = sphi 0, %s43
      %s37 = sphi 0, %s35
      %s38 = sphi 0, %s36
      %s39 = sphi 0, %s37
      %s40 = sphi 0, %s38
      %s48 = sphi 0, %s48
      %s50 = sphi 0, %s48
      %s51 = sphi 0, %s50
      %s65 = sphi 0, %s51
      %s69 = sphi 0, %s69
      %s71 = sphi 0, %s69
      %s72 = sphi 0, %s71
      %s86 = sphi 0, %s72
      %s94 = sphi 0, %s96
      %s97 = sphi 0, %s94
      %s98 = sphi 0, %s97
      %s114 = sphi 0, %s98
      %s122 = sphi 0, %s124
      %s125 = sphi 0, %s122
      %s126 = sphi 0, %s125
      %s142 = sphi 0, %s126
      %s148 = sphi 0, %s150
      %s151 = sphi 0, %s148
      %s152 = sphi 0, %s151
      %s168 = sphi 0, %s152
      %s172 = sphi 0, %s172
      %s174 = sphi 0, %s172
      %s175 = sphi 0, %s174
      %s189 = sphi 0, %s175
      %s193 = sphi 0, %s193
      %s195 = sphi 0, %s193
      %s196 = sphi 0, %s195
      %s210 = sphi 0, %s196
      %s218 = sphi 0, %s220
      %s221 = sphi 0, %s218
      %s222 = sphi 0, %s221
      %s238 = sphi 0, %s222
    $region4: #{tpu_custom_call.1} parent=1 // loop_header_branch
      %31 = sbr.rel (%p29) target = $region8
    $region5: #{tpu_custom_call.1} parent=1 // loop_body
      %s33 = ssub.s32 %s28, 1
      %s34 = ssub.s32 %s28, 2
      %s41 = sadd.s32 1, %s36
      %p42 = scmp.ge.s32.totalorder %s41, 1
      %s43 = scalar_select %p42, 0, %s41
      %s44 = sadd.s32 1, %s35
      %s45 = scalar_select %p42, %s44, %s35
      %p46 = scmp.ge.s32.totalorder %s45, 2
      %s47 = scalar_select %p46, 0, %s45
      %s49 = sadd.s32 %s48, 1
      %p52 = scmp.eq.s32.totalorder %s28, 1
      %p53 = scmp.ne.s32.totalorder %s48, %s50
      %p54 = scmp.eq.s32.totalorder %s28, 0
      %p55 = por %p53, %p54
      %p56 = scmp.ne.s32.totalorder %s48, %s50
      %p57 = scmp.eq.s32.totalorder %s33, 1
      %p58 = por %p56, %p57
      %p59 = scmp.ne.s32.totalorder %s50, %s51
      %p60 = scmp.eq.s32.totalorder %s33, 0
      %p61 = por %p59, %p60
      %p62 = scmp.ne.s32.totalorder %s50, %s51
      %p63 = scmp.eq.s32.totalorder %s34, 1
      %p64 = por %p62, %p63
      %p66 = scmp.ne.s32.totalorder %s51, %s65
      %p67 = scmp.eq.s32.totalorder %s34, 0
      %p68 = por %p66, %p67
      %s70 = sadd.s32 %s69, 1
      %p73 = scmp.eq.s32.totalorder %s28, 1
      %p74 = scmp.ne.s32.totalorder %s69, %s71
      %p75 = scmp.eq.s32.totalorder %s28, 0
      %p76 = por %p74, %p75
      %p77 = scmp.ne.s32.totalorder %s69, %s71
      %p78 = scmp.eq.s32.totalorder %s33, 1
      %p79 = por %p77, %p78
      %p80 = scmp.ne.s32.totalorder %s71, %s72
      %p81 = scmp.eq.s32.totalorder %s33, 0
      %p82 = por %p80, %p81
      %p83 = scmp.ne.s32.totalorder %s71, %s72
      %p84 = scmp.eq.s32.totalorder %s34, 1
      %p85 = por %p83, %p84
      %p87 = scmp.ne.s32.totalorder %s72, %s86
      %p88 = scmp.eq.s32.totalorder %s34, 0
      %p89 = por %p87, %p88
      %s90 = ssub.s32 %s35, %s47
      %s91 = ssub.s32 %s36, %s43
      %s92 = sor.u32 %s90, %s91
      %p93 = scmp.eq.s32.totalorder %s92, 0
      %s95 = sadd.s32 %s94, 1
      %s96 = scalar_select %p93, %s94, %s95
      %p99 = pneg %p93
      %p100 = scmp.eq.s32.totalorder %s28, 1
      %p101 = por %p99, %p100
      %p102 = scmp.ne.s32.totalorder %s94, %s97
      %p103 = scmp.eq.s32.totalorder %s28, 0
      %p104 = por %p102, %p103
      %p105 = scmp.ne.s32.totalorder %s94, %s97
      %p106 = scmp.eq.s32.totalorder %s33, 1
      %p107 = por %p105, %p106
      %p108 = scmp.ne.s32.totalorder %s97, %s98
      %p109 = scmp.eq.s32.totalorder %s33, 0
      %p110 = por %p108, %p109
      %p111 = scmp.ne.s32.totalorder %s97, %s98
      %p112 = scmp.eq.s32.totalorder %s34, 1
      %p113 = por %p111, %p112
      %p115 = scmp.ne.s32.totalorder %s98, %s114
      %p116 = scmp.eq.s32.totalorder %s34, 0
      %p117 = por %p115, %p116
      %s118 = ssub.s32 %s35, %s47
      %s119 = ssub.s32 %s36, %s43
      %s120 = sor.u32 %s118, %s119
      %p121 = scmp.eq.s32.totalorder %s120, 0
      %s123 = sadd.s32 %s122, 1
      %s124 = scalar_select %p121, %s122, %s123
      %p127 = pneg %p121
      %p128 = scmp.eq.s32.totalorder %s28, 1
      %p129 = por %p127, %p128
      %p130 = scmp.ne.s32.totalorder %s122, %s125
      %p131 = scmp.eq.s32.totalorder %s28, 0
      %p132 = por %p130, %p131
      %p133 = scmp.ne.s32.totalorder %s122, %s125
      %p134 = scmp.eq.s32.totalorder %s33, 1
      %p135 = por %p133, %p134
      %p136 = scmp.ne.s32.totalorder %s125, %s126
      %p137 = scmp.eq.s32.totalorder %s33, 0
      %p138 = por %p136, %p137
      %p139 = scmp.ne.s32.totalorder %s125, %s126
      %p140 = scmp.eq.s32.totalorder %s34, 1
      %p141 = por %p139, %p140
      %p143 = scmp.ne.s32.totalorder %s126, %s142
      %p144 = scmp.eq.s32.totalorder %s34, 0
      %p145 = por %p143, %p144
      %s146 = ssub.s32 %s36, %s43
      %p147 = scmp.eq.s32.totalorder %s146, 0
      %s149 = sadd.s32 %s148, 1
      %s150 = scalar_select %p147, %s148, %s149
      %p153 = pneg %p147
      %p154 = scmp.eq.s32.totalorder %s28, 1
      %p155 = por %p153, %p154
      %p156 = scmp.ne.s32.totalorder %s148, %s151
      %p157 = scmp.eq.s32.totalorder %s28, 0
      %p158 = por %p156, %p157
      %p159 = scmp.ne.s32.totalorder %s148, %s151
      %p160 = scmp.eq.s32.totalorder %s33, 1
      %p161 = por %p159, %p160
      %p162 = scmp.ne.s32.totalorder %s151, %s152
      %p163 = scmp.eq.s32.totalorder %s33, 0
      %p164 = por %p162, %p163
      %p165 = scmp.ne.s32.totalorder %s151, %s152
      %p166 = scmp.eq.s32.totalorder %s34, 1
      %p167 = por %p165, %p166
      %p169 = scmp.ne.s32.totalorder %s152, %s168
      %p170 = scmp.eq.s32.totalorder %s34, 0
      %p171 = por %p169, %p170
      %s173 = sadd.s32 %s172, 1
      %p176 = scmp.eq.s32.totalorder %s28, 1
      %p177 = scmp.ne.s32.totalorder %s172, %s174
      %p178 = scmp.eq.s32.totalorder %s28, 0
      %p179 = por %p177, %p178
      %p180 = scmp.ne.s32.totalorder %s172, %s174
      %p181 = scmp.eq.s32.totalorder %s33, 1
      %p182 = por %p180, %p181
      %p183 = scmp.ne.s32.totalorder %s174, %s175
      %p184 = scmp.eq.s32.totalorder %s33, 0
      %p185 = por %p183, %p184
      %p186 = scmp.ne.s32.totalorder %s174, %s175
      %p187 = scmp.eq.s32.totalorder %s34, 1
      %p188 = por %p186, %p187
      %p190 = scmp.ne.s32.totalorder %s175, %s189
      %p191 = scmp.eq.s32.totalorder %s34, 0
      %p192 = por %p190, %p191
      %s194 = sadd.s32 %s193, 1
      %p197 = scmp.eq.s32.totalorder %s28, 1
      %p198 = scmp.ne.s32.totalorder %s193, %s195
      %p199 = scmp.eq.s32.totalorder %s28, 0
      %p200 = por %p198, %p199
      %p201 = scmp.ne.s32.totalorder %s193, %s195
      %p202 = scmp.eq.s32.totalorder %s33, 1
      %p203 = por %p201, %p202
      %p204 = scmp.ne.s32.totalorder %s195, %s196
      %p205 = scmp.eq.s32.totalorder %s33, 0
      %p206 = por %p204, %p205
      %p207 = scmp.ne.s32.totalorder %s195, %s196
      %p208 = scmp.eq.s32.totalorder %s34, 1
      %p209 = por %p207, %p208
      %p211 = scmp.ne.s32.totalorder %s196, %s210
      %p212 = scmp.eq.s32.totalorder %s34, 0
      %p213 = por %p211, %p212
      %s214 = ssub.s32 %s35, %s47
      %s215 = ssub.s32 %s36, %s43
      %s216 = sor.u32 %s214, %s215
      %p217 = scmp.eq.s32.totalorder %s216, 0
      %s219 = sadd.s32 %s218, 1
      %s220 = scalar_select %p217, %s218, %s219
      %p223 = pneg %p217
      %p224 = scmp.eq.s32.totalorder %s28, 1
      %p225 = por %p223, %p224
      %p226 = scmp.ne.s32.totalorder %s218, %s221
      %p227 = scmp.eq.s32.totalorder %s28, 0
      %p228 = por %p226, %p227
      %p229 = scmp.ne.s32.totalorder %s218, %s221
      %p230 = scmp.eq.s32.totalorder %s33, 1
      %p231 = por %p229, %p230
      %p232 = scmp.ne.s32.totalorder %s221, %s222
      %p233 = scmp.eq.s32.totalorder %s33, 0
      %p234 = por %p232, %p233
      %p235 = scmp.ne.s32.totalorder %s221, %s222
      %p236 = scmp.eq.s32.totalorder %s34, 1
      %p237 = por %p235, %p236
      %p239 = scmp.ne.s32.totalorder %s222, %s238
      %p240 = scmp.eq.s32.totalorder %s34, 0
      %p241 = por %p239, %p240
      %p242 = scmp.le.s32.totalorder 1, %s28
      %p243 = scmp.lt.s32.totalorder %s28, 3
      %p244 = pnand %p242, %p243
      %p245 = pneg %p244
      // Predicated region
      $region9: #{tpu_custom_call.1} parent=5 // pred_check
        _
      $region10: #{tpu_custom_call.1} parent=5 // pred_check_branch
        %247 = sbr.rel (%p244) target = $region12
      $region11: #{tpu_custom_call.1} parent=5 // pred_region
        %s248 = ssub.s32 %s28, 1
        // Predicated region
        $region13: #{tpu_custom_call.1} parent=11 // pred_check
          %p249 = pneg %p61
        $region14: #{tpu_custom_call.1} parent=11 // pred_check_branch
          %251 = sbr.rel (%p249) target = $region16
        $region15: #{tpu_custom_call.1} parent=11 // pred_region
          %253 = vsyncadd [#allocation7], 0
          %s255 = sshll.u32 %s2, 4
          %s256 = int_to_ptr.hbm [resolvable:$true] %s255
          %s257 = sshll.u32 [#allocation6], 4
          %s258 = int_to_ptr.vmem [resolvable:$true] %s257
          %260 = dma.hbm_to_vmem [thread:$0]  %s256, 32, %s258, [#allocation7]
        $region16: #{tpu_custom_call.1} parent=11 // pred_fallthru
          _
        // Predicated region
        $region17: #{tpu_custom_call.1} parent=11 // pred_check
          %p261 = pneg %p82
        $region18: #{tpu_custom_call.1} parent=11 // pred_check_branch
          %263 = sbr.rel (%p261) target = $region20
        $region19: #{tpu_custom_call.1} parent=11 // pred_region
          %265 = vsyncadd [#allocation10], 0
          %s267 = sshll.u32 %s3, 4
          %s268 = int_to_ptr.hbm [resolvable:$true] %s267
          %s269 = sshll.u32 [#allocation9], 4
          %s270 = int_to_ptr.vmem [resolvable:$true] %s269
          %272 = dma.hbm_to_vmem [thread:$0]  %s268, 32, %s270, [#allocation10]
        $region20: #{tpu_custom_call.1} parent=11 // pred_fallthru
          _
        // Predicated region
        $region21: #{tpu_custom_call.1} parent=11 // pred_check
          %p273 = pneg %p164
        $region22: #{tpu_custom_call.1} parent=11 // pred_check_branch
          %275 = sbr.rel (%p273) target = $region24
        $region23: #{tpu_custom_call.1} parent=11 // pred_region
          %s276 = smul.u32 2, %s38
          %278 = vsyncadd [#allocation10], 0
          %s279 = smul.addr %s276, 8
          %s280 = scalar_lea.hbm %s6, %s279
          %s281 = sshll.u32 %s280, 4
          %s282 = int_to_ptr.hbm [resolvable:$true] %s281
          %s283 = sshll.u32 [#allocation11], 4
          %s284 = int_to_ptr.vmem [resolvable:$true] %s283
          %289 = dma.hbm_to_vmem [thread:$0]  %s282, 256, %s284, [#allocation10], 128, 128, 8
        $region24: #{tpu_custom_call.1} parent=11 // pred_fallthru
          _
        // Predicated region
        $region25: #{tpu_custom_call.1} parent=11 // pred_check
          %p290 = pneg %p185
        $region26: #{tpu_custom_call.1} parent=11 // pred_check_branch
          %292 = sbr.rel (%p290) target = $region28
        $region27: #{tpu_custom_call.1} parent=11 // pred_region
          _
        $region28: #{tpu_custom_call.1} parent=11 // pred_fallthru
          _
        // Predicated region
        $region29: #{tpu_custom_call.1} parent=11 // pred_check
          %p293 = pneg %p206
        $region30: #{tpu_custom_call.1} parent=11 // pred_check_branch
          %295 = sbr.rel (%p293) target = $region32
        $region31: #{tpu_custom_call.1} parent=11 // pred_region
          _
        $region32: #{tpu_custom_call.1} parent=11 // pred_fallthru
          _
      $region12: #{tpu_custom_call.1} parent=5 // pred_fallthru
        _
      %p296 = scmp.lt.s32.totalorder %s28, 2
      // Predicated region
      $region33: #{tpu_custom_call.1} parent=5 // pred_check
        %p297 = pneg %p296
      $region34: #{tpu_custom_call.1} parent=5 // pred_check_branch
        %299 = sbr.rel (%p297) target = $region36
      $region35: #{tpu_custom_call.1} parent=5 // pred_region
        // Predicated region
        $region37: #{tpu_custom_call.1} parent=35 // pred_check
          %p300 = pneg %p104
        $region38: #{tpu_custom_call.1} parent=35 // pred_check_branch
          %302 = sbr.rel (%p300) target = $region40
        $region39: #{tpu_custom_call.1} parent=35 // pred_region
          %p303 = scmp.lt.s32.totalorder %s35, 1
          %s304 = scalar_select %p303, %s35, 1
          %p305 = scmp.lt.s32.totalorder %s36, 0
          %s306 = scalar_select %p305, %s36, 0
          %s307 = smul.addr %s306, 2
          %s308 = smul.addr %s304, 2
          %s309 = sadd.s32 %s307, %s308
          %s310 = smul.addr %s309, 8
          %s311 = scalar_lea.vmem %s4, %s310
        $region40: #{tpu_custom_call.1} parent=35 // pred_fallthru
          _
        // Predicated region
        $region41: #{tpu_custom_call.1} parent=35 // pred_check
          %p312 = pneg %p132
        $region42: #{tpu_custom_call.1} parent=35 // pred_check_branch
          %314 = sbr.rel (%p312) target = $region44
        $region43: #{tpu_custom_call.1} parent=35 // pred_region
          %p315 = scmp.lt.s32.totalorder %s35, 1
          %s316 = scalar_select %p315, %s35, 1
          %p317 = scmp.lt.s32.totalorder %s36, 0
          %s318 = scalar_select %p317, %s36, 0
          %s319 = smul.addr %s318, 2
          %s320 = smul.addr %s316, 2
          %s321 = sadd.s32 %s319, %s320
          %s322 = smul.addr %s321, 8
          %s323 = scalar_lea.vmem %s5, %s322
        $region44: #{tpu_custom_call.1} parent=35 // pred_fallthru
          _
      $region36: #{tpu_custom_call.1} parent=5 // pred_fallthru
        _
      %p324 = scmp.le.s32.totalorder 1, %s28
      %p325 = scmp.lt.s32.totalorder %s28, 3
      %p326 = pnand %p324, %p325
      %p327 = pneg %p326
      // Predicated region
      $region45: #{tpu_custom_call.1} parent=5 // pred_check
        _
      $region46: #{tpu_custom_call.1} parent=5 // pred_check_branch
        %329 = sbr.rel (%p326) target = $region48
      $region47: #{tpu_custom_call.1} parent=5 // pred_region
        %s330 = ssub.s32 %s28, 1
        // Predicated region
        $region49: #{tpu_custom_call.1} parent=47 // pred_check
          %p331 = pneg %p61
        $region50: #{tpu_custom_call.1} parent=47 // pred_check_branch
          %333 = sbr.rel (%p331) target = $region52
        $region51: #{tpu_custom_call.1} parent=47 // pred_region
          %335 = dma.done [#allocation7], 32
        $region52: #{tpu_custom_call.1} parent=47 // pred_fallthru
          _
        // Predicated region
        $region53: #{tpu_custom_call.1} parent=47 // pred_check
          %p336 = pneg %p82
        $region54: #{tpu_custom_call.1} parent=47 // pred_check_branch
          %338 = sbr.rel (%p336) target = $region56
        $region55: #{tpu_custom_call.1} parent=47 // pred_region
          %340 = dma.done [#allocation10], 32
        $region56: #{tpu_custom_call.1} parent=47 // pred_fallthru
          _
        // Predicated region
        $region57: #{tpu_custom_call.1} parent=47 // pred_check
          %p341 = pneg %p164
        $region58: #{tpu_custom_call.1} parent=47 // pred_check_branch
          %343 = sbr.rel (%p341) target = $region60
        $region59: #{tpu_custom_call.1} parent=47 // pred_region
          %345 = dma.done [#allocation10], 256
        $region60: #{tpu_custom_call.1} parent=47 // pred_fallthru
          _
        %p346 = pneg %p61
        %p347 = pneg %p58
        %p348 = pneg %p82
        %p349 = pneg %p79
        %p350 = scmp.lt.s32.totalorder %s37, 1
        %s351 = scalar_select %p350, %s37, 1
        %p352 = scmp.lt.s32.totalorder %s38, 0
        %s353 = scalar_select %p352, %s38, 0
        %s354 = smul.addr %s353, 2
        %s355 = smul.addr %s351, 2
        %s356 = sadd.s32 %s354, %s355
        %s357 = smul.addr %s356, 8
        %s358 = scalar_lea.vmem %s4, %s357
        %p359 = pneg %p110
        %p360 = pneg %p107
        %p361 = scmp.lt.s32.totalorder %s37, 1
        %s362 = scalar_select %p361, %s37, 1
        %p363 = scmp.lt.s32.totalorder %s38, 0
        %s364 = scalar_select %p363, %s38, 0
        %s365 = smul.addr %s364, 2
        %s366 = smul.addr %s362, 2
        %s367 = sadd.s32 %s365, %s366
        %s368 = smul.addr %s367, 8
        %s369 = scalar_lea.vmem %s5, %s368
        %p370 = pneg %p138
        %p371 = pneg %p135
        %p372 = pneg %p164
        %p373 = pneg %p161
        %p374 = pneg %p185
        %p375 = pneg %p182
        %p376 = pneg %p206
        %p377 = pneg %p203
        %p378 = pneg %p234
        %p379 = pneg %p231
        %s380 = sand.u32 %s221, 1
        %s381 = scalar_lea.sflag [#allocation8], %s380
        %s382 = sand.u32 %s221, 1
        %s383 = smul.addr %s382, 16
        %s384 = scalar_lea.vmem [#allocation12], %s383
        %p385 = scmp.lt.s32.totalorder %s37, 1
        %s386 = scalar_select %p385, %s37, 1
        %p387 = scmp.lt.s32.totalorder %s38, 0
        %s388 = scalar_select %p387, %s38, 0
        %s389 = smul.addr %s388, 2
        %s390 = smul.addr %s386, 2
        %s391 = sadd.s32 %s389, %s390
        %s392 = smul.addr %s391, 8
        %s393 = scalar_lea.vmem %s4, %s392
        %p394 = scmp.lt.s32.totalorder %s37, 1
        %s395 = scalar_select %p394, %s37, 1
        %p396 = scmp.lt.s32.totalorder %s38, 0
        %s397 = scalar_select %p396, %s38, 0
        %s398 = smul.addr %s397, 2
        %s399 = smul.addr %s395, 2
        %s400 = sadd.s32 %s398, %s399
        %s401 = smul.addr %s400, 8
        %s402 = scalar_lea.vmem %s5, %s401
        %s403 = smul.u32 2, %s38
        %s404 = smul.u32 2, %s38
        %s405 = smul.u32 %s38, 16
        %s406 = sshra.s32 %s405, 7
        %s407 = sand.u32 %s405, 127
        %s408 = sadd.s32 %s406, %s37
        %s409 = smul.u32 %s408, 128
        %s410 = sshra.s32 %s405, 7
        %s411 = sand.u32 %s405, 127
        %s412 = sadd.s32 %s409, %s411
        %s413 = sld [smem:[#allocation5 + %s412]]
        %p414 = scmp.gt.s32.totalorder %s413, 0
        %s415 = scalar_select %p414, %s413, 0
        %p416 = scmp.lt.s32.totalorder %s415, 63
        %s417 = scalar_select %p416, %s415, 63
        %s418 = scalar_lea.vmem %s1, %s417
        // Predicated region
        $region61: #{tpu_custom_call.1} parent=47 // pred_check
          _
        $region62: #{tpu_custom_call.1} parent=47 // pred_check_branch
          %420 = sbr.rel target = $region64
        $region63: #{tpu_custom_call.1} parent=47 // pred_region
          // Predicated region
          $region76: #{tpu_custom_call.1} parent=63 // pred_check
            _
          $region77: #{tpu_custom_call.1} parent=63 // pred_check_branch
            %436 = sbr.rel (0) target = $region79
          $region78: #{tpu_custom_call.1} parent=63 // pred_region
            %s438 = ssub.s32 2, 1
            loop: start=0, step=1, limit=1
            $region80: #{tpu_custom_call.1} parent=78 // loop_pre_header
              _
            $region81: #{tpu_custom_call.1} parent=78 // loop_header
              %s440 = sphi 0, %s444
              %p441 = scmp.ge.s32.totalorder %s440, 1
              %s445 = sphi %s418, %s418
              %s446 = sphi [#allocation2], [#allocation2]
            $region82: #{tpu_custom_call.1} parent=78 // loop_header_branch
              %443 = sbr.rel (%p441) target = $region86
            $region83: #{tpu_custom_call.1} parent=78 // loop_body
              %v447 = vld [vmem:[%s445] sm:%s438]
              %448 = vst [vmem:[%s446] sm:%s438] %v447
            $region84: #{tpu_custom_call.1} parent=78 // loop_footer
              %s444 = sadd.s32 1, %s440
            $region85: #{tpu_custom_call.1} parent=78 // loop_footer_branch
              %439 = sbr.rel target = $region81
            $region86: #{tpu_custom_call.1} parent=78 // loop_exit
              _
          $region79: #{tpu_custom_call.1} parent=63 // pred_fallthru
            _
        $region64: #{tpu_custom_call.1} parent=47 // pred_fallthru
          _
        // Predicated region
        $region65: #{tpu_custom_call.1} parent=47 // pred_check
          _
        $region66: #{tpu_custom_call.1} parent=47 // pred_check_branch
          %422 = sbr.rel (0) target = $region68
        $region67: #{tpu_custom_call.1} parent=47 // pred_region
          %s424 = ssub.s32 2, 1
          loop: start=0, step=1, limit=1
          $region69: #{tpu_custom_call.1} parent=67 // loop_pre_header
            _
          $region70: #{tpu_custom_call.1} parent=67 // loop_header
            %s426 = sphi 0, %s430
            %p427 = scmp.ge.s32.totalorder %s426, 1
            %s431 = sphi %s418, %s418
            %s432 = sphi [#allocation2], [#allocation2]
          $region71: #{tpu_custom_call.1} parent=67 // loop_header_branch
            %429 = sbr.rel (%p427) target = $region75
          $region72: #{tpu_custom_call.1} parent=67 // loop_body
            %v433 = vld [vmem:[%s431] sm:%s424]
            %434 = vst [vmem:[%s432] sm:%s424] %v433
          $region73: #{tpu_custom_call.1} parent=67 // loop_footer
            %s430 = sadd.s32 1, %s426
          $region74: #{tpu_custom_call.1} parent=67 // loop_footer_branch
            %425 = sbr.rel target = $region70
          $region75: #{tpu_custom_call.1} parent=67 // loop_exit
            _
        $region68: #{tpu_custom_call.1} parent=47 // pred_fallthru
          _
        // Predicated region
        $region87: #{tpu_custom_call.1} parent=47 // pred_check
          _
        $region88: #{tpu_custom_call.1} parent=47 // pred_check_branch
          %451 = sbr.rel (0) target = $region90
        $region89: #{tpu_custom_call.1} parent=47 // pred_region
          %452 = vsyncadd [#allocation3], 16
        $region90: #{tpu_custom_call.1} parent=47 // pred_fallthru
          _
        %s453 = sadd.s32 %s405, 1
        %s454 = sshra.s32 %s453, 7
        %s455 = sand.u32 %s453, 127
        %s456 = sadd.s32 %s454, %s37
        %s457 = smul.u32 %s456, 128
        %s458 = sshra.s32 %s453, 7
        %s459 = sand.u32 %s453, 127
        %s460 = sadd.s32 %s457, %s459
        %s461 = sld [smem:[#allocation5 + %s460]]
        %p462 = scmp.gt.s32.totalorder %s461, 0
        %s463 = scalar_select %p462, %s461, 0
        %p464 = scmp.lt.s32.totalorder %s463, 63
        %s465 = scalar_select %p464, %s463, 63
        %s466 = scalar_lea.vmem %s1, %s465
        %s467 = scalar_lea.vmem [#allocation2], 1
        %s468 = scalar_lea.sflag [#allocation3], 1
        // Predicated region
        $region91: #{tpu_custom_call.1} parent=47 // pred_check
          _
        $region92: #{tpu_custom_call.1} parent=47 // pred_check_branch
          %470 = sbr.rel target = $region94
        $region93: #{tpu_custom_call.1} parent=47 // pred_region
          // Predicated region
          $region106: #{tpu_custom_call.1} parent=93 // pred_check
            _
          $region107: #{tpu_custom_call.1} parent=93 // pred_check_branch
            %486 = sbr.rel (0) target = $region109
          $region108: #{tpu_custom_call.1} parent=93 // pred_region
            %s488 = ssub.s32 2, 1
            loop: start=0, step=1, limit=1
            $region110: #{tpu_custom_call.1} parent=108 // loop_pre_header
              _
            $region111: #{tpu_custom_call.1} parent=108 // loop_header
              %s490 = sphi 0, %s494
              %p491 = scmp.ge.s32.totalorder %s490, 1
              %s495 = sphi %s466, %s466
              %s496 = sphi %s467, %s467
            $region112: #{tpu_custom_call.1} parent=108 // loop_header_branch
              %493 = sbr.rel (%p491) target = $region116
            $region113: #{tpu_custom_call.1} parent=108 // loop_body
              %v497 = vld [vmem:[%s495] sm:%s488]
              %498 = vst [vmem:[%s496] sm:%s488] %v497
            $region114: #{tpu_custom_call.1} parent=108 // loop_footer
              %s494 = sadd.s32 1, %s490
            $region115: #{tpu_custom_call.1} parent=108 // loop_footer_branch
              %489 = sbr.rel target = $region111
            $region116: #{tpu_custom_call.1} parent=108 // loop_exit
              _
          $region109: #{tpu_custom_call.1} parent=93 // pred_fallthru
            _
        $region94: #{tpu_custom_call.1} parent=47 // pred_fallthru
          _
        // Predicated region
        $region95: #{tpu_custom_call.1} parent=47 // pred_check
          _
        $region96: #{tpu_custom_call.1} parent=47 // pred_check_branch
          %472 = sbr.rel (0) target = $region98
        $region97: #{tpu_custom_call.1} parent=47 // pred_region
          %s474 = ssub.s32 2, 1
          loop: start=0, step=1, limit=1
          $region99: #{tpu_custom_call.1} parent=97 // loop_pre_header
            _
          $region100: #{tpu_custom_call.1} parent=97 // loop_header
            %s476 = sphi 0, %s480
            %p477 = scmp.ge.s32.totalorder %s476, 1
            %s481 = sphi %s466, %s466
            %s482 = sphi %s467, %s467
          $region101: #{tpu_custom_call.1} parent=97 // loop_header_branch
            %479 = sbr.rel (%p477) target = $region105
          $region102: #{tpu_custom_call.1} parent=97 // loop_body
            %v483 = vld [vmem:[%s481] sm:%s474]
            %484 = vst [vmem:[%s482] sm:%s474] %v483
          $region103: #{tpu_custom_call.1} parent=97 // loop_footer
            %s480 = sadd.s32 1, %s476
          $region104: #{tpu_custom_call.1} parent=97 // loop_footer_branch
            %475 = sbr.rel target = $region100
          $region105: #{tpu_custom_call.1} parent=97 // loop_exit
            _
        $region98: #{tpu_custom_call.1} parent=47 // pred_fallthru
          _
        // Predicated region
        $region117: #{tpu_custom_call.1} parent=47 // pred_check
          _
        $region118: #{tpu_custom_call.1} parent=47 // pred_check_branch
          %501 = sbr.rel (0) target = $region120
        $region119: #{tpu_custom_call.1} parent=47 // pred_region
          %502 = vsyncadd %s468, 16
        $region120: #{tpu_custom_call.1} parent=47 // pred_fallthru
          _
        %s503 = sadd.s32 %s405, 2
        %s504 = sshra.s32 %s503, 7
        %s505 = sand.u32 %s503, 127
        %s506 = sadd.s32 %s504, %s37
        %s507 = smul.u32 %s506, 128
        %s508 = sshra.s32 %s503, 7
        %s509 = sand.u32 %s503, 127
        %s510 = sadd.s32 %s507, %s509
        %s511 = sld [smem:[#allocation5 + %s510]]
        %p512 = scmp.gt.s32.totalorder %s511, 0
        %s513 = scalar_select %p512, %s511, 0
        %p514 = scmp.lt.s32.totalorder %s513, 63
        %s515 = scalar_select %p514, %s513, 63
        %s516 = scalar_lea.vmem %s1, %s515
        %s517 = scalar_lea.vmem [#allocation2], 2
        %s518 = scalar_lea.sflag [#allocation3], 2
        // Predicated region
        $region121: #{tpu_custom_call.1} parent=47 // pred_check
          _
        $region122: #{tpu_custom_call.1} parent=47 // pred_check_branch
          %520 = sbr.rel target = $region124
        $region123: #{tpu_custom_call.1} parent=47 // pred_region
          // Predicated region
          $region136: #{tpu_custom_call.1} parent=123 // pred_check
            _
          $region137: #{tpu_custom_call.1} parent=123 // pred_check_branch
            %536 = sbr.rel (0) target = $region139
          $region138: #{tpu_custom_call.1} parent=123 // pred_region
            %s538 = ssub.s32 2, 1
            loop: start=0, step=1, limit=1
            $region140: #{tpu_custom_call.1} parent=138 // loop_pre_header
              _
            $region141: #{tpu_custom_call.1} parent=138 // loop_header
              %s540 = sphi 0, %s544
              %p541 = scmp.ge.s32.totalorder %s540, 1
              %s545 = sphi %s516, %s516
              %s546 = sphi %s517, %s517
            $region142: #{tpu_custom_call.1} parent=138 // loop_header_branch
              %543 = sbr.rel (%p541) target = $region146
            $region143: #{tpu_custom_call.1} parent=138 // loop_body
              %v547 = vld [vmem:[%s545] sm:%s538]
              %548 = vst [vmem:[%s546] sm:%s538] %v547
            $region144: #{tpu_custom_call.1} parent=138 // loop_footer
              %s544 = sadd.s32 1, %s540
            $region145: #{tpu_custom_call.1} parent=138 // loop_footer_branch
              %539 = sbr.rel target = $region141
            $region146: #{tpu_custom_call.1} parent=138 // loop_exit
              _
          $region139: #{tpu_custom_call.1} parent=123 // pred_fallthru
            _
        $region124: #{tpu_custom_call.1} parent=47 // pred_fallthru
          _
        // Predicated region
        $region125: #{tpu_custom_call.1} parent=47 // pred_check
          _
        $region126: #{tpu_custom_call.1} parent=47 // pred_check_branch
          %522 = sbr.rel (0) target = $region128
        $region127: #{tpu_custom_call.1} parent=47 // pred_region
          %s524 = ssub.s32 2, 1
          loop: start=0, step=1, limit=1
          $region129: #{tpu_custom_call.1} parent=127 // loop_pre_header
            _
          $region130: #{tpu_custom_call.1} parent=127 // loop_header
            %s526 = sphi 0, %s530
            %p527 = scmp.ge.s32.totalorder %s526, 1
            %s531 = sphi %s516, %s516
            %s532 = sphi %s517, %s517
          $region131: #{tpu_custom_call.1} parent=127 // loop_header_branch
            %529 = sbr.rel (%p527) target = $region135
          $region132: #{tpu_custom_call.1} parent=127 // loop_body
            %v533 = vld [vmem:[%s531] sm:%s524]
            %534 = vst [vmem:[%s532] sm:%s524] %v533
          $region133: #{tpu_custom_call.1} parent=127 // loop_footer
            %s530 = sadd.s32 1, %s526
          $region134: #{tpu_custom_call.1} parent=127 // loop_footer_branch
            %525 = sbr.rel target = $region130
          $region135: #{tpu_custom_call.1} parent=127 // loop_exit
            _
        $region128: #{tpu_custom_call.1} parent=47 // pred_fallthru
          _
        // Predicated region
        $region147: #{tpu_custom_call.1} parent=47 // pred_check
          _
        $region148: #{tpu_custom_call.1} parent=47 // pred_check_branch
          %551 = sbr.rel (0) target = $region150
        $region149: #{tpu_custom_call.1} parent=47 // pred_region
          %552 = vsyncadd %s518, 16
        $region150: #{tpu_custom_call.1} parent=47 // pred_fallthru
          _
        %s553 = sadd.s32 %s405, 3
        %s554 = sshra.s32 %s553, 7
        %s555 = sand.u32 %s553, 127
        %s556 = sadd.s32 %s554, %s37
        %s557 = smul.u32 %s556, 128
        %s558 = sshra.s32 %s553, 7
        %s559 = sand.u32 %s553, 127
        %s560 = sadd.s32 %s557, %s559
        %s561 = sld [smem:[#allocation5 + %s560]]
        %p562 = scmp.gt.s32.totalorder %s561, 0
        %s563 = scalar_select %p562, %s561, 0
        %p564 = scmp.lt.s32.totalorder %s563, 63
        %s565 = scalar_select %p564, %s563, 63
        %s566 = scalar_lea.vmem %s1, %s565
        %s567 = scalar_lea.vmem [#allocation2], 3
        %s568 = scalar_lea.sflag [#allocation3], 3
        // Predicated region
        $region151: #{tpu_custom_call.1} parent=47 // pred_check
          _
        $region152: #{tpu_custom_call.1} parent=47 // pred_check_branch
          %570 = sbr.rel target = $region154
        $region153: #{tpu_custom_call.1} parent=47 // pred_region
          // Predicated region
          $region166: #{tpu_custom_call.1} parent=153 // pred_check
            _
          $region167: #{tpu_custom_call.1} parent=153 // pred_check_branch
            %586 = sbr.rel (0) target = $region169
          $region168: #{tpu_custom_call.1} parent=153 // pred_region
            %s588 = ssub.s32 2, 1
            loop: start=0, step=1, limit=1
            $region170: #{tpu_custom_call.1} parent=168 // loop_pre_header
              _
            $region171: #{tpu_custom_call.1} parent=168 // loop_header
              %s590 = sphi 0, %s594
              %p591 = scmp.ge.s32.totalorder %s590, 1
              %s595 = sphi %s566, %s566
              %s596 = sphi %s567, %s567
            $region172: #{tpu_custom_call.1} parent=168 // loop_header_branch
              %593 = sbr.rel (%p591) target = $region176
            $region173: #{tpu_custom_call.1} parent=168 // loop_body
              %v597 = vld [vmem:[%s595] sm:%s588]
              %598 = vst [vmem:[%s596] sm:%s588] %v597
            $region174: #{tpu_custom_call.1} parent=168 // loop_footer
              %s594 = sadd.s32 1, %s590
            $region175: #{tpu_custom_call.1} parent=168 // loop_footer_branch
              %589 = sbr.rel target = $region171
            $region176: #{tpu_custom_call.1} parent=168 // loop_exit
              _
          $region169: #{tpu_custom_call.1} parent=153 // pred_fallthru
            _
        $region154: #{tpu_custom_call.1} parent=47 // pred_fallthru
          _
        // Predicated region
        $region155: #{tpu_custom_call.1} parent=47 // pred_check
          _
        $region156: #{tpu_custom_call.1} parent=47 // pred_check_branch
          %572 = sbr.rel (0) target = $region158
        $region157: #{tpu_custom_call.1} parent=47 // pred_region
          %s574 = ssub.s32 2, 1
          loop: start=0, step=1, limit=1
          $region159: #{tpu_custom_call.1} parent=157 // loop_pre_header
            _
          $region160: #{tpu_custom_call.1} parent=157 // loop_header
            %s576 = sphi 0, %s580
            %p577 = scmp.ge.s32.totalorder %s576, 1
            %s581 = sphi %s566, %s566
            %s582 = sphi %s567, %s567
          $region161: #{tpu_custom_call.1} parent=157 // loop_header_branch
            %579 = sbr.rel (%p577) target = $region165
          $region162: #{tpu_custom_call.1} parent=157 // loop_body
            %v583 = vld [vmem:[%s581] sm:%s574]
            %584 = vst [vmem:[%s582] sm:%s574] %v583
          $region163: #{tpu_custom_call.1} parent=157 // loop_footer
            %s580 = sadd.s32 1, %s576
          $region164: #{tpu_custom_call.1} parent=157 // loop_footer_branch
            %575 = sbr.rel target = $region160
          $region165: #{tpu_custom_call.1} parent=157 // loop_exit
            _
        $region158: #{tpu_custom_call.1} parent=47 // pred_fallthru
          _
        // Predicated region
        $region177: #{tpu_custom_call.1} parent=47 // pred_check
          _
        $region178: #{tpu_custom_call.1} parent=47 // pred_check_branch
          %601 = sbr.rel (0) target = $region180
        $region179: #{tpu_custom_call.1} parent=47 // pred_region
          %602 = vsyncadd %s568, 16
        $region180: #{tpu_custom_call.1} parent=47 // pred_fallthru
          _
        %s603 = sadd.s32 %s405, 4
        %s604 = sshra.s32 %s603, 7
        %s605 = sand.u32 %s603, 127
        %s606 = sadd.s32 %s604, %s37
        %s607 = smul.u32 %s606, 128
        %s608 = sshra.s32 %s603, 7
        %s609 = sand.u32 %s603, 127
        %s610 = sadd.s32 %s607, %s609
        %s611 = sld [smem:[#allocation5 + %s610]]
        %p612 = scmp.gt.s32.totalorder %s611, 0
        %s613 = scalar_select %p612, %s611, 0
        %p614 = scmp.lt.s32.totalorder %s613, 63
        %s615 = scalar_select %p614, %s613, 63
        %s616 = scalar_lea.vmem %s1, %s615
        %s617 = scalar_lea.vmem [#allocation2], 4
        %s618 = scalar_lea.sflag [#allocation3], 4
        // Predicated region
        $region181: #{tpu_custom_call.1} parent=47 // pred_check
          _
        $region182: #{tpu_custom_call.1} parent=47 // pred_check_branch
          %620 = sbr.rel target = $region184
        $region183: #{tpu_custom_call.1} parent=47 // pred_region
          // Predicated region
          $region196: #{tpu_custom_call.1} parent=183 // pred_check
            _
          $region197: #{tpu_custom_call.1} parent=183 // pred_check_branch
            %636 = sbr.rel (0) target = $region199
          $region198: #{tpu_custom_call.1} parent=183 // pred_region
            %s638 = ssub.s32 2, 1
            loop: start=0, step=1, limit=1
            $region200: #{tpu_custom_call.1} parent=198 // loop_pre_header
              _
            $region201: #{tpu_custom_call.1} parent=198 // loop_header
              %s640 = sphi 0, %s644
              %p641 = scmp.ge.s32.totalorder %s640, 1
              %s645 = sphi %s616, %s616
              %s646 = sphi %s617, %s617
            $region202: #{tpu_custom_call.1} parent=198 // loop_header_branch
              %643 = sbr.rel (%p641) target = $region206
            $region203: #{tpu_custom_call.1} parent=198 // loop_body
              %v647 = vld [vmem:[%s645] sm:%s638]
              %648 = vst [vmem:[%s646] sm:%s638] %v647
            $region204: #{tpu_custom_call.1} parent=198 // loop_footer
              %s644 = sadd.s32 1, %s640
            $region205: #{tpu_custom_call.1} parent=198 // loop_footer_branch
              %639 = sbr.rel target = $region201
            $region206: #{tpu_custom_call.1} parent=198 // loop_exit
              _
          $region199: #{tpu_custom_call.1} parent=183 // pred_fallthru
            _
        $region184: #{tpu_custom_call.1} parent=47 // pred_fallthru
          _
        // Predicated region
        $region185: #{tpu_custom_call.1} parent=47 // pred_check
          _
        $region186: #{tpu_custom_call.1} parent=47 // pred_check_branch
          %622 = sbr.rel (0) target = $region188
        $region187: #{tpu_custom_call.1} parent=47 // pred_region
          %s624 = ssub.s32 2, 1
          loop: start=0, step=1, limit=1
          $region189: #{tpu_custom_call.1} parent=187 // loop_pre_header
            _
          $region190: #{tpu_custom_call.1} parent=187 // loop_header
            %s626 = sphi 0, %s630
            %p627 = scmp.ge.s32.totalorder %s626, 1
            %s631 = sphi %s616, %s616
            %s632 = sphi %s617, %s617
          $region191: #{tpu_custom_call.1} parent=187 // loop_header_branch
            %629 = sbr.rel (%p627) target = $region195
          $region192: #{tpu_custom_call.1} parent=187 // loop_body
            %v633 = vld [vmem:[%s631] sm:%s624]
            %634 = vst [vmem:[%s632] sm:%s624] %v633
          $region193: #{tpu_custom_call.1} parent=187 // loop_footer
            %s630 = sadd.s32 1, %s626
          $region194: #{tpu_custom_call.1} parent=187 // loop_footer_branch
            %625 = sbr.rel target = $region190
          $region195: #{tpu_custom_call.1} parent=187 // loop_exit
            _
        $region188: #{tpu_custom_call.1} parent=47 // pred_fallthru
          _
        // Predicated region
        $region207: #{tpu_custom_call.1} parent=47 // pred_check
          _
        $region208: #{tpu_custom_call.1} parent=47 // pred_check_branch
          %651 = sbr.rel (0) target = $region210
        $region209: #{tpu_custom_call.1} parent=47 // pred_region
          %652 = vsyncadd %s618, 16
        $region210: #{tpu_custom_call.1} parent=47 // pred_fallthru
          _
        %s653 = sadd.s32 %s405, 5
        %s654 = sshra.s32 %s653, 7
        %s655 = sand.u32 %s653, 127
        %s656 = sadd.s32 %s654, %s37
        %s657 = smul.u32 %s656, 128
        %s658 = sshra.s32 %s653, 7
        %s659 = sand.u32 %s653, 127
        %s660 = sadd.s32 %s657, %s659
        %s661 = sld [smem:[#allocation5 + %s660]]
        %p662 = scmp.gt.s32.totalorder %s661, 0
        %s663 = scalar_select %p662, %s661, 0
        %p664 = scmp.lt.s32.totalorder %s663, 63
        %s665 = scalar_select %p664, %s663, 63
        %s666 = scalar_lea.vmem %s1, %s665
        %s667 = scalar_lea.vmem [#allocation2], 5
        %s668 = scalar_lea.sflag [#allocation3], 5
        // Predicated region
        $region211: #{tpu_custom_call.1} parent=47 // pred_check
          _
        $region212: #{tpu_custom_call.1} parent=47 // pred_check_branch
          %670 = sbr.rel target = $region214
        $region213: #{tpu_custom_call.1} parent=47 // pred_region
          // Predicated region
          $region226: #{tpu_custom_call.1} parent=213 // pred_check
            _
          $region227: #{tpu_custom_call.1} parent=213 // pred_check_branch
            %686 = sbr.rel (0) target = $region229
          $region228: #{tpu_custom_call.1} parent=213 // pred_region
            %s688 = ssub.s32 2, 1
            loop: start=0, step=1, limit=1
            $region230: #{tpu_custom_call.1} parent=228 // loop_pre_header
              _
            $region231: #{tpu_custom_call.1} parent=228 // loop_header
              %s690 = sphi 0, %s694
              %p691 = scmp.ge.s32.totalorder %s690, 1
              %s695 = sphi %s666, %s666
              %s696 = sphi %s667, %s667
            $region232: #{tpu_custom_call.1} parent=228 // loop_header_branch
              %693 = sbr.rel (%p691) target = $region236
            $region233: #{tpu_custom_call.1} parent=228 // loop_body
              %v697 = vld [vmem:[%s695] sm:%s688]
              %698 = vst [vmem:[%s696] sm:%s688] %v697
            $region234: #{tpu_custom_call.1} parent=228 // loop_footer
              %s694 = sadd.s32 1, %s690
            $region235: #{tpu_custom_call.1} parent=228 // loop_footer_branch
              %689 = sbr.rel target = $region231
            $region236: #{tpu_custom_call.1} parent=228 // loop_exit
              _
          $region229: #{tpu_custom_call.1} parent=213 // pred_fallthru
            _
        $region214: #{tpu_custom_call.1} parent=47 // pred_fallthru
          _
        // Predicated region
        $region215: #{tpu_custom_call.1} parent=47 // pred_check
          _
        $region216: #{tpu_custom_call.1} parent=47 // pred_check_branch
          %672 = sbr.rel (0) target = $region218
        $region217: #{tpu_custom_call.1} parent=47 // pred_region
          %s674 = ssub.s32 2, 1
          loop: start=0, step=1, limit=1
          $region219: #{tpu_custom_call.1} parent=217 // loop_pre_header
            _
          $region220: #{tpu_custom_call.1} parent=217 // loop_header
            %s676 = sphi 0, %s680
            %p677 = scmp.ge.s32.totalorder %s676, 1
            %s681 = sphi %s666, %s666
            %s682 = sphi %s667, %s667
          $region221: #{tpu_custom_call.1} parent=217 // loop_header_branch
            %679 = sbr.rel (%p677) target = $region225
          $region222: #{tpu_custom_call.1} parent=217 // loop_body
            %v683 = vld [vmem:[%s681] sm:%s674]
            %684 = vst [vmem:[%s682] sm:%s674] %v683
          $region223: #{tpu_custom_call.1} parent=217 // loop_footer
            %s680 = sadd.s32 1, %s676
          $region224: #{tpu_custom_call.1} parent=217 // loop_footer_branch
            %675 = sbr.rel target = $region220
          $region225: #{tpu_custom_call.1} parent=217 // loop_exit
            _
        $region218: #{tpu_custom_call.1} parent=47 // pred_fallthru
          _
        // Predicated region
        $region237: #{tpu_custom_call.1} parent=47 // pred_check
          _
        $region238: #{tpu_custom_call.1} parent=47 // pred_check_branch
          %701 = sbr.rel (0) target = $region240
        $region239: #{tpu_custom_call.1} parent=47 // pred_region
          %702 = vsyncadd %s668, 16
        $region240: #{tpu_custom_call.1} parent=47 // pred_fallthru
          _
        %s703 = sadd.s32 %s405, 6
        %s704 = sshra.s32 %s703, 7
        %s705 = sand.u32 %s703, 127
        %s706 = sadd.s32 %s704, %s37
        %s707 = smul.u32 %s706, 128
        %s708 = sshra.s32 %s703, 7
        %s709 = sand.u32 %s703, 127
        %s710 = sadd.s32 %s707, %s709
        %s711 = sld [smem:[#allocation5 + %s710]]
        %p712 = scmp.gt.s32.totalorder %s711, 0
        %s713 = scalar_select %p712, %s711, 0
        %p714 = scmp.lt.s32.totalorder %s713, 63
        %s715 = scalar_select %p714, %s713, 63
        %s716 = scalar_lea.vmem %s1, %s715
        %s717 = scalar_lea.vmem [#allocation2], 6
        %s718 = scalar_lea.sflag [#allocation3], 6
        // Predicated region
        $region241: #{tpu_custom_call.1} parent=47 // pred_check
          _
        $region242: #{tpu_custom_call.1} parent=47 // pred_check_branch
          %720 = sbr.rel target = $region244
        $region243: #{tpu_custom_call.1} parent=47 // pred_region
          // Predicated region
          $region256: #{tpu_custom_call.1} parent=243 // pred_check
            _
          $region257: #{tpu_custom_call.1} parent=243 // pred_check_branch
            %736 = sbr.rel (0) target = $region259
          $region258: #{tpu_custom_call.1} parent=243 // pred_region
            %s738 = ssub.s32 2, 1
            loop: start=0, step=1, limit=1
            $region260: #{tpu_custom_call.1} parent=258 // loop_pre_header
              _
            $region261: #{tpu_custom_call.1} parent=258 // loop_header
              %s740 = sphi 0, %s744
              %p741 = scmp.ge.s32.totalorder %s740, 1
              %s745 = sphi %s716, %s716
              %s746 = sphi %s717, %s717
            $region262: #{tpu_custom_call.1} parent=258 // loop_header_branch
              %743 = sbr.rel (%p741) target = $region266
            $region263: #{tpu_custom_call.1} parent=258 // loop_body
              %v747 = vld [vmem:[%s745] sm:%s738]
              %748 = vst [vmem:[%s746] sm:%s738] %v747
            $region264: #{tpu_custom_call.1} parent=258 // loop_footer
              %s744 = sadd.s32 1, %s740
            $region265: #{tpu_custom_call.1} parent=258 // loop_footer_branch
              %739 = sbr.rel target = $region261
            $region266: #{tpu_custom_call.1} parent=258 // loop_exit
              _
          $region259: #{tpu_custom_call.1} parent=243 // pred_fallthru
            _
        $region244: #{tpu_custom_call.1} parent=47 // pred_fallthru
          _
        // Predicated region
        $region245: #{tpu_custom_call.1} parent=47 // pred_check
          _
        $region246: #{tpu_custom_call.1} parent=47 // pred_check_branch
          %722 = sbr.rel (0) target = $region248
        $region247: #{tpu_custom_call.1} parent=47 // pred_region
          %s724 = ssub.s32 2, 1
          loop: start=0, step=1, limit=1
          $region249: #{tpu_custom_call.1} parent=247 // loop_pre_header
            _
          $region250: #{tpu_custom_call.1} parent=247 // loop_header
            %s726 = sphi 0, %s730
            %p727 = scmp.ge.s32.totalorder %s726, 1
            %s731 = sphi %s716, %s716
            %s732 = sphi %s717, %s717
          $region251: #{tpu_custom_call.1} parent=247 // loop_header_branch
            %729 = sbr.rel (%p727) target = $region255
          $region252: #{tpu_custom_call.1} parent=247 // loop_body
            %v733 = vld [vmem:[%s731] sm:%s724]
            %734 = vst [vmem:[%s732] sm:%s724] %v733
          $region253: #{tpu_custom_call.1} parent=247 // loop_footer
            %s730 = sadd.s32 1, %s726
          $region254: #{tpu_custom_call.1} parent=247 // loop_footer_branch
            %725 = sbr.rel target = $region250
          $region255: #{tpu_custom_call.1} parent=247 // loop_exit
            _
        $region248: #{tpu_custom_call.1} parent=47 // pred_fallthru
          _
        // Predicated region
        $region267: #{tpu_custom_call.1} parent=47 // pred_check
          _
        $region268: #{tpu_custom_call.1} parent=47 // pred_check_branch
          %751 = sbr.rel (0) target = $region270
        $region269: #{tpu_custom_call.1} parent=47 // pred_region
          %752 = vsyncadd %s718, 16
        $region270: #{tpu_custom_call.1} parent=47 // pred_fallthru
          _
        %s753 = sadd.s32 %s405, 7
        %s754 = sshra.s32 %s753, 7
        %s755 = sand.u32 %s753, 127
        %s756 = sadd.s32 %s754, %s37
        %s757 = smul.u32 %s756, 128
        %s758 = sshra.s32 %s753, 7
        %s759 = sand.u32 %s753, 127
        %s760 = sadd.s32 %s757, %s759
        %s761 = sld [smem:[#allocation5 + %s760]]
        %p762 = scmp.gt.s32.totalorder %s761, 0
        %s763 = scalar_select %p762, %s761, 0
        %p764 = scmp.lt.s32.totalorder %s763, 63
        %s765 = scalar_select %p764, %s763, 63
        %s766 = scalar_lea.vmem %s1, %s765
        %s767 = scalar_lea.vmem [#allocation2], 7
        %s768 = scalar_lea.sflag [#allocation3], 7
        // Predicated region
        $region271: #{tpu_custom_call.1} parent=47 // pred_check
          _
        $region272: #{tpu_custom_call.1} parent=47 // pred_check_branch
          %770 = sbr.rel target = $region274
        $region273: #{tpu_custom_call.1} parent=47 // pred_region
          // Predicated region
          $region286: #{tpu_custom_call.1} parent=273 // pred_check
            _
          $region287: #{tpu_custom_call.1} parent=273 // pred_check_branch
            %786 = sbr.rel (0) target = $region289
          $region288: #{tpu_custom_call.1} parent=273 // pred_region
            %s788 = ssub.s32 2, 1
            loop: start=0, step=1, limit=1
            $region290: #{tpu_custom_call.1} parent=288 // loop_pre_header
              _
            $region291: #{tpu_custom_call.1} parent=288 // loop_header
              %s790 = sphi 0, %s794
              %p791 = scmp.ge.s32.totalorder %s790, 1
              %s795 = sphi %s766, %s766
              %s796 = sphi %s767, %s767
            $region292: #{tpu_custom_call.1} parent=288 // loop_header_branch
              %793 = sbr.rel (%p791) target = $region296
            $region293: #{tpu_custom_call.1} parent=288 // loop_body
              %v797 = vld [vmem:[%s795] sm:%s788]
              %798 = vst [vmem:[%s796] sm:%s788] %v797
            $region294: #{tpu_custom_call.1} parent=288 // loop_footer
              %s794 = sadd.s32 1, %s790
            $region295: #{tpu_custom_call.1} parent=288 // loop_footer_branch
              %789 = sbr.rel target = $region291
            $region296: #{tpu_custom_call.1} parent=288 // loop_exit
              _
          $region289: #{tpu_custom_call.1} parent=273 // pred_fallthru
            _
        $region274: #{tpu_custom_call.1} parent=47 // pred_fallthru
          _
        // Predicated region
        $region275: #{tpu_custom_call.1} parent=47 // pred_check
          _
        $region276: #{tpu_custom_call.1} parent=47 // pred_check_branch
          %772 = sbr.rel (0) target = $region278
        $region277: #{tpu_custom_call.1} parent=47 // pred_region
          %s774 = ssub.s32 2, 1
          loop: start=0, step=1, limit=1
          $region279: #{tpu_custom_call.1} parent=277 // loop_pre_header
            _
          $region280: #{tpu_custom_call.1} parent=277 // loop_header
            %s776 = sphi 0, %s780
            %p777 = scmp.ge.s32.totalorder %s776, 1
            %s781 = sphi %s766, %s766
            %s782 = sphi %s767, %s767
          $region281: #{tpu_custom_call.1} parent=277 // loop_header_branch
            %779 = sbr.rel (%p777) target = $region285
          $region282: #{tpu_custom_call.1} parent=277 // loop_body
            %v783 = vld [vmem:[%s781] sm:%s774]
            %784 = vst [vmem:[%s782] sm:%s774] %v783
          $region283: #{tpu_custom_call.1} parent=277 // loop_footer
            %s780 = sadd.s32 1, %s776
          $region284: #{tpu_custom_call.1} parent=277 // loop_footer_branch
            %775 = sbr.rel target = $region280
          $region285: #{tpu_custom_call.1} parent=277 // loop_exit
            _
        $region278: #{tpu_custom_call.1} parent=47 // pred_fallthru
          _
        // Predicated region
        $region297: #{tpu_custom_call.1} parent=47 // pred_check
          _
        $region298: #{tpu_custom_call.1} parent=47 // pred_check_branch
          %801 = sbr.rel (0) target = $region300
        $region299: #{tpu_custom_call.1} parent=47 // pred_region
          %802 = vsyncadd %s768, 16
        $region300: #{tpu_custom_call.1} parent=47 // pred_fallthru
          _
        %s803 = sadd.s32 %s405, 8
        %s804 = sshra.s32 %s803, 7
        %s805 = sand.u32 %s803, 127
        %s806 = sadd.s32 %s804, %s37
        %s807 = smul.u32 %s806, 128
        %s808 = sshra.s32 %s803, 7
        %s809 = sand.u32 %s803, 127
        %s810 = sadd.s32 %s807, %s809
        %s811 = sld [smem:[#allocation5 + %s810]]
        %p812 = scmp.gt.s32.totalorder %s811, 0
        %s813 = scalar_select %p812, %s811, 0
        %p814 = scmp.lt.s32.totalorder %s813, 63
        %s815 = scalar_select %p814, %s813, 63
        %s816 = scalar_lea.vmem %s1, %s815
        %s817 = scalar_lea.vmem [#allocation2], 8
        %s818 = scalar_lea.sflag [#allocation3], 8
        // Predicated region
        $region301: #{tpu_custom_call.1} parent=47 // pred_check
          _
        $region302: #{tpu_custom_call.1} parent=47 // pred_check_branch
          %820 = sbr.rel target = $region304
        $region303: #{tpu_custom_call.1} parent=47 // pred_region
          // Predicated region
          $region316: #{tpu_custom_call.1} parent=303 // pred_check
            _
          $region317: #{tpu_custom_call.1} parent=303 // pred_check_branch
            %836 = sbr.rel (0) target = $region319
          $region318: #{tpu_custom_call.1} parent=303 // pred_region
            %s838 = ssub.s32 2, 1
            loop: start=0, step=1, limit=1
            $region320: #{tpu_custom_call.1} parent=318 // loop_pre_header
              _
            $region321: #{tpu_custom_call.1} parent=318 // loop_header
              %s840 = sphi 0, %s844
              %p841 = scmp.ge.s32.totalorder %s840, 1
              %s845 = sphi %s816, %s816
              %s846 = sphi %s817, %s817
            $region322: #{tpu_custom_call.1} parent=318 // loop_header_branch
              %843 = sbr.rel (%p841) target = $region326
            $region323: #{tpu_custom_call.1} parent=318 // loop_body
              %v847 = vld [vmem:[%s845] sm:%s838]
              %848 = vst [vmem:[%s846] sm:%s838] %v847
            $region324: #{tpu_custom_call.1} parent=318 // loop_footer
              %s844 = sadd.s32 1, %s840
            $region325: #{tpu_custom_call.1} parent=318 // loop_footer_branch
              %839 = sbr.rel target = $region321
            $region326: #{tpu_custom_call.1} parent=318 // loop_exit
              _
          $region319: #{tpu_custom_call.1} parent=303 // pred_fallthru
            _
        $region304: #{tpu_custom_call.1} parent=47 // pred_fallthru
          _
        // Predicated region
        $region305: #{tpu_custom_call.1} parent=47 // pred_check
          _
        $region306: #{tpu_custom_call.1} parent=47 // pred_check_branch
          %822 = sbr.rel (0) target = $region308
        $region307: #{tpu_custom_call.1} parent=47 // pred_region
          %s824 = ssub.s32 2, 1
          loop: start=0, step=1, limit=1
          $region309: #{tpu_custom_call.1} parent=307 // loop_pre_header
            _
          $region310: #{tpu_custom_call.1} parent=307 // loop_header
            %s826 = sphi 0, %s830
            %p827 = scmp.ge.s32.totalorder %s826, 1
            %s831 = sphi %s816, %s816
            %s832 = sphi %s817, %s817
          $region311: #{tpu_custom_call.1} parent=307 // loop_header_branch
            %829 = sbr.rel (%p827) target = $region315
          $region312: #{tpu_custom_call.1} parent=307 // loop_body
            %v833 = vld [vmem:[%s831] sm:%s824]
            %834 = vst [vmem:[%s832] sm:%s824] %v833
          $region313: #{tpu_custom_call.1} parent=307 // loop_footer
            %s830 = sadd.s32 1, %s826
          $region314: #{tpu_custom_call.1} parent=307 // loop_footer_branch
            %825 = sbr.rel target = $region310
          $region315: #{tpu_custom_call.1} parent=307 // loop_exit
            _
        $region308: #{tpu_custom_call.1} parent=47 // pred_fallthru
          _
        // Predicated region
        $region327: #{tpu_custom_call.1} parent=47 // pred_check
          _
        $region328: #{tpu_custom_call.1} parent=47 // pred_check_branch
          %851 = sbr.rel (0) target = $region330
        $region329: #{tpu_custom_call.1} parent=47 // pred_region
          %852 = vsyncadd %s818, 16
        $region330: #{tpu_custom_call.1} parent=47 // pred_fallthru
          _
        %s853 = sadd.s32 %s405, 9
        %s854 = sshra.s32 %s853, 7
        %s855 = sand.u32 %s853, 127
        %s856 = sadd.s32 %s854, %s37
        %s857 = smul.u32 %s856, 128
        %s858 = sshra.s32 %s853, 7
        %s859 = sand.u32 %s853, 127
        %s860 = sadd.s32 %s857, %s859
        %s861 = sld [smem:[#allocation5 + %s860]]
        %p862 = scmp.gt.s32.totalorder %s861, 0
        %s863 = scalar_select %p862, %s861, 0
        %p864 = scmp.lt.s32.totalorder %s863, 63
        %s865 = scalar_select %p864, %s863, 63
        %s866 = scalar_lea.vmem %s1, %s865
        %s867 = scalar_lea.vmem [#allocation2], 9
        %s868 = scalar_lea.sflag [#allocation3], 9
        // Predicated region
        $region331: #{tpu_custom_call.1} parent=47 // pred_check
          _
        $region332: #{tpu_custom_call.1} parent=47 // pred_check_branch
          %870 = sbr.rel target = $region334
        $region333: #{tpu_custom_call.1} parent=47 // pred_region
          // Predicated region
          $region346: #{tpu_custom_call.1} parent=333 // pred_check
            _
          $region347: #{tpu_custom_call.1} parent=333 // pred_check_branch
            %886 = sbr.rel (0) target = $region349
          $region348: #{tpu_custom_call.1} parent=333 // pred_region
            %s888 = ssub.s32 2, 1
            loop: start=0, step=1, limit=1
            $region350: #{tpu_custom_call.1} parent=348 // loop_pre_header
              _
            $region351: #{tpu_custom_call.1} parent=348 // loop_header
              %s890 = sphi 0, %s894
              %p891 = scmp.ge.s32.totalorder %s890, 1
              %s895 = sphi %s866, %s866
              %s896 = sphi %s867, %s867
            $region352: #{tpu_custom_call.1} parent=348 // loop_header_branch
              %893 = sbr.rel (%p891) target = $region356
            $region353: #{tpu_custom_call.1} parent=348 // loop_body
              %v897 = vld [vmem:[%s895] sm:%s888]
              %898 = vst [vmem:[%s896] sm:%s888] %v897
            $region354: #{tpu_custom_call.1} parent=348 // loop_footer
              %s894 = sadd.s32 1, %s890
            $region355: #{tpu_custom_call.1} parent=348 // loop_footer_branch
              %889 = sbr.rel target = $region351
            $region356: #{tpu_custom_call.1} parent=348 // loop_exit
              _
          $region349: #{tpu_custom_call.1} parent=333 // pred_fallthru
            _
        $region334: #{tpu_custom_call.1} parent=47 // pred_fallthru
          _
        // Predicated region
        $region335: #{tpu_custom_call.1} parent=47 // pred_check
          _
        $region336: #{tpu_custom_call.1} parent=47 // pred_check_branch
          %872 = sbr.rel (0) target = $region338
        $region337: #{tpu_custom_call.1} parent=47 // pred_region
          %s874 = ssub.s32 2, 1
          loop: start=0, step=1, limit=1
          $region339: #{tpu_custom_call.1} parent=337 // loop_pre_header
            _
          $region340: #{tpu_custom_call.1} parent=337 // loop_header
            %s876 = sphi 0, %s880
            %p877 = scmp.ge.s32.totalorder %s876, 1
            %s881 = sphi %s866, %s866
            %s882 = sphi %s867, %s867
          $region341: #{tpu_custom_call.1} parent=337 // loop_header_branch
            %879 = sbr.rel (%p877) target = $region345
          $region342: #{tpu_custom_call.1} parent=337 // loop_body
            %v883 = vld [vmem:[%s881] sm:%s874]
            %884 = vst [vmem:[%s882] sm:%s874] %v883
          $region343: #{tpu_custom_call.1} parent=337 // loop_footer
            %s880 = sadd.s32 1, %s876
          $region344: #{tpu_custom_call.1} parent=337 // loop_footer_branch
            %875 = sbr.rel target = $region340
          $region345: #{tpu_custom_call.1} parent=337 // loop_exit
            _
        $region338: #{tpu_custom_call.1} parent=47 // pred_fallthru
          _
        // Predicated region
        $region357: #{tpu_custom_call.1} parent=47 // pred_check
          _
        $region358: #{tpu_custom_call.1} parent=47 // pred_check_branch
          %901 = sbr.rel (0) target = $region360
        $region359: #{tpu_custom_call.1} parent=47 // pred_region
          %902 = vsyncadd %s868, 16
        $region360: #{tpu_custom_call.1} parent=47 // pred_fallthru
          _
        %s903 = sadd.s32 %s405, 10
        %s904 = sshra.s32 %s903, 7
        %s905 = sand.u32 %s903, 127
        %s906 = sadd.s32 %s904, %s37
        %s907 = smul.u32 %s906, 128
        %s908 = sshra.s32 %s903, 7
        %s909 = sand.u32 %s903, 127
        %s910 = sadd.s32 %s907, %s909
        %s911 = sld [smem:[#allocation5 + %s910]]
        %p912 = scmp.gt.s32.totalorder %s911, 0
        %s913 = scalar_select %p912, %s911, 0
        %p914 = scmp.lt.s32.totalorder %s913, 63
        %s915 = scalar_select %p914, %s913, 63
        %s916 = scalar_lea.vmem %s1, %s915
        %s917 = scalar_lea.vmem [#allocation2], 10
        %s918 = scalar_lea.sflag [#allocation3], 10
        // Predicated region
        $region361: #{tpu_custom_call.1} parent=47 // pred_check
          _
        $region362: #{tpu_custom_call.1} parent=47 // pred_check_branch
          %920 = sbr.rel target = $region364
        $region363: #{tpu_custom_call.1} parent=47 // pred_region
          // Predicated region
          $region376: #{tpu_custom_call.1} parent=363 // pred_check
            _
          $region377: #{tpu_custom_call.1} parent=363 // pred_check_branch
            %936 = sbr.rel (0) target = $region379
          $region378: #{tpu_custom_call.1} parent=363 // pred_region
            %s938 = ssub.s32 2, 1
            loop: start=0, step=1, limit=1
            $region380: #{tpu_custom_call.1} parent=378 // loop_pre_header
              _
            $region381: #{tpu_custom_call.1} parent=378 // loop_header
              %s940 = sphi 0, %s944
              %p941 = scmp.ge.s32.totalorder %s940, 1
              %s945 = sphi %s916, %s916
              %s946 = sphi %s917, %s917
            $region382: #{tpu_custom_call.1} parent=378 // loop_header_branch
              %943 = sbr.rel (%p941) target = $region386
            $region383: #{tpu_custom_call.1} parent=378 // loop_body
              %v947 = vld [vmem:[%s945] sm:%s938]
              %948 = vst [vmem:[%s946] sm:%s938] %v947
            $region384: #{tpu_custom_call.1} parent=378 // loop_footer
              %s944 = sadd.s32 1, %s940
            $region385: #{tpu_custom_call.1} parent=378 // loop_footer_branch
              %939 = sbr.rel target = $region381
            $region386: #{tpu_custom_call.1} parent=378 // loop_exit
              _
          $region379: #{tpu_custom_call.1} parent=363 // pred_fallthru
            _
        $region364: #{tpu_custom_call.1} parent=47 // pred_fallthru
          _
        // Predicated region
        $region365: #{tpu_custom_call.1} parent=47 // pred_check
          _
        $region366: #{tpu_custom_call.1} parent=47 // pred_check_branch
          %922 = sbr.rel (0) target = $region368
        $region367: #{tpu_custom_call.1} parent=47 // pred_region
          %s924 = ssub.s32 2, 1
          loop: start=0, step=1, limit=1
          $region369: #{tpu_custom_call.1} parent=367 // loop_pre_header
            _
          $region370: #{tpu_custom_call.1} parent=367 // loop_header
            %s926 = sphi 0, %s930
            %p927 = scmp.ge.s32.totalorder %s926, 1
            %s931 = sphi %s916, %s916
            %s932 = sphi %s917, %s917
          $region371: #{tpu_custom_call.1} parent=367 // loop_header_branch
            %929 = sbr.rel (%p927) target = $region375
          $region372: #{tpu_custom_call.1} parent=367 // loop_body
            %v933 = vld [vmem:[%s931] sm:%s924]
            %934 = vst [vmem:[%s932] sm:%s924] %v933
          $region373: #{tpu_custom_call.1} parent=367 // loop_footer
            %s930 = sadd.s32 1, %s926
          $region374: #{tpu_custom_call.1} parent=367 // loop_footer_branch
            %925 = sbr.rel target = $region370
          $region375: #{tpu_custom_call.1} parent=367 // loop_exit
            _
        $region368: #{tpu_custom_call.1} parent=47 // pred_fallthru
          _
        // Predicated region
        $region387: #{tpu_custom_call.1} parent=47 // pred_check
          _
        $region388: #{tpu_custom_call.1} parent=47 // pred_check_branch
          %951 = sbr.rel (0) target = $region390
        $region389: #{tpu_custom_call.1} parent=47 // pred_region
          %952 = vsyncadd %s918, 16
        $region390: #{tpu_custom_call.1} parent=47 // pred_fallthru
          _
        %s953 = sadd.s32 %s405, 11
        %s954 = sshra.s32 %s953, 7
        %s955 = sand.u32 %s953, 127
        %s956 = sadd.s32 %s954, %s37
        %s957 = smul.u32 %s956, 128
        %s958 = sshra.s32 %s953, 7
        %s959 = sand.u32 %s953, 127
        %s960 = sadd.s32 %s957, %s959
        %s961 = sld [smem:[#allocation5 + %s960]]
        %p962 = scmp.gt.s32.totalorder %s961, 0
        %s963 = scalar_select %p962, %s961, 0
        %p964 = scmp.lt.s32.totalorder %s963, 63
        %s965 = scalar_select %p964, %s963, 63
        %s966 = scalar_lea.vmem %s1, %s965
        %s967 = scalar_lea.vmem [#allocation2], 11
        %s968 = scalar_lea.sflag [#allocation3], 11
        // Predicated region
        $region391: #{tpu_custom_call.1} parent=47 // pred_check
          _
        $region392: #{tpu_custom_call.1} parent=47 // pred_check_branch
          %970 = sbr.rel target = $region394
        $region393: #{tpu_custom_call.1} parent=47 // pred_region
          // Predicated region
          $region406: #{tpu_custom_call.1} parent=393 // pred_check
            _
          $region407: #{tpu_custom_call.1} parent=393 // pred_check_branch
            %986 = sbr.rel (0) target = $region409
          $region408: #{tpu_custom_call.1} parent=393 // pred_region
            %s988 = ssub.s32 2, 1
            loop: start=0, step=1, limit=1
            $region410: #{tpu_custom_call.1} parent=408 // loop_pre_header
              _
            $region411: #{tpu_custom_call.1} parent=408 // loop_header
              %s990 = sphi 0, %s994
              %p991 = scmp.ge.s32.totalorder %s990, 1
              %s995 = sphi %s966, %s966
              %s996 = sphi %s967, %s967
            $region412: #{tpu_custom_call.1} parent=408 // loop_header_branch
              %993 = sbr.rel (%p991) target = $region416
            $region413: #{tpu_custom_call.1} parent=408 // loop_body
              %v997 = vld [vmem:[%s995] sm:%s988]
              %998 = vst [vmem:[%s996] sm:%s988] %v997
            $region414: #{tpu_custom_call.1} parent=408 // loop_footer
              %s994 = sadd.s32 1, %s990
            $region415: #{tpu_custom_call.1} parent=408 // loop_footer_branch
              %989 = sbr.rel target = $region411
            $region416: #{tpu_custom_call.1} parent=408 // loop_exit
              _
          $region409: #{tpu_custom_call.1} parent=393 // pred_fallthru
            _
        $region394: #{tpu_custom_call.1} parent=47 // pred_fallthru
          _
        // Predicated region
        $region395: #{tpu_custom_call.1} parent=47 // pred_check
          _
        $region396: #{tpu_custom_call.1} parent=47 // pred_check_branch
          %972 = sbr.rel (0) target = $region398
        $region397: #{tpu_custom_call.1} parent=47 // pred_region
          %s974 = ssub.s32 2, 1
          loop: start=0, step=1, limit=1
          $region399: #{tpu_custom_call.1} parent=397 // loop_pre_header
            _
          $region400: #{tpu_custom_call.1} parent=397 // loop_header
            %s976 = sphi 0, %s980
            %p977 = scmp.ge.s32.totalorder %s976, 1
            %s981 = sphi %s966, %s966
            %s982 = sphi %s967, %s967
          $region401: #{tpu_custom_call.1} parent=397 // loop_header_branch
            %979 = sbr.rel (%p977) target = $region405
          $region402: #{tpu_custom_call.1} parent=397 // loop_body
            %v983 = vld [vmem:[%s981] sm:%s974]
            %984 = vst [vmem:[%s982] sm:%s974] %v983
          $region403: #{tpu_custom_call.1} parent=397 // loop_footer
            %s980 = sadd.s32 1, %s976
          $region404: #{tpu_custom_call.1} parent=397 // loop_footer_branch
            %975 = sbr.rel target = $region400
          $region405: #{tpu_custom_call.1} parent=397 // loop_exit
            _
        $region398: #{tpu_custom_call.1} parent=47 // pred_fallthru
          _
        // Predicated region
        $region417: #{tpu_custom_call.1} parent=47 // pred_check
          _
        $region418: #{tpu_custom_call.1} parent=47 // pred_check_branch
          %1001 = sbr.rel (0) target = $region420
        $region419: #{tpu_custom_call.1} parent=47 // pred_region
          %1002 = vsyncadd %s968, 16
        $region420: #{tpu_custom_call.1} parent=47 // pred_fallthru
          _
        %s1003 = sadd.s32 %s405, 12
        %s1004 = sshra.s32 %s1003, 7
        %s1005 = sand.u32 %s1003, 127
        %s1006 = sadd.s32 %s1004, %s37
        %s1007 = smul.u32 %s1006, 128
        %s1008 = sshra.s32 %s1003, 7
        %s1009 = sand.u32 %s1003, 127
        %s1010 = sadd.s32 %s1007, %s1009
        %s1011 = sld [smem:[#allocation5 + %s1010]]
        %p1012 = scmp.gt.s32.totalorder %s1011, 0
        %s1013 = scalar_select %p1012, %s1011, 0
        %p1014 = scmp.lt.s32.totalorder %s1013, 63
        %s1015 = scalar_select %p1014, %s1013, 63
        %s1016 = scalar_lea.vmem %s1, %s1015
        %s1017 = scalar_lea.vmem [#allocation2], 12
        %s1018 = scalar_lea.sflag [#allocation3], 12
        // Predicated region
        $region421: #{tpu_custom_call.1} parent=47 // pred_check
          _
        $region422: #{tpu_custom_call.1} parent=47 // pred_check_branch
          %1020 = sbr.rel target = $region424
        $region423: #{tpu_custom_call.1} parent=47 // pred_region
          // Predicated region
          $region436: #{tpu_custom_call.1} parent=423 // pred_check
            _
          $region437: #{tpu_custom_call.1} parent=423 // pred_check_branch
            %1036 = sbr.rel (0) target = $region439
          $region438: #{tpu_custom_call.1} parent=423 // pred_region
            %s1038 = ssub.s32 2, 1
            loop: start=0, step=1, limit=1
            $region440: #{tpu_custom_call.1} parent=438 // loop_pre_header
              _
            $region441: #{tpu_custom_call.1} parent=438 // loop_header
              %s1040 = sphi 0, %s1044
              %p1041 = scmp.ge.s32.totalorder %s1040, 1
              %s1045 = sphi %s1016, %s1016
              %s1046 = sphi %s1017, %s1017
            $region442: #{tpu_custom_call.1} parent=438 // loop_header_branch
              %1043 = sbr.rel (%p1041) target = $region446
            $region443: #{tpu_custom_call.1} parent=438 // loop_body
              %v1047 = vld [vmem:[%s1045] sm:%s1038]
              %1048 = vst [vmem:[%s1046] sm:%s1038] %v1047
            $region444: #{tpu_custom_call.1} parent=438 // loop_footer
              %s1044 = sadd.s32 1, %s1040
            $region445: #{tpu_custom_call.1} parent=438 // loop_footer_branch
              %1039 = sbr.rel target = $region441
            $region446: #{tpu_custom_call.1} parent=438 // loop_exit
              _
          $region439: #{tpu_custom_call.1} parent=423 // pred_fallthru
            _
        $region424: #{tpu_custom_call.1} parent=47 // pred_fallthru
          _
        // Predicated region
        $region425: #{tpu_custom_call.1} parent=47 // pred_check
          _
        $region426: #{tpu_custom_call.1} parent=47 // pred_check_branch
          %1022 = sbr.rel (0) target = $region428
        $region427: #{tpu_custom_call.1} parent=47 // pred_region
          %s1024 = ssub.s32 2, 1
          loop: start=0, step=1, limit=1
          $region429: #{tpu_custom_call.1} parent=427 // loop_pre_header
            _
          $region430: #{tpu_custom_call.1} parent=427 // loop_header
            %s1026 = sphi 0, %s1030
            %p1027 = scmp.ge.s32.totalorder %s1026, 1
            %s1031 = sphi %s1016, %s1016
            %s1032 = sphi %s1017, %s1017
          $region431: #{tpu_custom_call.1} parent=427 // loop_header_branch
            %1029 = sbr.rel (%p1027) target = $region435
          $region432: #{tpu_custom_call.1} parent=427 // loop_body
            %v1033 = vld [vmem:[%s1031] sm:%s1024]
            %1034 = vst [vmem:[%s1032] sm:%s1024] %v1033
          $region433: #{tpu_custom_call.1} parent=427 // loop_footer
            %s1030 = sadd.s32 1, %s1026
          $region434: #{tpu_custom_call.1} parent=427 // loop_footer_branch
            %1025 = sbr.rel target = $region430
          $region435: #{tpu_custom_call.1} parent=427 // loop_exit
            _
        $region428: #{tpu_custom_call.1} parent=47 // pred_fallthru
          _
        // Predicated region
        $region447: #{tpu_custom_call.1} parent=47 // pred_check
          _
        $region448: #{tpu_custom_call.1} parent=47 // pred_check_branch
          %1051 = sbr.rel (0) target = $region450
        $region449: #{tpu_custom_call.1} parent=47 // pred_region
          %1052 = vsyncadd %s1018, 16
        $region450: #{tpu_custom_call.1} parent=47 // pred_fallthru
          _
        %s1053 = sadd.s32 %s405, 13
        %s1054 = sshra.s32 %s1053, 7
        %s1055 = sand.u32 %s1053, 127
        %s1056 = sadd.s32 %s1054, %s37
        %s1057 = smul.u32 %s1056, 128
        %s1058 = sshra.s32 %s1053, 7
        %s1059 = sand.u32 %s1053, 127
        %s1060 = sadd.s32 %s1057, %s1059
        %s1061 = sld [smem:[#allocation5 + %s1060]]
        %p1062 = scmp.gt.s32.totalorder %s1061, 0
        %s1063 = scalar_select %p1062, %s1061, 0
        %p1064 = scmp.lt.s32.totalorder %s1063, 63
        %s1065 = scalar_select %p1064, %s1063, 63
        %s1066 = scalar_lea.vmem %s1, %s1065
        %s1067 = scalar_lea.vmem [#allocation2], 13
        %s1068 = scalar_lea.sflag [#allocation3], 13
        // Predicated region
        $region451: #{tpu_custom_call.1} parent=47 // pred_check
          _
        $region452: #{tpu_custom_call.1} parent=47 // pred_check_branch
          %1070 = sbr.rel target = $region454
        $region453: #{tpu_custom_call.1} parent=47 // pred_region
          // Predicated region
          $region466: #{tpu_custom_call.1} parent=453 // pred_check
            _
          $region467: #{tpu_custom_call.1} parent=453 // pred_check_branch
            %1086 = sbr.rel (0) target = $region469
          $region468: #{tpu_custom_call.1} parent=453 // pred_region
            %s1088 = ssub.s32 2, 1
            loop: start=0, step=1, limit=1
            $region470: #{tpu_custom_call.1} parent=468 // loop_pre_header
              _
            $region471: #{tpu_custom_call.1} parent=468 // loop_header
              %s1090 = sphi 0, %s1094
              %p1091 = scmp.ge.s32.totalorder %s1090, 1
              %s1095 = sphi %s1066, %s1066
              %s1096 = sphi %s1067, %s1067
            $region472: #{tpu_custom_call.1} parent=468 // loop_header_branch
              %1093 = sbr.rel (%p1091) target = $region476
            $region473: #{tpu_custom_call.1} parent=468 // loop_body
              %v1097 = vld [vmem:[%s1095] sm:%s1088]
              %1098 = vst [vmem:[%s1096] sm:%s1088] %v1097
            $region474: #{tpu_custom_call.1} parent=468 // loop_footer
              %s1094 = sadd.s32 1, %s1090
            $region475: #{tpu_custom_call.1} parent=468 // loop_footer_branch
              %1089 = sbr.rel target = $region471
            $region476: #{tpu_custom_call.1} parent=468 // loop_exit
              _
          $region469: #{tpu_custom_call.1} parent=453 // pred_fallthru
            _
        $region454: #{tpu_custom_call.1} parent=47 // pred_fallthru
          _
        // Predicated region
        $region455: #{tpu_custom_call.1} parent=47 // pred_check
          _
        $region456: #{tpu_custom_call.1} parent=47 // pred_check_branch
          %1072 = sbr.rel (0) target = $region458
        $region457: #{tpu_custom_call.1} parent=47 // pred_region
          %s1074 = ssub.s32 2, 1
          loop: start=0, step=1, limit=1
          $region459: #{tpu_custom_call.1} parent=457 // loop_pre_header
            _
          $region460: #{tpu_custom_call.1} parent=457 // loop_header
            %s1076 = sphi 0, %s1080
            %p1077 = scmp.ge.s32.totalorder %s1076, 1
            %s1081 = sphi %s1066, %s1066
            %s1082 = sphi %s1067, %s1067
          $region461: #{tpu_custom_call.1} parent=457 // loop_header_branch
            %1079 = sbr.rel (%p1077) target = $region465
          $region462: #{tpu_custom_call.1} parent=457 // loop_body
            %v1083 = vld [vmem:[%s1081] sm:%s1074]
            %1084 = vst [vmem:[%s1082] sm:%s1074] %v1083
          $region463: #{tpu_custom_call.1} parent=457 // loop_footer
            %s1080 = sadd.s32 1, %s1076
          $region464: #{tpu_custom_call.1} parent=457 // loop_footer_branch
            %1075 = sbr.rel target = $region460
          $region465: #{tpu_custom_call.1} parent=457 // loop_exit
            _
        $region458: #{tpu_custom_call.1} parent=47 // pred_fallthru
          _
        // Predicated region
        $region477: #{tpu_custom_call.1} parent=47 // pred_check
          _
        $region478: #{tpu_custom_call.1} parent=47 // pred_check_branch
          %1101 = sbr.rel (0) target = $region480
        $region479: #{tpu_custom_call.1} parent=47 // pred_region
          %1102 = vsyncadd %s1068, 16
        $region480: #{tpu_custom_call.1} parent=47 // pred_fallthru
          _
        %s1103 = sadd.s32 %s405, 14
        %s1104 = sshra.s32 %s1103, 7
        %s1105 = sand.u32 %s1103, 127
        %s1106 = sadd.s32 %s1104, %s37
        %s1107 = smul.u32 %s1106, 128
        %s1108 = sshra.s32 %s1103, 7
        %s1109 = sand.u32 %s1103, 127
        %s1110 = sadd.s32 %s1107, %s1109
        %s1111 = sld [smem:[#allocation5 + %s1110]]
        %p1112 = scmp.gt.s32.totalorder %s1111, 0
        %s1113 = scalar_select %p1112, %s1111, 0
        %p1114 = scmp.lt.s32.totalorder %s1113, 63
        %s1115 = scalar_select %p1114, %s1113, 63
        %s1116 = scalar_lea.vmem %s1, %s1115
        %s1117 = scalar_lea.vmem [#allocation2], 14
        %s1118 = scalar_lea.sflag [#allocation3], 14
        // Predicated region
        $region481: #{tpu_custom_call.1} parent=47 // pred_check
          _
        $region482: #{tpu_custom_call.1} parent=47 // pred_check_branch
          %1120 = sbr.rel target = $region484
        $region483: #{tpu_custom_call.1} parent=47 // pred_region
          // Predicated region
          $region496: #{tpu_custom_call.1} parent=483 // pred_check
            _
          $region497: #{tpu_custom_call.1} parent=483 // pred_check_branch
            %1136 = sbr.rel (0) target = $region499
          $region498: #{tpu_custom_call.1} parent=483 // pred_region
            %s1138 = ssub.s32 2, 1
            loop: start=0, step=1, limit=1
            $region500: #{tpu_custom_call.1} parent=498 // loop_pre_header
              _
            $region501: #{tpu_custom_call.1} parent=498 // loop_header
              %s1140 = sphi 0, %s1144
              %p1141 = scmp.ge.s32.totalorder %s1140, 1
              %s1145 = sphi %s1116, %s1116
              %s1146 = sphi %s1117, %s1117
            $region502: #{tpu_custom_call.1} parent=498 // loop_header_branch
              %1143 = sbr.rel (%p1141) target = $region506
            $region503: #{tpu_custom_call.1} parent=498 // loop_body
              %v1147 = vld [vmem:[%s1145] sm:%s1138]
              %1148 = vst [vmem:[%s1146] sm:%s1138] %v1147
            $region504: #{tpu_custom_call.1} parent=498 // loop_footer
              %s1144 = sadd.s32 1, %s1140
            $region505: #{tpu_custom_call.1} parent=498 // loop_footer_branch
              %1139 = sbr.rel target = $region501
            $region506: #{tpu_custom_call.1} parent=498 // loop_exit
              _
          $region499: #{tpu_custom_call.1} parent=483 // pred_fallthru
            _
        $region484: #{tpu_custom_call.1} parent=47 // pred_fallthru
          _
        // Predicated region
        $region485: #{tpu_custom_call.1} parent=47 // pred_check
          _
        $region486: #{tpu_custom_call.1} parent=47 // pred_check_branch
          %1122 = sbr.rel (0) target = $region488
        $region487: #{tpu_custom_call.1} parent=47 // pred_region
          %s1124 = ssub.s32 2, 1
          loop: start=0, step=1, limit=1
          $region489: #{tpu_custom_call.1} parent=487 // loop_pre_header
            _
          $region490: #{tpu_custom_call.1} parent=487 // loop_header
            %s1126 = sphi 0, %s1130
            %p1127 = scmp.ge.s32.totalorder %s1126, 1
            %s1131 = sphi %s1116, %s1116
            %s1132 = sphi %s1117, %s1117
          $region491: #{tpu_custom_call.1} parent=487 // loop_header_branch
            %1129 = sbr.rel (%p1127) target = $region495
          $region492: #{tpu_custom_call.1} parent=487 // loop_body
            %v1133 = vld [vmem:[%s1131] sm:%s1124]
            %1134 = vst [vmem:[%s1132] sm:%s1124] %v1133
          $region493: #{tpu_custom_call.1} parent=487 // loop_footer
            %s1130 = sadd.s32 1, %s1126
          $region494: #{tpu_custom_call.1} parent=487 // loop_footer_branch
            %1125 = sbr.rel target = $region490
          $region495: #{tpu_custom_call.1} parent=487 // loop_exit
            _
        $region488: #{tpu_custom_call.1} parent=47 // pred_fallthru
          _
        // Predicated region
        $region507: #{tpu_custom_call.1} parent=47 // pred_check
          _
        $region508: #{tpu_custom_call.1} parent=47 // pred_check_branch
          %1151 = sbr.rel (0) target = $region510
        $region509: #{tpu_custom_call.1} parent=47 // pred_region
          %1152 = vsyncadd %s1118, 16
        $region510: #{tpu_custom_call.1} parent=47 // pred_fallthru
          _
        %s1153 = sadd.s32 %s405, 15
        %s1154 = sshra.s32 %s1153, 7
        %s1155 = sand.u32 %s1153, 127
        %s1156 = sadd.s32 %s1154, %s37
        %s1157 = smul.u32 %s1156, 128
        %s1158 = sshra.s32 %s1153, 7
        %s1159 = sand.u32 %s1153, 127
        %s1160 = sadd.s32 %s1157, %s1159
        %s1161 = sld [smem:[#allocation5 + %s1160]]
        %p1162 = scmp.gt.s32.totalorder %s1161, 0
        %s1163 = scalar_select %p1162, %s1161, 0
        %p1164 = scmp.lt.s32.totalorder %s1163, 63
        %s1165 = scalar_select %p1164, %s1163, 63
        %s1166 = scalar_lea.vmem %s1, %s1165
        %s1167 = scalar_lea.vmem [#allocation2], 15
        %s1168 = scalar_lea.sflag [#allocation3], 15
        // Predicated region
        $region511: #{tpu_custom_call.1} parent=47 // pred_check
          _
        $region512: #{tpu_custom_call.1} parent=47 // pred_check_branch
          %1170 = sbr.rel target = $region514
        $region513: #{tpu_custom_call.1} parent=47 // pred_region
          // Predicated region
          $region526: #{tpu_custom_call.1} parent=513 // pred_check
            _
          $region527: #{tpu_custom_call.1} parent=513 // pred_check_branch
            %1186 = sbr.rel (0) target = $region529
          $region528: #{tpu_custom_call.1} parent=513 // pred_region
            %s1188 = ssub.s32 2, 1
            loop: start=0, step=1, limit=1
            $region530: #{tpu_custom_call.1} parent=528 // loop_pre_header
              _
            $region531: #{tpu_custom_call.1} parent=528 // loop_header
              %s1190 = sphi 0, %s1194
              %p1191 = scmp.ge.s32.totalorder %s1190, 1
              %s1195 = sphi %s1166, %s1166
              %s1196 = sphi %s1167, %s1167
            $region532: #{tpu_custom_call.1} parent=528 // loop_header_branch
              %1193 = sbr.rel (%p1191) target = $region536
            $region533: #{tpu_custom_call.1} parent=528 // loop_body
              %v1197 = vld [vmem:[%s1195] sm:%s1188]
              %1198 = vst [vmem:[%s1196] sm:%s1188] %v1197
            $region534: #{tpu_custom_call.1} parent=528 // loop_footer
              %s1194 = sadd.s32 1, %s1190
            $region535: #{tpu_custom_call.1} parent=528 // loop_footer_branch
              %1189 = sbr.rel target = $region531
            $region536: #{tpu_custom_call.1} parent=528 // loop_exit
              _
          $region529: #{tpu_custom_call.1} parent=513 // pred_fallthru
            _
        $region514: #{tpu_custom_call.1} parent=47 // pred_fallthru
          _
        // Predicated region
        $region515: #{tpu_custom_call.1} parent=47 // pred_check
          _
        $region516: #{tpu_custom_call.1} parent=47 // pred_check_branch
          %1172 = sbr.rel (0) target = $region518
        $region517: #{tpu_custom_call.1} parent=47 // pred_region
          %s1174 = ssub.s32 2, 1
          loop: start=0, step=1, limit=1
          $region519: #{tpu_custom_call.1} parent=517 // loop_pre_header
            _
          $region520: #{tpu_custom_call.1} parent=517 // loop_header
            %s1176 = sphi 0, %s1180
            %p1177 = scmp.ge.s32.totalorder %s1176, 1
            %s1181 = sphi %s1166, %s1166
            %s1182 = sphi %s1167, %s1167
          $region521: #{tpu_custom_call.1} parent=517 // loop_header_branch
            %1179 = sbr.rel (%p1177) target = $region525
          $region522: #{tpu_custom_call.1} parent=517 // loop_body
            %v1183 = vld [vmem:[%s1181] sm:%s1174]
            %1184 = vst [vmem:[%s1182] sm:%s1174] %v1183
          $region523: #{tpu_custom_call.1} parent=517 // loop_footer
            %s1180 = sadd.s32 1, %s1176
          $region524: #{tpu_custom_call.1} parent=517 // loop_footer_branch
            %1175 = sbr.rel target = $region520
          $region525: #{tpu_custom_call.1} parent=517 // loop_exit
            _
        $region518: #{tpu_custom_call.1} parent=47 // pred_fallthru
          _
        // Predicated region
        $region537: #{tpu_custom_call.1} parent=47 // pred_check
          _
        $region538: #{tpu_custom_call.1} parent=47 // pred_check_branch
          %1201 = sbr.rel (0) target = $region540
        $region539: #{tpu_custom_call.1} parent=47 // pred_region
          %1202 = vsyncadd %s1168, 16
        $region540: #{tpu_custom_call.1} parent=47 // pred_fallthru
          _
        %v1203 = vld [vmem:[%s393] sm:$0xff]
        %v1204 = vld [vmem:[%s393 + $0x8] sm:$0xff]
        %v1205 = vld [vmem:[#allocation6] sm:$0x1]
        %v1206 = vperm.slane %v1205, 0
        %vm1207 = vcmp.eq.s32.totalorder %v1203, 1
        %vm1208 = vcmp.eq.s32.totalorder %v1204, 1
        %v1209 = vld [vmem:[#allocation6 + $0x1] sm:$0x1]
        %v1210 = vsel %vm1207, 1, 0
        %v1211 = vsel %vm1208, 1, 0
        %1212 = vset.pattern.permute.xlu0 0
        %1213 = vperm.xlu0 %1212, %v1210
        %v1214 = vpop.permute.xlu0 %1213
        %1215 = vset.pattern.permute.xlu0 0
        %1216 = vperm.xlu0 %1215, %v1211
        %v1217 = vpop.permute.xlu0 %1216
        %vm1218 = vcmp.eq.s32.totalorder %v1214, 1
        %vm1219 = vcmp.eq.s32.totalorder %v1217, 1
        %v1220 = vperm.slane %v1209, 0
        %v1221 = vsel %vm1218, %v1220, %v1206
        %v1222 = vsel %vm1219, %v1220, %v1206
        %v1223 = vld [vmem:[%s402] sm:$0xff]
        %v1224 = vld [vmem:[%s402 + $0x8] sm:$0xff]
        %v1225 = vld [vmem:[#allocation9] sm:$0x1]
        %v1226 = vperm.slane %v1225, 0
        %vm1227 = vcmp.eq.s32.totalorder %v1223, 1
        %vm1228 = vcmp.eq.s32.totalorder %v1224, 1
        %v1229 = vld [vmem:[#allocation9 + $0x1] sm:$0x1]
        %v1230 = vsel %vm1227, 1, 0
        %v1231 = vsel %vm1228, 1, 0
        %1232 = vset.pattern.permute.xlu0 0
        %1233 = vperm.xlu0 %1232, %v1230
        %v1234 = vpop.permute.xlu0 %1233
        %1235 = vset.pattern.permute.xlu0 0
        %1236 = vperm.xlu0 %1235, %v1231
        %v1237 = vpop.permute.xlu0 %1236
        %vm1238 = vcmp.eq.s32.totalorder %v1234, 1
        %vm1239 = vcmp.eq.s32.totalorder %v1237, 1
        %v1240 = vperm.slane %v1229, 0
        %v1241 = vsel %vm1238, %v1240, %v1226
        %v1242 = vsel %vm1239, %v1240, %v1226
        %v1243 = vld [vmem:[#allocation11] sm:$0xff]
        %v1244 = vld [vmem:[#allocation11 + $0x8] sm:$0xff]
        %v1245 = vadd.f32 %v1243, %v1221
        %v1246 = vadd.f32 %v1244, %v1222
        %v1247 = vadd.f32 %v1245, %v1241
        %v1248 = vadd.f32 %v1246, %v1242
        %s1249 = sld [smem:[#allocation5 + %s412]]
        %1251 = dma.done [#allocation3], 16
        %s1252 = sld [smem:[#allocation5 + %s460]]
        %1254 = dma.done %s468, 16
        %s1255 = sld [smem:[#allocation5 + %s510]]
        %1257 = dma.done %s518, 16
        %s1258 = sld [smem:[#allocation5 + %s560]]
        %1260 = dma.done %s568, 16
        %s1261 = sld [smem:[#allocation5 + %s610]]
        %1263 = dma.done %s618, 16
        %s1264 = sld [smem:[#allocation5 + %s660]]
        %1266 = dma.done %s668, 16
        %s1267 = sld [smem:[#allocation5 + %s710]]
        %1269 = dma.done %s718, 16
        %s1270 = sld [smem:[#allocation5 + %s760]]
        %1272 = dma.done %s768, 16
        %s1273 = sld [smem:[#allocation5 + %s810]]
        %1275 = dma.done %s818, 16
        %s1276 = sld [smem:[#allocation5 + %s860]]
        %1278 = dma.done %s868, 16
        %s1279 = sld [smem:[#allocation5 + %s910]]
        %1281 = dma.done %s918, 16
        %s1282 = sld [smem:[#allocation5 + %s960]]
        %1284 = dma.done %s968, 16
        %s1285 = sld [smem:[#allocation5 + %s1010]]
        %1287 = dma.done %s1018, 16
        %s1288 = sld [smem:[#allocation5 + %s1060]]
        %1290 = dma.done %s1068, 16
        %s1291 = sld [smem:[#allocation5 + %s1110]]
        %1293 = dma.done %s1118, 16
        %s1294 = sld [smem:[#allocation5 + %s1160]]
        %1296 = dma.done %s1168, 16
        %v1297 = vld [vmem:[#allocation2] sm:$0xff]
        %v1298 = vld [vmem:[#allocation2 + $0x8] sm:$0xff]
        %v1299 = vadd.f32 %v1297, %v1247
        %v1300 = vadd.f32 %v1298, %v1248
        %1301 = vadd.xlane.f32.xlu0 %v1299
        %v1302 = vpop.xlane.xlu0 %1301
        %1303 = vadd.xlane.f32.xlu0 %v1300
        %v1304 = vpop.xlane.xlu0 %1303
        %v1305 = vrcp.pop 128.0
        %v1306 = vmul.f32 128.0, %v1305
        %v1307 = vsub.f32 1.0, %v1306
        %v1308 = vmul.f32 %v1305, %v1307
        %v1309 = vadd.f32 %v1305, %v1308
        %vm1310 = vweird.f32 %v1305
        %v1311 = vsel %vm1310, %v1305, %v1309
        %v1312 = vmul.f32 %v1302, %v1311
        %v1313 = vmul.f32 %v1304, %v1311
        %v1314 = vmul.f32 %v1299, %v1299
        %v1315 = vmul.f32 %v1300, %v1300
        %1316 = vadd.xlane.f32.xlu0 %v1314
        %v1317 = vpop.xlane.xlu0 %1316
        %1318 = vadd.xlane.f32.xlu0 %v1315
        %v1319 = vpop.xlane.xlu0 %1318
        %v1320 = vmul.f32 %v1317, %v1311
        %v1321 = vmul.f32 %v1319, %v1311
        %v1322 = vmul.f32 %v1312, %v1312
        %v1323 = vmul.f32 %v1313, %v1313
        %v1324 = vsub.f32 %v1320, %v1322
        %v1325 = vsub.f32 %v1321, %v1323
        %v1326 = vmax.f32 %v1324, 0.0
        %v1327 = vmax.f32 %v1325, 0.0
        %v1328 = vsub.f32 %v1299, %v1312
        %v1329 = vsub.f32 %v1300, %v1313
        %v1330 = vadd.f32 %v1326, 1e-06
        %v1331 = vadd.f32 %v1327, 1e-06
        %v1332 = vrsqrt.pop %v1330
        %v1333 = vmul.f32 %v1332, %v1330
        %v1334 = vmul.f32 %v1333, %v1332
        %v1335 = vmul.f32 0.5, %v1334
        %v1336 = vsub.f32 1.5, %v1335
        %v1337 = vmul.f32 %v1332, %v1336
        %vm1338 = vweird.f32 %v1330
        %vm1339 = vweird.f32 %v1332
        %vm1340 = vmor %vm1338, %vm1339
        %v1341 = vsel %vm1340, %v1332, %v1337
        %v1342 = vrsqrt.pop %v1331
        %v1343 = vmul.f32 %v1342, %v1331
        %v1344 = vmul.f32 %v1343, %v1342
        %v1345 = vmul.f32 0.5, %v1344
        %v1346 = vsub.f32 1.5, %v1345
        %v1347 = vmul.f32 %v1342, %v1346
        %vm1348 = vweird.f32 %v1331
        %vm1349 = vweird.f32 %v1342
        %vm1350 = vmor %vm1348, %vm1349
        %v1351 = vsel %vm1350, %v1342, %v1347
        %v1352 = vmul.f32 %v1328, %v1341
        %v1353 = vmul.f32 %v1329, %v1351
        %v1354 = vld [vmem:[%s7] sm:$0x1]
        %v1356 = vperm.slane %v1354, 0
        %v1358 = vmul.f32 %v1352, %v1356
        %v1359 = vmul.f32 %v1353, %v1356
        %v1360 = vld [vmem:[%s8] sm:$0x1]
        %v1362 = vperm.slane %v1360, 0
        %v1364 = vadd.f32 %v1358, %v1362
        %v1365 = vadd.f32 %v1359, %v1362
        %1366 = vst [vmem:[%s384] sm:$0xff] %v1364
        %1367 = vst [vmem:[%s384 + $0x8] sm:$0xff] %v1365
        %s1368 = sand.u32 %s221, 1
        %s1369 = scalar_lea.sflag [#allocation8], %s1368
        %s1370 = sand.u32 %s221, 1
        %s1371 = smul.addr %s1370, 16
        %s1372 = scalar_lea.vmem [#allocation12], %s1371
        // Predicated region
        $region541: #{tpu_custom_call.1} parent=47 // pred_check
          %p1373 = pneg %p231
        $region542: #{tpu_custom_call.1} parent=47 // pred_check_branch
          %1375 = sbr.rel (%p1373) target = $region544
        $region543: #{tpu_custom_call.1} parent=47 // pred_region
          %s1376 = smul.u32 2, %s38
          %1378 = vsyncadd %s1369, 0
          %s1379 = smul.addr %s37, 2
          %s1380 = sadd.s32 %s1376, %s1379
          %s1381 = smul.addr %s1380, 8
          %s1382 = scalar_lea.hbm %s9, %s1381
          %s1383 = sshll.u32 %s1372, 4
          %s1384 = int_to_ptr.vmem [resolvable:$true] %s1383
          %s1385 = sshll.u32 %s1382, 4
          %s1386 = int_to_ptr.hbm [resolvable:$true] %s1385
          %1391 = dma.vmem_to_hbm [thread:$0]  %s1384, 256, %s1386, %s1369, 128, 128, 8
        $region544: #{tpu_custom_call.1} parent=47 // pred_fallthru
          _
      $region48: #{tpu_custom_call.1} parent=5 // pred_fallthru
        _
      %p1392 = scmp.le.s32.totalorder 2, %s28
      // Predicated region
      $region545: #{tpu_custom_call.1} parent=5 // pred_check
        %p1393 = pneg %p1392
      $region546: #{tpu_custom_call.1} parent=5 // pred_check_branch
        %1395 = sbr.rel (%p1393) target = $region548
      $region547: #{tpu_custom_call.1} parent=5 // pred_region
        %s1396 = ssub.s32 %s28, 2
        // Predicated region
        $region549: #{tpu_custom_call.1} parent=547 // pred_check
          %p1397 = pneg %p237
        $region550: #{tpu_custom_call.1} parent=547 // pred_check_branch
          %1399 = sbr.rel (%p1397) target = $region552
        $region551: #{tpu_custom_call.1} parent=547 // pred_region
          %s1400 = sand.u32 %s222, 1
          %s1401 = scalar_lea.sflag [#allocation8], %s1400
          %s1402 = sand.u32 %s222, 1
          %s1403 = smul.addr %s1402, 16
          %s1404 = scalar_lea.vmem [#allocation12], %s1403
          %1406 = dma.done %s1401, 256
        $region552: #{tpu_custom_call.1} parent=547 // pred_fallthru
          _
      $region548: #{tpu_custom_call.1} parent=5 // pred_fallthru
        _
    $region6: #{tpu_custom_call.1} parent=1 // loop_footer
      %s32 = sadd.s32 1, %s28
    $region7: #{tpu_custom_call.1} parent=1 // loop_footer_branch
      %27 = sbr.rel target = $region3
    $region8: #{tpu_custom_call.1} parent=1 // loop_exit
      _
    %1407 = vsyncpa [#allocation7], 1
    %s1408 = scalar_lea.sflag [#allocation7], 1
    %1409 = vsyncpa %s1408, 1
    %1410 = vsyncpa [#allocation10], 1
    %1411 = vsyncpa [#allocation8], 1
    %s1412 = scalar_lea.sflag [#allocation8], 1
    %1413 = vsyncpa %s1412, 1
  %1414 = vsyncmov [#allocation3]
  %s1415 = vpop.sfrf %1414
  %p1416 = scmp.eq.s32.totalorder %s1415, 0
  %p1417 = pneg %p1416
  %1419 = shalt.err (%p1417)
  %s1420 = scalar_lea.sflag [#allocation3], 1
  %1421 = vsyncmov %s1420
  %s1422 = vpop.sfrf %1421
  %p1423 = scmp.eq.s32.totalorder %s1422, 0
  %p1424 = pneg %p1423
  %1426 = shalt.err (%p1424)
  %s1427 = scalar_lea.sflag [#allocation3], 2
  %1428 = vsyncmov %s1427
  %s1429 = vpop.sfrf %1428
  %p1430 = scmp.eq.s32.totalorder %s1429, 0
  %p1431 = pneg %p1430
  %1433 = shalt.err (%p1431)
  %s1434 = scalar_lea.sflag [#allocation3], 3
  %1435 = vsyncmov %s1434
  %s1436 = vpop.sfrf %1435
  %p1437 = scmp.eq.s32.totalorder %s1436, 0
  %p1438 = pneg %p1437
  %1440 = shalt.err (%p1438)
  %s1441 = scalar_lea.sflag [#allocation3], 4
  %1442 = vsyncmov %s1441
  %s1443 = vpop.sfrf %1442
  %p1444 = scmp.eq.s32.totalorder %s1443, 0
  %p1445 = pneg %p1444
  %1447 = shalt.err (%p1445)
  %s1448 = scalar_lea.sflag [#allocation3], 5
  %1449 = vsyncmov %s1448
  %s1450 = vpop.sfrf %1449
  %p1451 = scmp.eq.s32.totalorder %s1450, 0
  %p1452 = pneg %p1451
  %1454 = shalt.err (%p1452)
  %s1455 = scalar_lea.sflag [#allocation3], 6
  %1456 = vsyncmov %s1455
  %s1457 = vpop.sfrf %1456
  %p1458 = scmp.eq.s32.totalorder %s1457, 0
  %p1459 = pneg %p1458
  %1461 = shalt.err (%p1459)
  %s1462 = scalar_lea.sflag [#allocation3], 7
  %1463 = vsyncmov %s1462
  %s1464 = vpop.sfrf %1463
  %p1465 = scmp.eq.s32.totalorder %s1464, 0
  %p1466 = pneg %p1465
  %1468 = shalt.err (%p1466)
  %s1469 = scalar_lea.sflag [#allocation3], 8
  %1470 = vsyncmov %s1469
  %s1471 = vpop.sfrf %1470
  %p1472 = scmp.eq.s32.totalorder %s1471, 0
  %p1473 = pneg %p1472
  %1475 = shalt.err (%p1473)
  %s1476 = scalar_lea.sflag [#allocation3], 9
  %1477 = vsyncmov %s1476
  %s1478 = vpop.sfrf %1477
  %p1479 = scmp.eq.s32.totalorder %s1478, 0
  %p1480 = pneg %p1479
  %1482 = shalt.err (%p1480)
  %s1483 = scalar_lea.sflag [#allocation3], 10
  %1484 = vsyncmov %s1483
  %s1485 = vpop.sfrf %1484
  %p1486 = scmp.eq.s32.totalorder %s1485, 0
  %p1487 = pneg %p1486
  %1489 = shalt.err (%p1487)
  %s1490 = scalar_lea.sflag [#allocation3], 11
  %1491 = vsyncmov %s1490
  %s1492 = vpop.sfrf %1491
  %p1493 = scmp.eq.s32.totalorder %s1492, 0
  %p1494 = pneg %p1493
  %1496 = shalt.err (%p1494)
  %s1497 = scalar_lea.sflag [#allocation3], 12
  %1498 = vsyncmov %s1497
  %s1499 = vpop.sfrf %1498
  %p1500 = scmp.eq.s32.totalorder %s1499, 0
  %p1501 = pneg %p1500
  %1503 = shalt.err (%p1501)
  %s1504 = scalar_lea.sflag [#allocation3], 13
  %1505 = vsyncmov %s1504
  %s1506 = vpop.sfrf %1505
  %p1507 = scmp.eq.s32.totalorder %s1506, 0
  %p1508 = pneg %p1507
  %1510 = shalt.err (%p1508)
  %s1511 = scalar_lea.sflag [#allocation3], 14
  %1512 = vsyncmov %s1511
  %s1513 = vpop.sfrf %1512
  %p1514 = scmp.eq.s32.totalorder %s1513, 0
  %p1515 = pneg %p1514
  %1517 = shalt.err (%p1515)
  %s1518 = scalar_lea.sflag [#allocation3], 15
  %1519 = vsyncmov %s1518
  %s1520 = vpop.sfrf %1519
  %p1521 = scmp.eq.s32.totalorder %s1520, 0
  %p1522 = pneg %p1521
  %1524 = shalt.err (%p1522)

</llo_original>
